<compile_context>
chip_gen: v7x
topology: tpu7x:2x2x1
jax: 0.10.0
libtpu: 0.0.40
codegen_flags: <defaults>
</compile_context>

<pallas_src>
import math
import functools

import jax
import jax.numpy as jnp
from jax.experimental import pallas as pl
from jax.experimental.pallas import tpu as pltpu

# ---------------- model hyper-parameters (small but shape-consistent) --------
INPUT_DIM = 2      # x feature dim
OUTPUT_DIM = 1     # y dim
EMBED_DIM = 128    # embed_dim (module default)
HIDDEN_DIM = 256   # module default is 1024; kept small here (shape-consistent)
BATCH = 8
LN_EPS = 1e-5
OUT_PAD = 128      # lane-dense padded output width (real output = INPUT_DIM)
NIN = 8            # packed input lanes: [ x(2) | y(1) | t(1) | zeros ]
MAX_ROW_TILE = 256 # batch rows per grid step


def _round_up(n, m):
    return (n + m - 1) // m * m


# ---------------- in-kernel math helpers -------------------------------------
def _gelu(x):
    # tanh-form GELU: jnp.tanh runs on the EUP slot instead of a VPU erf poly.
    # TODO(synk): switch back to erf-GELU if bit-parity with torch is required.
    c = math.sqrt(2.0 / math.pi)
    return 0.5 * x * (1.0 + jnp.tanh(c * (x + 0.044715 * (x * x * x))))


def _ln_raw(x):
    # single pass: var = E[x^2] - mu^2 ; affine (if any) applied by caller
    mu = jnp.mean(x, axis=-1, keepdims=True)
    var = jnp.mean(x * x, axis=-1, keepdims=True) - mu * mu
    return (x - mu) * jax.lax.rsqrt(var + LN_EPS)


def _ln(x, g, b):
    return _ln_raw(x) * g + b


# ---------------- the fused Pallas kernel ------------------------------------
def _enhanced_kernel(in_ref, *refs,
                     weight_ks, slab_widths, weight_index, small_index):
    nw, ns = len(weight_ks), len(slab_widths)
    wref = dict(zip(weight_ks, refs[:nw]))           # K -> (K, sum_N) bf16 slab
    sref = dict(zip(slab_widths, refs[nw:nw + ns]))  # width -> (rows, w) f32
    out_ref = refs[nw + ns]
    cat_ref = refs[nw + ns + 1]                      # (tm, 2E) f32 VMEM scratch

    E = EMBED_DIM

    def V(name):
        w, r = small_index[name]
        return sref[w][r:r + 1, :]                   # (1, w) static row slice

    def mm(x, name):
        k, off, n = weight_index[name]               # static 128-aligned slice
        return jnp.dot(x.astype(jnp.bfloat16), wref[k][:, off:off + n],
                       preferred_element_type=jnp.float32)

    xin = in_ref[...]                                # (tm, NIN) f32

    # ---- cosine time embedding (in-kernel, sin/cos on the EUP) ----
    tcol = xin[:, INPUT_DIM + OUTPUT_DIM:INPUT_DIM + OUTPUT_DIM + 1]
    arg = tcol * V("freq")                           # (tm, E); freq row is [f|f]
    lane = jax.lax.broadcasted_iota(jnp.int32, arg.shape, 1)
    t_emb = jnp.where(lane < (E // 2), jnp.sin(arg), jnp.cos(arg))

    # ---- x_embed / y_embed: first projections are VPU broadcast FMAs ----
    h = V("xe_b1")
    for d in range(INPUT_DIM):
        h = h + xin[:, d:d + 1] * V(f"xe_w1r{d}")
    h = _ln_raw(_gelu(h))                            # LN1 affine folded into xe_w2
    x_emb = _ln(mm(h, "xe_w2") + V("xe_b2"), V("xe_g2"), V("xe_be2"))

    h = V("ye_b1")
    for d in range(OUTPUT_DIM):
        h = h + xin[:, INPUT_DIM + d:INPUT_DIM + d + 1] * V(f"ye_w1r{d}")
    h = _ln_raw(_gelu(h))                            # LN1 affine folded into ye_w2
    y_emb = _ln(mm(h, "ye_w2") + V("ye_b2"), V("ye_g2"), V("ye_be2"))

    # ---- EnhancedCrossAttention with seq_len == 1 (softmax == 1, see header)
    def cross_attn(q, kv, tag):
        v = mm(kv, f"{tag}_wv") + V(f"{tag}_bv")        # value slice of in_proj
        attn_out = mm(v, f"{tag}_wo") + V(f"{tag}_bo")  # out_proj
        # reference uses ONE shared self.norm for both residual norms
        qn = _ln(q + attn_out, V(f"{tag}_lng"), V(f"{tag}_lnb"))
        f = _gelu(mm(qn, f"{tag}_fw1") + V(f"{tag}_fb1"))
        f = mm(f, f"{tag}_fw2") + V(f"{tag}_fb2")
        return _ln(qn + f, V(f"{tag}_lng"), V(f"{tag}_lnb"))

    attn_y = cross_attn(y_emb, x_emb, "ay")          # q=y_emb, k=v=x_emb
    attn_x = cross_attn(x_emb, y_emb, "ax")          # q=x_emb, k=v=y_emb

    # ---- fusion: single K=2E MXU push (lane-adjacent stores, no relayout) ----
    cat_ref[:, :E] = attn_y
    cat_ref[:, E:] = attn_x
    h = mm(cat_ref[...], "fu_w1") + V("fu_b1")
    h = _ln_raw(_gelu(h))                            # LN1 affine folded into fu_w2
    fused = _ln(mm(h, "fu_w2") + V("fu_b2"), V("fu_g2"), V("fu_be2"))

    # ---- time_proj: single K=2E push; its LN affine is folded into mlp_w1 ----
    cat_ref[:, :E] = fused
    cat_ref[:, E:] = t_emb
    tf = _ln_raw(_gelu(mm(cat_ref[...], "tp_w") + V("tp_b")))

    # ---- MLP head (LN affines folded forward; lane-dense padded output) ----
    h = _ln_raw(_gelu(mm(tf, "mlp_w1") + V("mlp_b1")))
    h = _ln_raw(_gelu(mm(h, "mlp_w2") + V("mlp_b2")))
    out_ref[...] = mm(h, "mlp_w3p") + V("mlp_b3p")


# ---------------- parameter initialization (deterministic) -------------------
def _lin_init(key, din, dout):
    k1, k2 = jax.random.split(key)
    bound = 1.0 / math.sqrt(din)
    w = jax.random.uniform(k1, (din, dout), jnp.float32, -bound, bound)
    b = jax.random.uniform(k2, (1, dout), jnp.float32, -bound, bound)
    return w, b


def _ln_init(d):
    return jnp.ones((1, d), jnp.float32), jnp.zeros((1, d), jnp.float32)


def _embed_block_init(key, din, e):
    k1, k2 = jax.random.split(key)
    w1, b1 = _lin_init(k1, din, 4 * e)
    g1, be1 = _ln_init(4 * e)
    w2, b2 = _lin_init(k2, 4 * e, e)
    g2, be2 = _ln_init(e)
    return dict(w1=w1, b1=b1, g1=g1, be1=be1, w2=w2, b2=b2, g2=g2, be2=be2)


def _attn_block_init(key, e):
    k1, k2, k3, k4 = jax.random.split(key, 4)
    wv, bv = _lin_init(k1, e, e)       # value slice of in_proj
    wo, bo = _lin_init(k2, e, e)       # out_proj
    ln_g, ln_b = _ln_init(e)           # shared norm (used twice, as in torch)
    fw1, fb1 = _lin_init(k3, e, 4 * e)
    fw2, fb2 = _lin_init(k4, 4 * e, e)
    return dict(wv=wv, bv=bv, wo=wo, bo=bo, ln_g=ln_g, ln_b=ln_b,
                fw1=fw1, fb1=fb1, fw2=fw2, fb2=fb2)


def init_params(key):
    E, H = EMBED_DIM, HIDDEN_DIM
    ks = jax.random.split(key, 8)
    params = {
        "x_embed": _embed_block_init(ks[0], INPUT_DIM, E),
        "y_embed": _embed_block_init(ks[1], OUTPUT_DIM, E),
        "attn_y": _attn_block_init(ks[2], E),
        "attn_x": _attn_block_init(ks[3], E),
        "fusion": _embed_block_init(ks[4], 2 * E, E),
    }
    tw, tb = _lin_init(ks[5], 2 * E, E)
    tg, tbe = _ln_init(E)
    params["time_proj"] = dict(w=tw, b=tb, g=tg, be=tbe)

    k1, k2, k3 = jax.random.split(ks[6], 3)
    w1, b1 = _lin_init(k1, E, H)
    g1, be1 = _ln_init(H)
    w2, b2 = _lin_init(k2, H, 2 * H)
    g2, be2 = _ln_init(2 * H)
    w3, b3 = _lin_init(k3, 2 * H, INPUT_DIM)   # condition_training=True output
    params["mlp"] = dict(w1=w1, b1=b1, g1=g1, be1=be1,
                         w2=w2, b2=b2, g2=g2, be2=be2, w3=w3, b3=b3)
    return params


# ---------------- pack-time LN-affine folding --------------------------------
def _fold_ln_into_linear(gamma, beta, w, b):
    # (z_norm*g + be) @ W + b == z_norm @ (g[:,None]*W) + (be @ W + b)
    g = jnp.asarray(gamma, jnp.float32).reshape(-1)
    be = jnp.asarray(beta, jnp.float32).reshape(-1)
    w = jnp.asarray(w, jnp.float32)
    b = jnp.asarray(b, jnp.float32).reshape(-1)
    return w * g[:, None], b + be @ w


# ---------------- packing: K-grouped bf16 weight slabs + f32 small slabs -----
def pack_params(params):
    E = EMBED_DIM
    big = {}     # name -> f32 (K, N) matmul weight (cast to bf16 when slabbed)
    small = {}   # name -> f32 (D,) vector

    def add_big(name, w):
        big[name] = jnp.asarray(w, jnp.float32)

    def add_small(name, v):
        small[name] = jnp.asarray(v, jnp.float32).reshape(-1)

    # x_embed / y_embed  (LN1 affine folded into w2)
    for tag, key, din in (("xe", "x_embed", INPUT_DIM),
                          ("ye", "y_embed", OUTPUT_DIM)):
        p = params[key]
        for d in range(din):
            add_small(f"{tag}_w1r{d}", p["w1"][d])
        add_small(f"{tag}_b1", p["b1"])
        w2, b2 = _fold_ln_into_linear(p["g1"], p["be1"], p["w2"], p["b2"])
        add_big(f"{tag}_w2", w2)
        add_small(f"{tag}_b2", b2)
        add_small(f"{tag}_g2", p["g2"]); add_small(f"{tag}_be2", p["be2"])

    for tag, key in (("ay", "attn_y"), ("ax", "attn_x")):
        a = params[key]
        add_big(f"{tag}_wv", a["wv"]); add_small(f"{tag}_bv", a["bv"])
        add_big(f"{tag}_wo", a["wo"]); add_small(f"{tag}_bo", a["bo"])
        add_small(f"{tag}_lng", a["ln_g"]); add_small(f"{tag}_lnb", a["ln_b"])
        add_big(f"{tag}_fw1", a["fw1"]); add_small(f"{tag}_fb1", a["fb1"])
        add_big(f"{tag}_fw2", a["fw2"]); add_small(f"{tag}_fb2", a["fb2"])

    fu = params["fusion"]
    add_big("fu_w1", fu["w1"])                 # keep K=2E un-split: one MXU push
    add_small("fu_b1", fu["b1"])
    w2, b2 = _fold_ln_into_linear(fu["g1"], fu["be1"], fu["w2"], fu["b2"])
    add_big("fu_w2", w2); add_small("fu_b2", b2)
    add_small("fu_g2", fu["g2"]); add_small("fu_be2", fu["be2"])

    tp = params["time_proj"]
    add_big("tp_w", tp["w"])                   # K=2E un-split
    add_small("tp_b", tp["b"])

    m = params["mlp"]
    w1, b1 = _fold_ln_into_linear(tp["g"], tp["be"], m["w1"], m["b1"])   # tp LN -> mlp_w1
    add_big("mlp_w1", w1); add_small("mlp_b1", b1)
    w2, b2 = _fold_ln_into_linear(m["g1"], m["be1"], m["w2"], m["b2"])   # mlp LN1 -> mlp_w2
    add_big("mlp_w2", w2); add_small("mlp_b2", b2)
    w3, b3 = _fold_ln_into_linear(m["g2"], m["be2"], m["w3"], m["b3"])   # mlp LN2 -> mlp_w3
    # pad final projection to 128 output lanes (zero cols) -> lane-dense store
    w3p = jnp.zeros((w3.shape[0], OUT_PAD), jnp.float32).at[:, :w3.shape[1]].set(w3)
    b3p = jnp.zeros((OUT_PAD,), jnp.float32).at[:b3.shape[0]].set(b3)
    add_big("mlp_w3p", w3p); add_small("mlp_b3p", b3p)

    # cosine-time-embedding frequency row, tiled for the sin|cos lane split
    half = E // 2
    f = jnp.exp(jnp.arange(half, dtype=jnp.float32)
                * -(math.log(10000.0) / (half - 1)))
    add_small("freq", jnp.concatenate([f, f]))

    # ---- group matmul weights by K into lane-concatenated bf16 slabs ----
    weight_ks = tuple(sorted({int(w.shape[0]) for w in big.values()}))
    weight_index, wslab_list = {}, []
    for k in weight_ks:
        names = [n for n, w in big.items() if int(w.shape[0]) == k]
        off, parts = 0, []
        for n in names:
            w = big[n]
            weight_index[n] = (k, off, int(w.shape[1]))
            off += int(w.shape[1])                 # all N multiples of 128
            parts.append(w)
        wslab_list.append(jnp.concatenate(parts, axis=1).astype(jnp.bfloat16))

    # ---- group small vectors by width into per-width f32 slabs ----
    slab_widths = tuple(sorted({int(v.shape[0]) for v in small.values()}))
    small_index, sslab_list = {}, []
    for w in slab_widths:
        names = [n for n, v in small.items() if int(v.shape[0]) == w]
        for r, n in enumerate(names):
            small_index[n] = (w, r)
        sslab_list.append(jnp.stack([small[n] for n in names], axis=0))

    return dict(wslabs=wslab_list, weight_ks=weight_ks, weight_index=weight_index,
                sslabs=sslab_list, slab_widths=slab_widths, small_index=small_index)


# ---------------- wrapper -----------------------------------------------------
def enhanced_cross_atten_mlp(packed, x, t, y):
    B = x.shape[0]
    y2 = jnp.reshape(y, (-1, OUTPUT_DIM)).astype(jnp.float32)   # y.view(-1, y_dim)

    # row tiling: >=2 grid steps whenever the batch allows (v7x megacore)
    Bp8 = _round_up(max(B, 1), 8)
    tm = min(MAX_ROW_TILE, Bp8)
    if Bp8 >= 16:
        tm = min(tm, _round_up((Bp8 + 1) // 2, 8))
    Bp = _round_up(B, tm)
    grid = (Bp // tm,)

    # pack x | y | t into one small f32 input block (single per-row DMA stream)
    xin = jnp.zeros((Bp, NIN), jnp.float32)
    xin = xin.at[:B, :INPUT_DIM].set(x.astype(jnp.float32))
    xin = xin.at[:B, INPUT_DIM:INPUT_DIM + OUTPUT_DIM].set(y2)
    xin = xin.at[:B, INPUT_DIM + OUTPUT_DIM].set(
        jnp.reshape(t, (-1,)).astype(jnp.float32))

    wslabs, sslabs = packed["wslabs"], packed["sslabs"]

    def resident(a):                                 # constant block index -> stays in VMEM
        return pl.BlockSpec(a.shape, lambda i: (0, 0))

    in_specs = ([pl.BlockSpec((tm, NIN), lambda i: (i, 0))]
                + [resident(w) for w in wslabs]
                + [resident(s) for s in sslabs])

    kernel = functools.partial(
        _enhanced_kernel,
        weight_ks=packed["weight_ks"], slab_widths=packed["slab_widths"],
        weight_index=packed["weight_index"], small_index=packed["small_index"])

    out = pl.pallas_call(
        kernel,
        out_shape=jax.ShapeDtypeStruct((Bp, OUT_PAD), jnp.float32),
        grid=grid,
        in_specs=in_specs,
        out_specs=pl.BlockSpec((tm, OUT_PAD), lambda i: (i, 0)),
        scratch_shapes=[pltpu.VMEM((tm, 2 * EMBED_DIM), jnp.float32)],
        compiler_params=pltpu.CompilerParams(dimension_semantics=("parallel",)),
    )(xin, *wslabs, *sslabs)

    return out[:B, :INPUT_DIM].reshape(x.shape)      # output.view(*x.shape)


# ---------------- pure-JAX reference (f32, erf-GELU) for the smoke check -----
def _ref_forward(params, x, t, y):
    E = EMBED_DIM

    def gelu(v):
        return 0.5 * v * (1.0 + jax.lax.erf(v / math.sqrt(2.0)))

    def ln(v, g, b):
        mu = jnp.mean(v, -1, keepdims=True)
        var = jnp.mean((v - mu) ** 2, -1, keepdims=True)
        return (v - mu) / jnp.sqrt(var + LN_EPS) * g + b

    def embed(p, v):
        h = ln(gelu(v @ p["w1"] + p["b1"]), p["g1"], p["be1"])
        return ln(h @ p["w2"] + p["b2"], p["g2"], p["be2"])

    def attn_block(p, q, kv):
        vproj = kv @ p["wv"] + p["bv"]
        ao = vproj @ p["wo"] + p["bo"]               # softmax over 1 key == 1
        qn = ln(q + ao, p["ln_g"], p["ln_b"])
        f = gelu(qn @ p["fw1"] + p["fb1"]) @ p["fw2"] + p["fb2"]
        return ln(qn + f, p["ln_g"], p["ln_b"])

    half = E // 2
    freq = jnp.exp(jnp.arange(half, dtype=jnp.float32)
                   * -(math.log(10000.0) / (half - 1)))
    te = t.astype(jnp.float32)[:, None] * freq[None, :]
    t_emb = jnp.concatenate([jnp.sin(te), jnp.cos(te)], -1)

    x_emb = embed(params["x_embed"], x.astype(jnp.float32))
    y_emb = embed(params["y_embed"],
                  jnp.reshape(y, (-1, OUTPUT_DIM)).astype(jnp.float32))
    attn_y = attn_block(params["attn_y"], y_emb, x_emb)
    attn_x = attn_block(params["attn_x"], x_emb, y_emb)
    fused = embed(params["fusion"], jnp.concatenate([attn_y, attn_x], -1))
    tp = params["time_proj"]
    tf = ln(gelu(jnp.concatenate([fused, t_emb], -1) @ tp["w"] + tp["b"]),
            tp["g"], tp["be"])
    m = params["mlp"]
    h = ln(gelu(tf @ m["w1"] + m["b1"]), m["g1"], m["be1"])
    h = ln(gelu(h @ m["w2"] + m["b2"]), m["g2"], m["be2"])
    return (h @ m["w3"] + m["b3"]).reshape(x.shape)


# ---------------- main --------------------------------------------------------
if __name__ == "__main__":
    key = jax.random.PRNGKey(0)
    kp, kx, kt, ky = jax.random.split(key, 4)

    params = init_params(kp)
    packed = pack_params(params)

    x = jax.random.normal(kx, (BATCH, INPUT_DIM), jnp.float32)
    t = jax.random.uniform(kt, (BATCH,), jnp.float32, 0.0, 1.0)
    y = jax.random.normal(ky, (BATCH,), jnp.float32)

    out = enhanced_cross_atten_mlp(packed, x, t, y)
    out = jax.block_until_ready(out)

    assert out.shape == x.shape, out.shape
    assert bool(jnp.all(jnp.isfinite(out)))

    # loose numerical check vs the f32 reference (bf16 weights + tanh-GELU drift)
    ref = _ref_forward(params, x, t, y)
    err = float(jnp.max(jnp.abs(out - ref)))
    scale = float(jnp.max(jnp.abs(ref)))
    assert err <= 0.1 * scale + 0.02, (err, scale)

    print("KERNEL_OK")
</pallas_src>

<mosaic_0001>
module attributes {stable_mosaic.version = 11 : i64} {
  func.func @_enhanced_kernel(%arg0: i32, %arg1: memref<8x8xf32, #tpu.memory_space<vmem>>, %arg2: memref<128x1792xbf16, #tpu.memory_space<vmem>>, %arg3: memref<256x1152xbf16, #tpu.memory_space<vmem>>, %arg4: memref<512x768xbf16, #tpu.memory_space<vmem>>, %arg5: memref<22x128xf32, #tpu.memory_space<vmem>>, %arg6: memref<1x256xf32, #tpu.memory_space<vmem>>, %arg7: memref<9x512xf32, #tpu.memory_space<vmem>>, %arg8: memref<8x128xf32, #tpu.memory_space<vmem>>, %arg9: memref<8x256xf32, #tpu.memory_space<vmem>>) attributes {dimension_semantics = [#tpu.dimension_semantics<parallel>], iteration_bounds = array<i64: 1>, scalar_prefetch = 0 : i64, scratch_operands = 1 : i64, tpu.core_type = #tpu.core_type<tc>, window_params = [{transform_indices = @transform_0, window_bounds = array<i64: 8, 8>}, {pipeline_mode = #tpu.pipeline_mode<synchronous>, transform_indices = @transform_1, window_bounds = array<i64: 128, 1792>}, {pipeline_mode = #tpu.pipeline_mode<synchronous>, transform_indices = @transform_2, window_bounds = array<i64: 256, 1152>}, {pipeline_mode = #tpu.pipeline_mode<synchronous>, transform_indices = @transform_3, window_bounds = array<i64: 512, 768>}, {pipeline_mode = #tpu.pipeline_mode<synchronous>, transform_indices = @transform_4, window_bounds = array<i64: 22, 128>}, {pipeline_mode = #tpu.pipeline_mode<synchronous>, transform_indices = @transform_5, window_bounds = array<i64: 1, 256>}, {pipeline_mode = #tpu.pipeline_mode<synchronous>, transform_indices = @transform_6, window_bounds = array<i64: 9, 512>}, {transform_indices = @transform_7, window_bounds = array<i64: 8, 128>}]} {
    %c0 = arith.constant 0 : index
    %c0_0 = arith.constant 0 : index
    %0 = vector.load %arg1[%c0, %c0_0] : memref<8x8xf32, #tpu.memory_space<vmem>>, vector<8x8xf32>
    %1 = vector.extract_strided_slice %0 {offsets = [0, 3], sizes = [8, 1], strides = [1, 1]} : vector<8x8xf32> to vector<8x1xf32>
    %c21 = arith.constant 21 : index
    %c0_1 = arith.constant 0 : index
    %2 = vector.load %arg5[%c21, %c0_1] : memref<22x128xf32, #tpu.memory_space<vmem>>, vector<1x128xf32>
    %3 = vector.broadcast %1 : vector<8x1xf32> to vector<8x128xf32>
    %4 = vector.broadcast %2 : vector<1x128xf32> to vector<8x128xf32>
    %5 = arith.mulf %3, %4 : vector<8x128xf32>
    %6 = tpu.iota {dimensions = array<i32: 1>} : vector<8x128xi32>
    %c64_i32 = arith.constant 64 : i32
    %7 = vector.broadcast %c64_i32 : i32 to vector<8x128xi32>
    %8 = arith.cmpi slt, %6, %7 : vector<8x128xi32>
    %9 = math.sin %5 : vector<8x128xf32>
    %10 = math.cos %5 : vector<8x128xf32>
    %11 = arith.select %8, %9, %10 : vector<8x128xi1>, vector<8x128xf32>
    %c2 = arith.constant 2 : index
    %c0_2 = arith.constant 0 : index
    %12 = vector.load %arg7[%c2, %c0_2] : memref<9x512xf32, #tpu.memory_space<vmem>>, vector<1x512xf32>
    %13 = vector.extract_strided_slice %0 {offsets = [0, 0], sizes = [8, 1], strides = [1, 1]} : vector<8x8xf32> to vector<8x1xf32>
    %c0_3 = arith.constant 0 : index
    %c0_4 = arith.constant 0 : index
    %14 = vector.load %arg7[%c0_3, %c0_4] : memref<9x512xf32, #tpu.memory_space<vmem>>, vector<1x512xf32>
    %15 = vector.broadcast %13 : vector<8x1xf32> to vector<8x512xf32>
    %16 = vector.broadcast %14 : vector<1x512xf32> to vector<8x512xf32>
    %17 = arith.mulf %15, %16 : vector<8x512xf32>
    %18 = vector.broadcast %12 : vector<1x512xf32> to vector<8x512xf32>
    %19 = arith.addf %18, %17 : vector<8x512xf32>
    %20 = vector.extract_strided_slice %0 {offsets = [0, 1], sizes = [8, 1], strides = [1, 1]} : vector<8x8xf32> to vector<8x1xf32>
    %c1 = arith.constant 1 : index
    %c0_5 = arith.constant 0 : index
    %21 = vector.load %arg7[%c1, %c0_5] : memref<9x512xf32, #tpu.memory_space<vmem>>, vector<1x512xf32>
    %22 = vector.broadcast %20 : vector<8x1xf32> to vector<8x512xf32>
    %23 = vector.broadcast %21 : vector<1x512xf32> to vector<8x512xf32>
    %24 = arith.mulf %22, %23 : vector<8x512xf32>
    %25 = arith.addf %19, %24 : vector<8x512xf32>
    %cst = arith.constant 5.000000e-01 : f32
    %26 = vector.broadcast %cst : f32 to vector<8x512xf32>
    %27 = arith.mulf %26, %25 : vector<8x512xf32>
    %28 = arith.mulf %25, %25 : vector<8x512xf32>
    %29 = arith.mulf %28, %25 : vector<8x512xf32>
    %cst_6 = arith.constant 4.471500e-02 : f32
    %30 = vector.broadcast %cst_6 : f32 to vector<8x512xf32>
    %31 = arith.mulf %30, %29 : vector<8x512xf32>
    %32 = arith.addf %25, %31 : vector<8x512xf32>
    %cst_7 = arith.constant 0.797884583 : f32
    %33 = vector.broadcast %cst_7 : f32 to vector<8x512xf32>
    %34 = arith.mulf %33, %32 : vector<8x512xf32>
    %35 = math.tanh %34 : vector<8x512xf32>
    %cst_8 = arith.constant 1.000000e+00 : f32
    %36 = vector.broadcast %cst_8 : f32 to vector<8x512xf32>
    %37 = arith.addf %36, %35 : vector<8x512xf32>
    %38 = arith.mulf %27, %37 : vector<8x512xf32>
    %cst_9 = arith.constant dense<0.000000e+00> : vector<8xf32>
    %39 = vector.multi_reduction <add>, %38, %cst_9 [1] : vector<8x512xf32> to vector<8xf32>
    %40 = vector.shape_cast %39 : vector<8xf32> to vector<8x1xf32>
    %cst_10 = arith.constant 5.120000e+02 : f32
    %41 = vector.broadcast %cst_10 : f32 to vector<8x1xf32>
    %42 = arith.divf %40, %41 : vector<8x1xf32>
    %43 = arith.mulf %38, %38 : vector<8x512xf32>
    %cst_11 = arith.constant dense<0.000000e+00> : vector<8xf32>
    %44 = vector.multi_reduction <add>, %43, %cst_11 [1] : vector<8x512xf32> to vector<8xf32>
    %45 = vector.shape_cast %44 : vector<8xf32> to vector<8x1xf32>
    %cst_12 = arith.constant 5.120000e+02 : f32
    %46 = vector.broadcast %cst_12 : f32 to vector<8x1xf32>
    %47 = arith.divf %45, %46 : vector<8x1xf32>
    %48 = arith.mulf %42, %42 : vector<8x1xf32>
    %49 = arith.subf %47, %48 : vector<8x1xf32>
    %50 = vector.broadcast %42 : vector<8x1xf32> to vector<8x512xf32>
    %51 = arith.subf %38, %50 : vector<8x512xf32>
    %cst_13 = arith.constant 9.99999974E-6 : f32
    %52 = vector.broadcast %cst_13 : f32 to vector<8x1xf32>
    %53 = arith.addf %49, %52 : vector<8x1xf32>
    %54 = math.rsqrt %53 : vector<8x1xf32>
    %55 = vector.broadcast %54 : vector<8x1xf32> to vector<8x512xf32>
    %56 = arith.mulf %51, %55 : vector<8x512xf32>
    %57 = arith.truncf %56 : vector<8x512xf32> to vector<8x512xbf16>
    %c0_14 = arith.constant 0 : index
    %c0_15 = arith.constant 0 : index
    %58 = vector.load %arg4[%c0_14, %c0_15] : memref<512x768xbf16, #tpu.memory_space<vmem>>, vector<512x128xbf16>
    %cst_16 = arith.constant dense<0.000000e+00> : vector<8x128xf32>
    %59 = tpu.matmul %57, %58, %cst_16 {dimension_numbers = #tpu.dot_dimension_numbers<[1], [0], [0], [1], [0, 0, 1, 1], [], []>} : vector<8x512xbf16>, vector<512x128xbf16>, vector<8x128xf32> -> vector<8x128xf32>
    %c0_17 = arith.constant 0 : index
    %c0_18 = arith.constant 0 : index
    %60 = vector.load %arg5[%c0_17, %c0_18] : memref<22x128xf32, #tpu.memory_space<vmem>>, vector<1x128xf32>
    %61 = vector.broadcast %60 : vector<1x128xf32> to vector<8x128xf32>
    %62 = arith.addf %59, %61 : vector<8x128xf32>
    %c1_19 = arith.constant 1 : index
    %c0_20 = arith.constant 0 : index
    %63 = vector.load %arg5[%c1_19, %c0_20] : memref<22x128xf32, #tpu.memory_space<vmem>>, vector<1x128xf32>
    %c2_21 = arith.constant 2 : index
    %c0_22 = arith.constant 0 : index
    %64 = vector.load %arg5[%c2_21, %c0_22] : memref<22x128xf32, #tpu.memory_space<vmem>>, vector<1x128xf32>
    %cst_23 = arith.constant dense<0.000000e+00> : vector<8xf32>
    %65 = vector.multi_reduction <add>, %62, %cst_23 [1] : vector<8x128xf32> to vector<8xf32>
    %66 = vector.shape_cast %65 : vector<8xf32> to vector<8x1xf32>
    %cst_24 = arith.constant 1.280000e+02 : f32
    %67 = vector.broadcast %cst_24 : f32 to vector<8x1xf32>
    %68 = arith.divf %66, %67 : vector<8x1xf32>
    %69 = arith.mulf %62, %62 : vector<8x128xf32>
    %cst_25 = arith.constant dense<0.000000e+00> : vector<8xf32>
    %70 = vector.multi_reduction <add>, %69, %cst_25 [1] : vector<8x128xf32> to vector<8xf32>
    %71 = vector.shape_cast %70 : vector<8xf32> to vector<8x1xf32>
    %cst_26 = arith.constant 1.280000e+02 : f32
    %72 = vector.broadcast %cst_26 : f32 to vector<8x1xf32>
    %73 = arith.divf %71, %72 : vector<8x1xf32>
    %74 = arith.mulf %68, %68 : vector<8x1xf32>
    %75 = arith.subf %73, %74 : vector<8x1xf32>
    %76 = vector.broadcast %68 : vector<8x1xf32> to vector<8x128xf32>
    %77 = arith.subf %62, %76 : vector<8x128xf32>
    %cst_27 = arith.constant 9.99999974E-6 : f32
    %78 = vector.broadcast %cst_27 : f32 to vector<8x1xf32>
    %79 = arith.addf %75, %78 : vector<8x1xf32>
    %80 = math.rsqrt %79 : vector<8x1xf32>
    %81 = vector.broadcast %80 : vector<8x1xf32> to vector<8x128xf32>
    %82 = arith.mulf %77, %81 : vector<8x128xf32>
    %83 = vector.broadcast %63 : vector<1x128xf32> to vector<8x128xf32>
    %84 = arith.mulf %82, %83 : vector<8x128xf32>
    %85 = vector.broadcast %64 : vector<1x128xf32> to vector<8x128xf32>
    %86 = arith.addf %84, %85 : vector<8x128xf32>
    %c4 = arith.constant 4 : index
    %c0_28 = arith.constant 0 : index
    %87 = vector.load %arg7[%c4, %c0_28] : memref<9x512xf32, #tpu.memory_space<vmem>>, vector<1x512xf32>
    %88 = vector.extract_strided_slice %0 {offsets = [0, 2], sizes = [8, 1], strides = [1, 1]} : vector<8x8xf32> to vector<8x1xf32>
    %c3 = arith.constant 3 : index
    %c0_29 = arith.constant 0 : index
    %89 = vector.load %arg7[%c3, %c0_29] : memref<9x512xf32, #tpu.memory_space<vmem>>, vector<1x512xf32>
    %90 = vector.broadcast %88 : vector<8x1xf32> to vector<8x512xf32>
    %91 = vector.broadcast %89 : vector<1x512xf32> to vector<8x512xf32>
    %92 = arith.mulf %90, %91 : vector<8x512xf32>
    %93 = vector.broadcast %87 : vector<1x512xf32> to vector<8x512xf32>
    %94 = arith.addf %93, %92 : vector<8x512xf32>
    %cst_30 = arith.constant 5.000000e-01 : f32
    %95 = vector.broadcast %cst_30 : f32 to vector<8x512xf32>
    %96 = arith.mulf %95, %94 : vector<8x512xf32>
    %97 = arith.mulf %94, %94 : vector<8x512xf32>
    %98 = arith.mulf %97, %94 : vector<8x512xf32>
    %cst_31 = arith.constant 4.471500e-02 : f32
    %99 = vector.broadcast %cst_31 : f32 to vector<8x512xf32>
    %100 = arith.mulf %99, %98 : vector<8x512xf32>
    %101 = arith.addf %94, %100 : vector<8x512xf32>
    %cst_32 = arith.constant 0.797884583 : f32
    %102 = vector.broadcast %cst_32 : f32 to vector<8x512xf32>
    %103 = arith.mulf %102, %101 : vector<8x512xf32>
    %104 = math.tanh %103 : vector<8x512xf32>
    %cst_33 = arith.constant 1.000000e+00 : f32
    %105 = vector.broadcast %cst_33 : f32 to vector<8x512xf32>
    %106 = arith.addf %105, %104 : vector<8x512xf32>
    %107 = arith.mulf %96, %106 : vector<8x512xf32>
    %cst_34 = arith.constant dense<0.000000e+00> : vector<8xf32>
    %108 = vector.multi_reduction <add>, %107, %cst_34 [1] : vector<8x512xf32> to vector<8xf32>
    %109 = vector.shape_cast %108 : vector<8xf32> to vector<8x1xf32>
    %cst_35 = arith.constant 5.120000e+02 : f32
    %110 = vector.broadcast %cst_35 : f32 to vector<8x1xf32>
    %111 = arith.divf %109, %110 : vector<8x1xf32>
    %112 = arith.mulf %107, %107 : vector<8x512xf32>
    %cst_36 = arith.constant dense<0.000000e+00> : vector<8xf32>
    %113 = vector.multi_reduction <add>, %112, %cst_36 [1] : vector<8x512xf32> to vector<8xf32>
    %114 = vector.shape_cast %113 : vector<8xf32> to vector<8x1xf32>
    %cst_37 = arith.constant 5.120000e+02 : f32
    %115 = vector.broadcast %cst_37 : f32 to vector<8x1xf32>
    %116 = arith.divf %114, %115 : vector<8x1xf32>
    %117 = arith.mulf %111, %111 : vector<8x1xf32>
    %118 = arith.subf %116, %117 : vector<8x1xf32>
    %119 = vector.broadcast %111 : vector<8x1xf32> to vector<8x512xf32>
    %120 = arith.subf %107, %119 : vector<8x512xf32>
    %cst_38 = arith.constant 9.99999974E-6 : f32
    %121 = vector.broadcast %cst_38 : f32 to vector<8x1xf32>
    %122 = arith.addf %118, %121 : vector<8x1xf32>
    %123 = math.rsqrt %122 : vector<8x1xf32>
    %124 = vector.broadcast %123 : vector<8x1xf32> to vector<8x512xf32>
    %125 = arith.mulf %120, %124 : vector<8x512xf32>
    %126 = arith.truncf %125 : vector<8x512xf32> to vector<8x512xbf16>
    %c0_39 = arith.constant 0 : index
    %c128 = arith.constant 128 : index
    %127 = vector.load %arg4[%c0_39, %c128] : memref<512x768xbf16, #tpu.memory_space<vmem>>, vector<512x128xbf16>
    %cst_40 = arith.constant dense<0.000000e+00> : vector<8x128xf32>
    %128 = tpu.matmul %126, %127, %cst_40 {dimension_numbers = #tpu.dot_dimension_numbers<[1], [0], [0], [1], [0, 0, 1, 1], [], []>} : vector<8x512xbf16>, vector<512x128xbf16>, vector<8x128xf32> -> vector<8x128xf32>
    %c3_41 = arith.constant 3 : index
    %c0_42 = arith.constant 0 : index
    %129 = vector.load %arg5[%c3_41, %c0_42] : memref<22x128xf32, #tpu.memory_space<vmem>>, vector<1x128xf32>
    %130 = vector.broadcast %129 : vector<1x128xf32> to vector<8x128xf32>
    %131 = arith.addf %128, %130 : vector<8x128xf32>
    %c4_43 = arith.constant 4 : index
    %c0_44 = arith.constant 0 : index
    %132 = vector.load %arg5[%c4_43, %c0_44] : memref<22x128xf32, #tpu.memory_space<vmem>>, vector<1x128xf32>
    %c5 = arith.constant 5 : index
    %c0_45 = arith.constant 0 : index
    %133 = vector.load %arg5[%c5, %c0_45] : memref<22x128xf32, #tpu.memory_space<vmem>>, vector<1x128xf32>
    %cst_46 = arith.constant dense<0.000000e+00> : vector<8xf32>
    %134 = vector.multi_reduction <add>, %131, %cst_46 [1] : vector<8x128xf32> to vector<8xf32>
    %135 = vector.shape_cast %134 : vector<8xf32> to vector<8x1xf32>
    %cst_47 = arith.constant 1.280000e+02 : f32
    %136 = vector.broadcast %cst_47 : f32 to vector<8x1xf32>
    %137 = arith.divf %135, %136 : vector<8x1xf32>
    %138 = arith.mulf %131, %131 : vector<8x128xf32>
    %cst_48 = arith.constant dense<0.000000e+00> : vector<8xf32>
    %139 = vector.multi_reduction <add>, %138, %cst_48 [1] : vector<8x128xf32> to vector<8xf32>
    %140 = vector.shape_cast %139 : vector<8xf32> to vector<8x1xf32>
    %cst_49 = arith.constant 1.280000e+02 : f32
    %141 = vector.broadcast %cst_49 : f32 to vector<8x1xf32>
    %142 = arith.divf %140, %141 : vector<8x1xf32>
    %143 = arith.mulf %137, %137 : vector<8x1xf32>
    %144 = arith.subf %142, %143 : vector<8x1xf32>
    %145 = vector.broadcast %137 : vector<8x1xf32> to vector<8x128xf32>
    %146 = arith.subf %131, %145 : vector<8x128xf32>
    %cst_50 = arith.constant 9.99999974E-6 : f32
    %147 = vector.broadcast %cst_50 : f32 to vector<8x1xf32>
    %148 = arith.addf %144, %147 : vector<8x1xf32>
    %149 = math.rsqrt %148 : vector<8x1xf32>
    %150 = vector.broadcast %149 : vector<8x1xf32> to vector<8x128xf32>
    %151 = arith.mulf %146, %150 : vector<8x128xf32>
    %152 = vector.broadcast %132 : vector<1x128xf32> to vector<8x128xf32>
    %153 = arith.mulf %151, %152 : vector<8x128xf32>
    %154 = vector.broadcast %133 : vector<1x128xf32> to vector<8x128xf32>
    %155 = arith.addf %153, %154 : vector<8x128xf32>
    %156 = arith.truncf %86 : vector<8x128xf32> to vector<8x128xbf16>
    %c0_51 = arith.constant 0 : index
    %c0_52 = arith.constant 0 : index
    %157 = vector.load %arg2[%c0_51, %c0_52] : memref<128x1792xbf16, #tpu.memory_space<vmem>>, vector<128x128xbf16>
    %cst_53 = arith.constant dense<0.000000e+00> : vector<8x128xf32>
    %158 = tpu.matmul %156, %157, %cst_53 {dimension_numbers = #tpu.dot_dimension_numbers<[1], [0], [0], [1], [0, 0, 1, 1], [], []>} : vector<8x128xbf16>, vector<128x128xbf16>, vector<8x128xf32> -> vector<8x128xf32>
    %c6 = arith.constant 6 : index
    %c0_54 = arith.constant 0 : index
    %159 = vector.load %arg5[%c6, %c0_54] : memref<22x128xf32, #tpu.memory_space<vmem>>, vector<1x128xf32>
    %160 = vector.broadcast %159 : vector<1x128xf32> to vector<8x128xf32>
    %161 = arith.addf %158, %160 : vector<8x128xf32>
    %162 = arith.truncf %161 : vector<8x128xf32> to vector<8x128xbf16>
    %c0_55 = arith.constant 0 : index
    %c128_56 = arith.constant 128 : index
    %163 = vector.load %arg2[%c0_55, %c128_56] : memref<128x1792xbf16, #tpu.memory_space<vmem>>, vector<128x128xbf16>
    %cst_57 = arith.constant dense<0.000000e+00> : vector<8x128xf32>
    %164 = tpu.matmul %162, %163, %cst_57 {dimension_numbers = #tpu.dot_dimension_numbers<[1], [0], [0], [1], [0, 0, 1, 1], [], []>} : vector<8x128xbf16>, vector<128x128xbf16>, vector<8x128xf32> -> vector<8x128xf32>
    %c7 = arith.constant 7 : index
    %c0_58 = arith.constant 0 : index
    %165 = vector.load %arg5[%c7, %c0_58] : memref<22x128xf32, #tpu.memory_space<vmem>>, vector<1x128xf32>
    %166 = vector.broadcast %165 : vector<1x128xf32> to vector<8x128xf32>
    %167 = arith.addf %164, %166 : vector<8x128xf32>
    %168 = arith.addf %155, %167 : vector<8x128xf32>
    %c8 = arith.constant 8 : index
    %c0_59 = arith.constant 0 : index
    %169 = vector.load %arg5[%c8, %c0_59] : memref<22x128xf32, #tpu.memory_space<vmem>>, vector<1x128xf32>
    %c9 = arith.constant 9 : index
    %c0_60 = arith.constant 0 : index
    %170 = vector.load %arg5[%c9, %c0_60] : memref<22x128xf32, #tpu.memory_space<vmem>>, vector<1x128xf32>
    %cst_61 = arith.constant dense<0.000000e+00> : vector<8xf32>
    %171 = vector.multi_reduction <add>, %168, %cst_61 [1] : vector<8x128xf32> to vector<8xf32>
    %172 = vector.shape_cast %171 : vector<8xf32> to vector<8x1xf32>
    %cst_62 = arith.constant 1.280000e+02 : f32
    %173 = vector.broadcast %cst_62 : f32 to vector<8x1xf32>
    %174 = arith.divf %172, %173 : vector<8x1xf32>
    %175 = arith.mulf %168, %168 : vector<8x128xf32>
    %cst_63 = arith.constant dense<0.000000e+00> : vector<8xf32>
    %176 = vector.multi_reduction <add>, %175, %cst_63 [1] : vector<8x128xf32> to vector<8xf32>
    %177 = vector.shape_cast %176 : vector<8xf32> to vector<8x1xf32>
    %cst_64 = arith.constant 1.280000e+02 : f32
    %178 = vector.broadcast %cst_64 : f32 to vector<8x1xf32>
    %179 = arith.divf %177, %178 : vector<8x1xf32>
    %180 = arith.mulf %174, %174 : vector<8x1xf32>
    %181 = arith.subf %179, %180 : vector<8x1xf32>
    %182 = vector.broadcast %174 : vector<8x1xf32> to vector<8x128xf32>
    %183 = arith.subf %168, %182 : vector<8x128xf32>
    %cst_65 = arith.constant 9.99999974E-6 : f32
    %184 = vector.broadcast %cst_65 : f32 to vector<8x1xf32>
    %185 = arith.addf %181, %184 : vector<8x1xf32>
    %186 = math.rsqrt %185 : vector<8x1xf32>
    %187 = vector.broadcast %186 : vector<8x1xf32> to vector<8x128xf32>
    %188 = arith.mulf %183, %187 : vector<8x128xf32>
    %189 = vector.broadcast %169 : vector<1x128xf32> to vector<8x128xf32>
    %190 = arith.mulf %188, %189 : vector<8x128xf32>
    %191 = vector.broadcast %170 : vector<1x128xf32> to vector<8x128xf32>
    %192 = arith.addf %190, %191 : vector<8x128xf32>
    %193 = arith.truncf %192 : vector<8x128xf32> to vector<8x128xbf16>
    %c0_66 = arith.constant 0 : index
    %c256 = arith.constant 256 : index
    %194 = vector.load %arg2[%c0_66, %c256] : memref<128x1792xbf16, #tpu.memory_space<vmem>>, vector<128x512xbf16>
    %cst_67 = arith.constant dense<0.000000e+00> : vector<8x512xf32>
    %195 = tpu.matmul %193, %194, %cst_67 {dimension_numbers = #tpu.dot_dimension_numbers<[1], [0], [0], [1], [0, 0, 1, 1], [], []>} : vector<8x128xbf16>, vector<128x512xbf16>, vector<8x512xf32> -> vector<8x512xf32>
    %c5_68 = arith.constant 5 : index
    %c0_69 = arith.constant 0 : index
    %196 = vector.load %arg7[%c5_68, %c0_69] : memref<9x512xf32, #tpu.memory_space<vmem>>, vector<1x512xf32>
    %197 = vector.broadcast %196 : vector<1x512xf32> to vector<8x512xf32>
    %198 = arith.addf %195, %197 : vector<8x512xf32>
    %cst_70 = arith.constant 5.000000e-01 : f32
    %199 = vector.broadcast %cst_70 : f32 to vector<8x512xf32>
    %200 = arith.mulf %199, %198 : vector<8x512xf32>
    %201 = arith.mulf %198, %198 : vector<8x512xf32>
    %202 = arith.mulf %201, %198 : vector<8x512xf32>
    %cst_71 = arith.constant 4.471500e-02 : f32
    %203 = vector.broadcast %cst_71 : f32 to vector<8x512xf32>
    %204 = arith.mulf %203, %202 : vector<8x512xf32>
    %205 = arith.addf %198, %204 : vector<8x512xf32>
    %cst_72 = arith.constant 0.797884583 : f32
    %206 = vector.broadcast %cst_72 : f32 to vector<8x512xf32>
    %207 = arith.mulf %206, %205 : vector<8x512xf32>
    %208 = math.tanh %207 : vector<8x512xf32>
    %cst_73 = arith.constant 1.000000e+00 : f32
    %209 = vector.broadcast %cst_73 : f32 to vector<8x512xf32>
    %210 = arith.addf %209, %208 : vector<8x512xf32>
    %211 = arith.mulf %200, %210 : vector<8x512xf32>
    %212 = arith.truncf %211 : vector<8x512xf32> to vector<8x512xbf16>
    %c0_74 = arith.constant 0 : index
    %c256_75 = arith.constant 256 : index
    %213 = vector.load %arg4[%c0_74, %c256_75] : memref<512x768xbf16, #tpu.memory_space<vmem>>, vector<512x128xbf16>
    %cst_76 = arith.constant dense<0.000000e+00> : vector<8x128xf32>
    %214 = tpu.matmul %212, %213, %cst_76 {dimension_numbers = #tpu.dot_dimension_numbers<[1], [0], [0], [1], [0, 0, 1, 1], [], []>} : vector<8x512xbf16>, vector<512x128xbf16>, vector<8x128xf32> -> vector<8x128xf32>
    %c10 = arith.constant 10 : index
    %c0_77 = arith.constant 0 : index
    %215 = vector.load %arg5[%c10, %c0_77] : memref<22x128xf32, #tpu.memory_space<vmem>>, vector<1x128xf32>
    %216 = vector.broadcast %215 : vector<1x128xf32> to vector<8x128xf32>
    %217 = arith.addf %214, %216 : vector<8x128xf32>
    %218 = arith.addf %192, %217 : vector<8x128xf32>
    %c8_78 = arith.constant 8 : index
    %c0_79 = arith.constant 0 : index
    %219 = vector.load %arg5[%c8_78, %c0_79] : memref<22x128xf32, #tpu.memory_space<vmem>>, vector<1x128xf32>
    %c9_80 = arith.constant 9 : index
    %c0_81 = arith.constant 0 : index
    %220 = vector.load %arg5[%c9_80, %c0_81] : memref<22x128xf32, #tpu.memory_space<vmem>>, vector<1x128xf32>
    %cst_82 = arith.constant dense<0.000000e+00> : vector<8xf32>
    %221 = vector.multi_reduction <add>, %218, %cst_82 [1] : vector<8x128xf32> to vector<8xf32>
    %222 = vector.shape_cast %221 : vector<8xf32> to vector<8x1xf32>
    %cst_83 = arith.constant 1.280000e+02 : f32
    %223 = vector.broadcast %cst_83 : f32 to vector<8x1xf32>
    %224 = arith.divf %222, %223 : vector<8x1xf32>
    %225 = arith.mulf %218, %218 : vector<8x128xf32>
    %cst_84 = arith.constant dense<0.000000e+00> : vector<8xf32>
    %226 = vector.multi_reduction <add>, %225, %cst_84 [1] : vector<8x128xf32> to vector<8xf32>
    %227 = vector.shape_cast %226 : vector<8xf32> to vector<8x1xf32>
    %cst_85 = arith.constant 1.280000e+02 : f32
    %228 = vector.broadcast %cst_85 : f32 to vector<8x1xf32>
    %229 = arith.divf %227, %228 : vector<8x1xf32>
    %230 = arith.mulf %224, %224 : vector<8x1xf32>
    %231 = arith.subf %229, %230 : vector<8x1xf32>
    %232 = vector.broadcast %224 : vector<8x1xf32> to vector<8x128xf32>
    %233 = arith.subf %218, %232 : vector<8x128xf32>
    %cst_86 = arith.constant 9.99999974E-6 : f32
    %234 = vector.broadcast %cst_86 : f32 to vector<8x1xf32>
    %235 = arith.addf %231, %234 : vector<8x1xf32>
    %236 = math.rsqrt %235 : vector<8x1xf32>
    %237 = vector.broadcast %236 : vector<8x1xf32> to vector<8x128xf32>
    %238 = arith.mulf %233, %237 : vector<8x128xf32>
    %239 = vector.broadcast %219 : vector<1x128xf32> to vector<8x128xf32>
    %240 = arith.mulf %238, %239 : vector<8x128xf32>
    %241 = vector.broadcast %220 : vector<1x128xf32> to vector<8x128xf32>
    %242 = arith.addf %240, %241 : vector<8x128xf32>
    %243 = arith.truncf %155 : vector<8x128xf32> to vector<8x128xbf16>
    %c0_87 = arith.constant 0 : index
    %c768 = arith.constant 768 : index
    %244 = vector.load %arg2[%c0_87, %c768] : memref<128x1792xbf16, #tpu.memory_space<vmem>>, vector<128x128xbf16>
    %cst_88 = arith.constant dense<0.000000e+00> : vector<8x128xf32>
    %245 = tpu.matmul %243, %244, %cst_88 {dimension_numbers = #tpu.dot_dimension_numbers<[1], [0], [0], [1], [0, 0, 1, 1], [], []>} : vector<8x128xbf16>, vector<128x128xbf16>, vector<8x128xf32> -> vector<8x128xf32>
    %c11 = arith.constant 11 : index
    %c0_89 = arith.constant 0 : index
    %246 = vector.load %arg5[%c11, %c0_89] : memref<22x128xf32, #tpu.memory_space<vmem>>, vector<1x128xf32>
    %247 = vector.broadcast %246 : vector<1x128xf32> to vector<8x128xf32>
    %248 = arith.addf %245, %247 : vector<8x128xf32>
    %249 = arith.truncf %248 : vector<8x128xf32> to vector<8x128xbf16>
    %c0_90 = arith.constant 0 : index
    %c896 = arith.constant 896 : index
    %250 = vector.load %arg2[%c0_90, %c896] : memref<128x1792xbf16, #tpu.memory_space<vmem>>, vector<128x128xbf16>
    %cst_91 = arith.constant dense<0.000000e+00> : vector<8x128xf32>
    %251 = tpu.matmul %249, %250, %cst_91 {dimension_numbers = #tpu.dot_dimension_numbers<[1], [0], [0], [1], [0, 0, 1, 1], [], []>} : vector<8x128xbf16>, vector<128x128xbf16>, vector<8x128xf32> -> vector<8x128xf32>
    %c12 = arith.constant 12 : index
    %c0_92 = arith.constant 0 : index
    %252 = vector.load %arg5[%c12, %c0_92] : memref<22x128xf32, #tpu.memory_space<vmem>>, vector<1x128xf32>
    %253 = vector.broadcast %252 : vector<1x128xf32> to vector<8x128xf32>
    %254 = arith.addf %251, %253 : vector<8x128xf32>
    %255 = arith.addf %86, %254 : vector<8x128xf32>
    %c13 = arith.constant 13 : index
    %c0_93 = arith.constant 0 : index
    %256 = vector.load %arg5[%c13, %c0_93] : memref<22x128xf32, #tpu.memory_space<vmem>>, vector<1x128xf32>
    %c14 = arith.constant 14 : index
    %c0_94 = arith.constant 0 : index
    %257 = vector.load %arg5[%c14, %c0_94] : memref<22x128xf32, #tpu.memory_space<vmem>>, vector<1x128xf32>
    %cst_95 = arith.constant dense<0.000000e+00> : vector<8xf32>
    %258 = vector.multi_reduction <add>, %255, %cst_95 [1] : vector<8x128xf32> to vector<8xf32>
    %259 = vector.shape_cast %258 : vector<8xf32> to vector<8x1xf32>
    %cst_96 = arith.constant 1.280000e+02 : f32
    %260 = vector.broadcast %cst_96 : f32 to vector<8x1xf32>
    %261 = arith.divf %259, %260 : vector<8x1xf32>
    %262 = arith.mulf %255, %255 : vector<8x128xf32>
    %cst_97 = arith.constant dense<0.000000e+00> : vector<8xf32>
    %263 = vector.multi_reduction <add>, %262, %cst_97 [1] : vector<8x128xf32> to vector<8xf32>
    %264 = vector.shape_cast %263 : vector<8xf32> to vector<8x1xf32>
    %cst_98 = arith.constant 1.280000e+02 : f32
    %265 = vector.broadcast %cst_98 : f32 to vector<8x1xf32>
    %266 = arith.divf %264, %265 : vector<8x1xf32>
    %267 = arith.mulf %261, %261 : vector<8x1xf32>
    %268 = arith.subf %266, %267 : vector<8x1xf32>
    %269 = vector.broadcast %261 : vector<8x1xf32> to vector<8x128xf32>
    %270 = arith.subf %255, %269 : vector<8x128xf32>
    %cst_99 = arith.constant 9.99999974E-6 : f32
    %271 = vector.broadcast %cst_99 : f32 to vector<8x1xf32>
    %272 = arith.addf %268, %271 : vector<8x1xf32>
    %273 = math.rsqrt %272 : vector<8x1xf32>
    %274 = vector.broadcast %273 : vector<8x1xf32> to vector<8x128xf32>
    %275 = arith.mulf %270, %274 : vector<8x128xf32>
    %276 = vector.broadcast %256 : vector<1x128xf32> to vector<8x128xf32>
    %277 = arith.mulf %275, %276 : vector<8x128xf32>
    %278 = vector.broadcast %257 : vector<1x128xf32> to vector<8x128xf32>
    %279 = arith.addf %277, %278 : vector<8x128xf32>
    %280 = arith.truncf %279 : vector<8x128xf32> to vector<8x128xbf16>
    %c0_100 = arith.constant 0 : index
    %c1024 = arith.constant 1024 : index
    %281 = vector.load %arg2[%c0_100, %c1024] : memref<128x1792xbf16, #tpu.memory_space<vmem>>, vector<128x512xbf16>
    %cst_101 = arith.constant dense<0.000000e+00> : vector<8x512xf32>
    %282 = tpu.matmul %280, %281, %cst_101 {dimension_numbers = #tpu.dot_dimension_numbers<[1], [0], [0], [1], [0, 0, 1, 1], [], []>} : vector<8x128xbf16>, vector<128x512xbf16>, vector<8x512xf32> -> vector<8x512xf32>
    %c6_102 = arith.constant 6 : index
    %c0_103 = arith.constant 0 : index
    %283 = vector.load %arg7[%c6_102, %c0_103] : memref<9x512xf32, #tpu.memory_space<vmem>>, vector<1x512xf32>
    %284 = vector.broadcast %283 : vector<1x512xf32> to vector<8x512xf32>
    %285 = arith.addf %282, %284 : vector<8x512xf32>
    %cst_104 = arith.constant 5.000000e-01 : f32
    %286 = vector.broadcast %cst_104 : f32 to vector<8x512xf32>
    %287 = arith.mulf %286, %285 : vector<8x512xf32>
    %288 = arith.mulf %285, %285 : vector<8x512xf32>
    %289 = arith.mulf %288, %285 : vector<8x512xf32>
    %cst_105 = arith.constant 4.471500e-02 : f32
    %290 = vector.broadcast %cst_105 : f32 to vector<8x512xf32>
    %291 = arith.mulf %290, %289 : vector<8x512xf32>
    %292 = arith.addf %285, %291 : vector<8x512xf32>
    %cst_106 = arith.constant 0.797884583 : f32
    %293 = vector.broadcast %cst_106 : f32 to vector<8x512xf32>
    %294 = arith.mulf %293, %292 : vector<8x512xf32>
    %295 = math.tanh %294 : vector<8x512xf32>
    %cst_107 = arith.constant 1.000000e+00 : f32
    %296 = vector.broadcast %cst_107 : f32 to vector<8x512xf32>
    %297 = arith.addf %296, %295 : vector<8x512xf32>
    %298 = arith.mulf %287, %297 : vector<8x512xf32>
    %299 = arith.truncf %298 : vector<8x512xf32> to vector<8x512xbf16>
    %c0_108 = arith.constant 0 : index
    %c384 = arith.constant 384 : index
    %300 = vector.load %arg4[%c0_108, %c384] : memref<512x768xbf16, #tpu.memory_space<vmem>>, vector<512x128xbf16>
    %cst_109 = arith.constant dense<0.000000e+00> : vector<8x128xf32>
    %301 = tpu.matmul %299, %300, %cst_109 {dimension_numbers = #tpu.dot_dimension_numbers<[1], [0], [0], [1], [0, 0, 1, 1], [], []>} : vector<8x512xbf16>, vector<512x128xbf16>, vector<8x128xf32> -> vector<8x128xf32>
    %c15 = arith.constant 15 : index
    %c0_110 = arith.constant 0 : index
    %302 = vector.load %arg5[%c15, %c0_110] : memref<22x128xf32, #tpu.memory_space<vmem>>, vector<1x128xf32>
    %303 = vector.broadcast %302 : vector<1x128xf32> to vector<8x128xf32>
    %304 = arith.addf %301, %303 : vector<8x128xf32>
    %305 = arith.addf %279, %304 : vector<8x128xf32>
    %c13_111 = arith.constant 13 : index
    %c0_112 = arith.constant 0 : index
    %306 = vector.load %arg5[%c13_111, %c0_112] : memref<22x128xf32, #tpu.memory_space<vmem>>, vector<1x128xf32>
    %c14_113 = arith.constant 14 : index
    %c0_114 = arith.constant 0 : index
    %307 = vector.load %arg5[%c14_113, %c0_114] : memref<22x128xf32, #tpu.memory_space<vmem>>, vector<1x128xf32>
    %cst_115 = arith.constant dense<0.000000e+00> : vector<8xf32>
    %308 = vector.multi_reduction <add>, %305, %cst_115 [1] : vector<8x128xf32> to vector<8xf32>
    %309 = vector.shape_cast %308 : vector<8xf32> to vector<8x1xf32>
    %cst_116 = arith.constant 1.280000e+02 : f32
    %310 = vector.broadcast %cst_116 : f32 to vector<8x1xf32>
    %311 = arith.divf %309, %310 : vector<8x1xf32>
    %312 = arith.mulf %305, %305 : vector<8x128xf32>
    %cst_117 = arith.constant dense<0.000000e+00> : vector<8xf32>
    %313 = vector.multi_reduction <add>, %312, %cst_117 [1] : vector<8x128xf32> to vector<8xf32>
    %314 = vector.shape_cast %313 : vector<8xf32> to vector<8x1xf32>
    %cst_118 = arith.constant 1.280000e+02 : f32
    %315 = vector.broadcast %cst_118 : f32 to vector<8x1xf32>
    %316 = arith.divf %314, %315 : vector<8x1xf32>
    %317 = arith.mulf %311, %311 : vector<8x1xf32>
    %318 = arith.subf %316, %317 : vector<8x1xf32>
    %319 = vector.broadcast %311 : vector<8x1xf32> to vector<8x128xf32>
    %320 = arith.subf %305, %319 : vector<8x128xf32>
    %cst_119 = arith.constant 9.99999974E-6 : f32
    %321 = vector.broadcast %cst_119 : f32 to vector<8x1xf32>
    %322 = arith.addf %318, %321 : vector<8x1xf32>
    %323 = math.rsqrt %322 : vector<8x1xf32>
    %324 = vector.broadcast %323 : vector<8x1xf32> to vector<8x128xf32>
    %325 = arith.mulf %320, %324 : vector<8x128xf32>
    %326 = vector.broadcast %306 : vector<1x128xf32> to vector<8x128xf32>
    %327 = arith.mulf %325, %326 : vector<8x128xf32>
    %328 = vector.broadcast %307 : vector<1x128xf32> to vector<8x128xf32>
    %329 = arith.addf %327, %328 : vector<8x128xf32>
    %c0_120 = arith.constant 0 : index
    %c0_121 = arith.constant 0 : index
    %330 = vector.load %arg9[%c0_120, %c0_121] : memref<8x256xf32, #tpu.memory_space<vmem>>, vector<8x128xf32>
    tpu.vector_store %arg9[%c0_120, %c0_121], %242 {strides = array<i32>} : memref<8x256xf32, #tpu.memory_space<vmem>>, vector<8x128xf32>,
    %c0_122 = arith.constant 0 : index
    %c128_123 = arith.constant 128 : index
    %331 = vector.load %arg9[%c0_122, %c128_123] : memref<8x256xf32, #tpu.memory_space<vmem>>, vector<8x128xf32>
    tpu.vector_store %arg9[%c0_122, %c128_123], %329 {strides = array<i32>} : memref<8x256xf32, #tpu.memory_space<vmem>>, vector<8x128xf32>,
    %c0_124 = arith.constant 0 : index
    %c0_125 = arith.constant 0 : index
    %332 = vector.load %arg9[%c0_124, %c0_125] : memref<8x256xf32, #tpu.memory_space<vmem>>, vector<8x256xf32>
    %333 = arith.truncf %332 : vector<8x256xf32> to vector<8x256xbf16>
    %c0_126 = arith.constant 0 : index
    %c0_127 = arith.constant 0 : index
    %334 = vector.load %arg3[%c0_126, %c0_127] : memref<256x1152xbf16, #tpu.memory_space<vmem>>, vector<256x512xbf16>
    %cst_128 = arith.constant dense<0.000000e+00> : vector<8x512xf32>
    %335 = tpu.matmul %333, %334, %cst_128 {dimension_numbers = #tpu.dot_dimension_numbers<[1], [0], [0], [1], [0, 0, 1, 1], [], []>} : vector<8x256xbf16>, vector<256x512xbf16>, vector<8x512xf32> -> vector<8x512xf32>
    %c7_129 = arith.constant 7 : index
    %c0_130 = arith.constant 0 : index
    %336 = vector.load %arg7[%c7_129, %c0_130] : memref<9x512xf32, #tpu.memory_space<vmem>>, vector<1x512xf32>
    %337 = vector.broadcast %336 : vector<1x512xf32> to vector<8x512xf32>
    %338 = arith.addf %335, %337 : vector<8x512xf32>
    %cst_131 = arith.constant 5.000000e-01 : f32
    %339 = vector.broadcast %cst_131 : f32 to vector<8x512xf32>
    %340 = arith.mulf %339, %338 : vector<8x512xf32>
    %341 = arith.mulf %338, %338 : vector<8x512xf32>
    %342 = arith.mulf %341, %338 : vector<8x512xf32>
    %cst_132 = arith.constant 4.471500e-02 : f32
    %343 = vector.broadcast %cst_132 : f32 to vector<8x512xf32>
    %344 = arith.mulf %343, %342 : vector<8x512xf32>
    %345 = arith.addf %338, %344 : vector<8x512xf32>
    %cst_133 = arith.constant 0.797884583 : f32
    %346 = vector.broadcast %cst_133 : f32 to vector<8x512xf32>
    %347 = arith.mulf %346, %345 : vector<8x512xf32>
    %348 = math.tanh %347 : vector<8x512xf32>
    %cst_134 = arith.constant 1.000000e+00 : f32
    %349 = vector.broadcast %cst_134 : f32 to vector<8x512xf32>
    %350 = arith.addf %349, %348 : vector<8x512xf32>
    %351 = arith.mulf %340, %350 : vector<8x512xf32>
    %cst_135 = arith.constant dense<0.000000e+00> : vector<8xf32>
    %352 = vector.multi_reduction <add>, %351, %cst_135 [1] : vector<8x512xf32> to vector<8xf32>
    %353 = vector.shape_cast %352 : vector<8xf32> to vector<8x1xf32>
    %cst_136 = arith.constant 5.120000e+02 : f32
    %354 = vector.broadcast %cst_136 : f32 to vector<8x1xf32>
    %355 = arith.divf %353, %354 : vector<8x1xf32>
    %356 = arith.mulf %351, %351 : vector<8x512xf32>
    %cst_137 = arith.constant dense<0.000000e+00> : vector<8xf32>
    %357 = vector.multi_reduction <add>, %356, %cst_137 [1] : vector<8x512xf32> to vector<8xf32>
    %358 = vector.shape_cast %357 : vector<8xf32> to vector<8x1xf32>
    %cst_138 = arith.constant 5.120000e+02 : f32
    %359 = vector.broadcast %cst_138 : f32 to vector<8x1xf32>
    %360 = arith.divf %358, %359 : vector<8x1xf32>
    %361 = arith.mulf %355, %355 : vector<8x1xf32>
    %362 = arith.subf %360, %361 : vector<8x1xf32>
    %363 = vector.broadcast %355 : vector<8x1xf32> to vector<8x512xf32>
    %364 = arith.subf %351, %363 : vector<8x512xf32>
    %cst_139 = arith.constant 9.99999974E-6 : f32
    %365 = vector.broadcast %cst_139 : f32 to vector<8x1xf32>
    %366 = arith.addf %362, %365 : vector<8x1xf32>
    %367 = math.rsqrt %366 : vector<8x1xf32>
    %368 = vector.broadcast %367 : vector<8x1xf32> to vector<8x512xf32>
    %369 = arith.mulf %364, %368 : vector<8x512xf32>
    %370 = arith.truncf %369 : vector<8x512xf32> to vector<8x512xbf16>
    %c0_140 = arith.constant 0 : index
    %c512 = arith.constant 512 : index
    %371 = vector.load %arg4[%c0_140, %c512] : memref<512x768xbf16, #tpu.memory_space<vmem>>, vector<512x128xbf16>
    %cst_141 = arith.constant dense<0.000000e+00> : vector<8x128xf32>
    %372 = tpu.matmul %370, %371, %cst_141 {dimension_numbers = #tpu.dot_dimension_numbers<[1], [0], [0], [1], [0, 0, 1, 1], [], []>} : vector<8x512xbf16>, vector<512x128xbf16>, vector<8x128xf32> -> vector<8x128xf32>
    %c16 = arith.constant 16 : index
    %c0_142 = arith.constant 0 : index
    %373 = vector.load %arg5[%c16, %c0_142] : memref<22x128xf32, #tpu.memory_space<vmem>>, vector<1x128xf32>
    %374 = vector.broadcast %373 : vector<1x128xf32> to vector<8x128xf32>
    %375 = arith.addf %372, %374 : vector<8x128xf32>
    %c17 = arith.constant 17 : index
    %c0_143 = arith.constant 0 : index
    %376 = vector.load %arg5[%c17, %c0_143] : memref<22x128xf32, #tpu.memory_space<vmem>>, vector<1x128xf32>
    %c18 = arith.constant 18 : index
    %c0_144 = arith.constant 0 : index
    %377 = vector.load %arg5[%c18, %c0_144] : memref<22x128xf32, #tpu.memory_space<vmem>>, vector<1x128xf32>
    %cst_145 = arith.constant dense<0.000000e+00> : vector<8xf32>
    %378 = vector.multi_reduction <add>, %375, %cst_145 [1] : vector<8x128xf32> to vector<8xf32>
    %379 = vector.shape_cast %378 : vector<8xf32> to vector<8x1xf32>
    %cst_146 = arith.constant 1.280000e+02 : f32
    %380 = vector.broadcast %cst_146 : f32 to vector<8x1xf32>
    %381 = arith.divf %379, %380 : vector<8x1xf32>
    %382 = arith.mulf %375, %375 : vector<8x128xf32>
    %cst_147 = arith.constant dense<0.000000e+00> : vector<8xf32>
    %383 = vector.multi_reduction <add>, %382, %cst_147 [1] : vector<8x128xf32> to vector<8xf32>
    %384 = vector.shape_cast %383 : vector<8xf32> to vector<8x1xf32>
    %cst_148 = arith.constant 1.280000e+02 : f32
    %385 = vector.broadcast %cst_148 : f32 to vector<8x1xf32>
    %386 = arith.divf %384, %385 : vector<8x1xf32>
    %387 = arith.mulf %381, %381 : vector<8x1xf32>
    %388 = arith.subf %386, %387 : vector<8x1xf32>
    %389 = vector.broadcast %381 : vector<8x1xf32> to vector<8x128xf32>
    %390 = arith.subf %375, %389 : vector<8x128xf32>
    %cst_149 = arith.constant 9.99999974E-6 : f32
    %391 = vector.broadcast %cst_149 : f32 to vector<8x1xf32>
    %392 = arith.addf %388, %391 : vector<8x1xf32>
    %393 = math.rsqrt %392 : vector<8x1xf32>
    %394 = vector.broadcast %393 : vector<8x1xf32> to vector<8x128xf32>
    %395 = arith.mulf %390, %394 : vector<8x128xf32>
    %396 = vector.broadcast %376 : vector<1x128xf32> to vector<8x128xf32>
    %397 = arith.mulf %395, %396 : vector<8x128xf32>
    %398 = vector.broadcast %377 : vector<1x128xf32> to vector<8x128xf32>
    %399 = arith.addf %397, %398 : vector<8x128xf32>
    %c0_150 = arith.constant 0 : index
    %c0_151 = arith.constant 0 : index
    %400 = vector.load %arg9[%c0_150, %c0_151] : memref<8x256xf32, #tpu.memory_space<vmem>>, vector<8x128xf32>
    tpu.vector_store %arg9[%c0_150, %c0_151], %399 {strides = array<i32>} : memref<8x256xf32, #tpu.memory_space<vmem>>, vector<8x128xf32>,
    %c0_152 = arith.constant 0 : index
    %c128_153 = arith.constant 128 : index
    %401 = vector.load %arg9[%c0_152, %c128_153] : memref<8x256xf32, #tpu.memory_space<vmem>>, vector<8x128xf32>
    tpu.vector_store %arg9[%c0_152, %c128_153], %11 {strides = array<i32>} : memref<8x256xf32, #tpu.memory_space<vmem>>, vector<8x128xf32>,
    %c0_154 = arith.constant 0 : index
    %c0_155 = arith.constant 0 : index
    %402 = vector.load %arg9[%c0_154, %c0_155] : memref<8x256xf32, #tpu.memory_space<vmem>>, vector<8x256xf32>
    %403 = arith.truncf %402 : vector<8x256xf32> to vector<8x256xbf16>
    %c0_156 = arith.constant 0 : index
    %c512_157 = arith.constant 512 : index
    %404 = vector.load %arg3[%c0_156, %c512_157] : memref<256x1152xbf16, #tpu.memory_space<vmem>>, vector<256x128xbf16>
    %cst_158 = arith.constant dense<0.000000e+00> : vector<8x128xf32>
    %405 = tpu.matmul %403, %404, %cst_158 {dimension_numbers = #tpu.dot_dimension_numbers<[1], [0], [0], [1], [0, 0, 1, 1], [], []>} : vector<8x256xbf16>, vector<256x128xbf16>, vector<8x128xf32> -> vector<8x128xf32>
    %c19 = arith.constant 19 : index
    %c0_159 = arith.constant 0 : index
    %406 = vector.load %arg5[%c19, %c0_159] : memref<22x128xf32, #tpu.memory_space<vmem>>, vector<1x128xf32>
    %407 = vector.broadcast %406 : vector<1x128xf32> to vector<8x128xf32>
    %408 = arith.addf %405, %407 : vector<8x128xf32>
    %cst_160 = arith.constant 5.000000e-01 : f32
    %409 = vector.broadcast %cst_160 : f32 to vector<8x128xf32>
    %410 = arith.mulf %409, %408 : vector<8x128xf32>
    %411 = arith.mulf %408, %408 : vector<8x128xf32>
    %412 = arith.mulf %411, %408 : vector<8x128xf32>
    %cst_161 = arith.constant 4.471500e-02 : f32
    %413 = vector.broadcast %cst_161 : f32 to vector<8x128xf32>
    %414 = arith.mulf %413, %412 : vector<8x128xf32>
    %415 = arith.addf %408, %414 : vector<8x128xf32>
    %cst_162 = arith.constant 0.797884583 : f32
    %416 = vector.broadcast %cst_162 : f32 to vector<8x128xf32>
    %417 = arith.mulf %416, %415 : vector<8x128xf32>
    %418 = math.tanh %417 : vector<8x128xf32>
    %cst_163 = arith.constant 1.000000e+00 : f32
    %419 = vector.broadcast %cst_163 : f32 to vector<8x128xf32>
    %420 = arith.addf %419, %418 : vector<8x128xf32>
    %421 = arith.mulf %410, %420 : vector<8x128xf32>
    %cst_164 = arith.constant dense<0.000000e+00> : vector<8xf32>
    %422 = vector.multi_reduction <add>, %421, %cst_164 [1] : vector<8x128xf32> to vector<8xf32>
    %423 = vector.shape_cast %422 : vector<8xf32> to vector<8x1xf32>
    %cst_165 = arith.constant 1.280000e+02 : f32
    %424 = vector.broadcast %cst_165 : f32 to vector<8x1xf32>
    %425 = arith.divf %423, %424 : vector<8x1xf32>
    %426 = arith.mulf %421, %421 : vector<8x128xf32>
    %cst_166 = arith.constant dense<0.000000e+00> : vector<8xf32>
    %427 = vector.multi_reduction <add>, %426, %cst_166 [1] : vector<8x128xf32> to vector<8xf32>
    %428 = vector.shape_cast %427 : vector<8xf32> to vector<8x1xf32>
    %cst_167 = arith.constant 1.280000e+02 : f32
    %429 = vector.broadcast %cst_167 : f32 to vector<8x1xf32>
    %430 = arith.divf %428, %429 : vector<8x1xf32>
    %431 = arith.mulf %425, %425 : vector<8x1xf32>
    %432 = arith.subf %430, %431 : vector<8x1xf32>
    %433 = vector.broadcast %425 : vector<8x1xf32> to vector<8x128xf32>
    %434 = arith.subf %421, %433 : vector<8x128xf32>
    %cst_168 = arith.constant 9.99999974E-6 : f32
    %435 = vector.broadcast %cst_168 : f32 to vector<8x1xf32>
    %436 = arith.addf %432, %435 : vector<8x1xf32>
    %437 = math.rsqrt %436 : vector<8x1xf32>
    %438 = vector.broadcast %437 : vector<8x1xf32> to vector<8x128xf32>
    %439 = arith.mulf %434, %438 : vector<8x128xf32>
    %440 = arith.truncf %439 : vector<8x128xf32> to vector<8x128xbf16>
    %c0_169 = arith.constant 0 : index
    %c1536 = arith.constant 1536 : index
    %441 = vector.load %arg2[%c0_169, %c1536] : memref<128x1792xbf16, #tpu.memory_space<vmem>>, vector<128x256xbf16>
    %cst_170 = arith.constant dense<0.000000e+00> : vector<8x256xf32>
    %442 = tpu.matmul %440, %441, %cst_170 {dimension_numbers = #tpu.dot_dimension_numbers<[1], [0], [0], [1], [0, 0, 1, 1], [], []>} : vector<8x128xbf16>, vector<128x256xbf16>, vector<8x256xf32> -> vector<8x256xf32>
    %c0_171 = arith.constant 0 : index
    %c0_172 = arith.constant 0 : index
    %443 = vector.load %arg6[%c0_171, %c0_172] : memref<1x256xf32, #tpu.memory_space<vmem>>, vector<1x256xf32>
    %444 = vector.broadcast %443 : vector<1x256xf32> to vector<8x256xf32>
    %445 = arith.addf %442, %444 : vector<8x256xf32>
    %cst_173 = arith.constant 5.000000e-01 : f32
    %446 = vector.broadcast %cst_173 : f32 to vector<8x256xf32>
    %447 = arith.mulf %446, %445 : vector<8x256xf32>
    %448 = arith.mulf %445, %445 : vector<8x256xf32>
    %449 = arith.mulf %448, %445 : vector<8x256xf32>
    %cst_174 = arith.constant 4.471500e-02 : f32
    %450 = vector.broadcast %cst_174 : f32 to vector<8x256xf32>
    %451 = arith.mulf %450, %449 : vector<8x256xf32>
    %452 = arith.addf %445, %451 : vector<8x256xf32>
    %cst_175 = arith.constant 0.797884583 : f32
    %453 = vector.broadcast %cst_175 : f32 to vector<8x256xf32>
    %454 = arith.mulf %453, %452 : vector<8x256xf32>
    %455 = math.tanh %454 : vector<8x256xf32>
    %cst_176 = arith.constant 1.000000e+00 : f32
    %456 = vector.broadcast %cst_176 : f32 to vector<8x256xf32>
    %457 = arith.addf %456, %455 : vector<8x256xf32>
    %458 = arith.mulf %447, %457 : vector<8x256xf32>
    %cst_177 = arith.constant dense<0.000000e+00> : vector<8xf32>
    %459 = vector.multi_reduction <add>, %458, %cst_177 [1] : vector<8x256xf32> to vector<8xf32>
    %460 = vector.shape_cast %459 : vector<8xf32> to vector<8x1xf32>
    %cst_178 = arith.constant 2.560000e+02 : f32
    %461 = vector.broadcast %cst_178 : f32 to vector<8x1xf32>
    %462 = arith.divf %460, %461 : vector<8x1xf32>
    %463 = arith.mulf %458, %458 : vector<8x256xf32>
    %cst_179 = arith.constant dense<0.000000e+00> : vector<8xf32>
    %464 = vector.multi_reduction <add>, %463, %cst_179 [1] : vector<8x256xf32> to vector<8xf32>
    %465 = vector.shape_cast %464 : vector<8xf32> to vector<8x1xf32>
    %cst_180 = arith.constant 2.560000e+02 : f32
    %466 = vector.broadcast %cst_180 : f32 to vector<8x1xf32>
    %467 = arith.divf %465, %466 : vector<8x1xf32>
    %468 = arith.mulf %462, %462 : vector<8x1xf32>
    %469 = arith.subf %467, %468 : vector<8x1xf32>
    %470 = vector.broadcast %462 : vector<8x1xf32> to vector<8x256xf32>
    %471 = arith.subf %458, %470 : vector<8x256xf32>
    %cst_181 = arith.constant 9.99999974E-6 : f32
    %472 = vector.broadcast %cst_181 : f32 to vector<8x1xf32>
    %473 = arith.addf %469, %472 : vector<8x1xf32>
    %474 = math.rsqrt %473 : vector<8x1xf32>
    %475 = vector.broadcast %474 : vector<8x1xf32> to vector<8x256xf32>
    %476 = arith.mulf %471, %475 : vector<8x256xf32>
    %477 = arith.truncf %476 : vector<8x256xf32> to vector<8x256xbf16>
    %c0_182 = arith.constant 0 : index
    %c640 = arith.constant 640 : index
    %478 = vector.load %arg3[%c0_182, %c640] : memref<256x1152xbf16, #tpu.memory_space<vmem>>, vector<256x512xbf16>
    %cst_183 = arith.constant dense<0.000000e+00> : vector<8x512xf32>
    %479 = tpu.matmul %477, %478, %cst_183 {dimension_numbers = #tpu.dot_dimension_numbers<[1], [0], [0], [1], [0, 0, 1, 1], [], []>} : vector<8x256xbf16>, vector<256x512xbf16>, vector<8x512xf32> -> vector<8x512xf32>
    %c8_184 = arith.constant 8 : index
    %c0_185 = arith.constant 0 : index
    %480 = vector.load %arg7[%c8_184, %c0_185] : memref<9x512xf32, #tpu.memory_space<vmem>>, vector<1x512xf32>
    %481 = vector.broadcast %480 : vector<1x512xf32> to vector<8x512xf32>
    %482 = arith.addf %479, %481 : vector<8x512xf32>
    %cst_186 = arith.constant 5.000000e-01 : f32
    %483 = vector.broadcast %cst_186 : f32 to vector<8x512xf32>
    %484 = arith.mulf %483, %482 : vector<8x512xf32>
    %485 = arith.mulf %482, %482 : vector<8x512xf32>
    %486 = arith.mulf %485, %482 : vector<8x512xf32>
    %cst_187 = arith.constant 4.471500e-02 : f32
    %487 = vector.broadcast %cst_187 : f32 to vector<8x512xf32>
    %488 = arith.mulf %487, %486 : vector<8x512xf32>
    %489 = arith.addf %482, %488 : vector<8x512xf32>
    %cst_188 = arith.constant 0.797884583 : f32
    %490 = vector.broadcast %cst_188 : f32 to vector<8x512xf32>
    %491 = arith.mulf %490, %489 : vector<8x512xf32>
    %492 = math.tanh %491 : vector<8x512xf32>
    %cst_189 = arith.constant 1.000000e+00 : f32
    %493 = vector.broadcast %cst_189 : f32 to vector<8x512xf32>
    %494 = arith.addf %493, %492 : vector<8x512xf32>
    %495 = arith.mulf %484, %494 : vector<8x512xf32>
    %cst_190 = arith.constant dense<0.000000e+00> : vector<8xf32>
    %496 = vector.multi_reduction <add>, %495, %cst_190 [1] : vector<8x512xf32> to vector<8xf32>
    %497 = vector.shape_cast %496 : vector<8xf32> to vector<8x1xf32>
    %cst_191 = arith.constant 5.120000e+02 : f32
    %498 = vector.broadcast %cst_191 : f32 to vector<8x1xf32>
    %499 = arith.divf %497, %498 : vector<8x1xf32>
    %500 = arith.mulf %495, %495 : vector<8x512xf32>
    %cst_192 = arith.constant dense<0.000000e+00> : vector<8xf32>
    %501 = vector.multi_reduction <add>, %500, %cst_192 [1] : vector<8x512xf32> to vector<8xf32>
    %502 = vector.shape_cast %501 : vector<8xf32> to vector<8x1xf32>
    %cst_193 = arith.constant 5.120000e+02 : f32
    %503 = vector.broadcast %cst_193 : f32 to vector<8x1xf32>
    %504 = arith.divf %502, %503 : vector<8x1xf32>
    %505 = arith.mulf %499, %499 : vector<8x1xf32>
    %506 = arith.subf %504, %505 : vector<8x1xf32>
    %507 = vector.broadcast %499 : vector<8x1xf32> to vector<8x512xf32>
    %508 = arith.subf %495, %507 : vector<8x512xf32>
    %cst_194 = arith.constant 9.99999974E-6 : f32
    %509 = vector.broadcast %cst_194 : f32 to vector<8x1xf32>
    %510 = arith.addf %506, %509 : vector<8x1xf32>
    %511 = math.rsqrt %510 : vector<8x1xf32>
    %512 = vector.broadcast %511 : vector<8x1xf32> to vector<8x512xf32>
    %513 = arith.mulf %508, %512 : vector<8x512xf32>
    %514 = arith.truncf %513 : vector<8x512xf32> to vector<8x512xbf16>
    %c0_195 = arith.constant 0 : index
    %c640_196 = arith.constant 640 : index
    %515 = vector.load %arg4[%c0_195, %c640_196] : memref<512x768xbf16, #tpu.memory_space<vmem>>, vector<512x128xbf16>
    %cst_197 = arith.constant dense<0.000000e+00> : vector<8x128xf32>
    %516 = tpu.matmul %514, %515, %cst_197 {dimension_numbers = #tpu.dot_dimension_numbers<[1], [0], [0], [1], [0, 0, 1, 1], [], []>} : vector<8x512xbf16>, vector<512x128xbf16>, vector<8x128xf32> -> vector<8x128xf32>
    %c20 = arith.constant 20 : index
    %c0_198 = arith.constant 0 : index
    %517 = vector.load %arg5[%c20, %c0_198] : memref<22x128xf32, #tpu.memory_space<vmem>>, vector<1x128xf32>
    %518 = vector.broadcast %517 : vector<1x128xf32> to vector<8x128xf32>
    %519 = arith.addf %516, %518 : vector<8x128xf32>
    %c0_199 = arith.constant 0 : index
    %c0_200 = arith.constant 0 : index
    %520 = vector.load %arg8[%c0_199, %c0_200] : memref<8x128xf32, #tpu.memory_space<vmem>>, vector<8x128xf32>
    tpu.vector_store %arg8[%c0_199, %c0_200], %519 {strides = array<i32>} : memref<8x128xf32, #tpu.memory_space<vmem>>, vector<8x128xf32>,
    return
  }
  func.func @transform_0(%arg0: i32) -> (i32, i32) {
    %c0_i32 = arith.constant 0 : i32
    %c0_i32_0 = arith.constant 0 : i32
    return %arg0, %c0_i32 : i32, i32
  }
  func.func @transform_1(%arg0: i32) -> (i32, i32) {
    %c0_i32 = arith.constant 0 : i32
    %c0_i32_0 = arith.constant 0 : i32
    %c0_i32_1 = arith.constant 0 : i32
    return %c0_i32, %c0_i32_0 : i32, i32
  }
  func.func @transform_2(%arg0: i32) -> (i32, i32) {
    %c0_i32 = arith.constant 0 : i32
    %c0_i32_0 = arith.constant 0 : i32
    %c0_i32_1 = arith.constant 0 : i32
    return %c0_i32, %c0_i32_0 : i32, i32
  }
  func.func @transform_3(%arg0: i32) -> (i32, i32) {
    %c0_i32 = arith.constant 0 : i32
    %c0_i32_0 = arith.constant 0 : i32
    %c0_i32_1 = arith.constant 0 : i32
    return %c0_i32, %c0_i32_0 : i32, i32
  }
  func.func @transform_4(%arg0: i32) -> (i32, i32) {
    %c0_i32 = arith.constant 0 : i32
    %c0_i32_0 = arith.constant 0 : i32
    %c0_i32_1 = arith.constant 0 : i32
    return %c0_i32, %c0_i32_0 : i32, i32
  }
  func.func @transform_5(%arg0: i32) -> (i32, i32) {
    %c0_i32 = arith.constant 0 : i32
    %c0_i32_0 = arith.constant 0 : i32
    %c0_i32_1 = arith.constant 0 : i32
    return %c0_i32, %c0_i32_0 : i32, i32
  }
  func.func @transform_6(%arg0: i32) -> (i32, i32) {
    %c0_i32 = arith.constant 0 : i32
    %c0_i32_0 = arith.constant 0 : i32
    %c0_i32_1 = arith.constant 0 : i32
    return %c0_i32, %c0_i32_0 : i32, i32
  }
  func.func @transform_7(%arg0: i32) -> (i32, i32) {
    %c0_i32 = arith.constant 0 : i32
    %c0_i32_0 = arith.constant 0 : i32
    return %arg0, %c0_i32 : i32, i32
  }
}

</mosaic_0001>

<llo_original>
// kernel: tpu_custom_call.1
$region0: #{tpu_custom_call.1}
  #allocation0 [shape = 'u32[]', space=smem, size = 0x4, offset = 0x4, fixed_abs, tag = 'smem constant byte address 0x4 - core index']
  #allocation1 [shape = 'u32[144,128]{1,0:T(1,128)}', space=vmem, size = 0x12000, scoped, tag = 'internal scratch']
  #allocation2 [shape = 'f32[8,256]{1,0:T(8,128)}', space=vmem, size = 0x2000, scoped, tag = 'scratch operand']
  %s0 = inlined_call_operand.hbm [shape: f32[8,8], index: 0, kind: input, shape index: {}]
  %s1 = inlined_call_operand.hbm [shape: bf16[128,1792], index: 1, kind: input, shape index: {}]
  %s2 = inlined_call_operand.hbm [shape: bf16[256,1152], index: 2, kind: input, shape index: {}]
  %s3 = inlined_call_operand.hbm [shape: bf16[512,768], index: 3, kind: input, shape index: {}]
  %s4 = inlined_call_operand.hbm [shape: f32[22,128], index: 4, kind: input, shape index: {}]
  %s5 = inlined_call_operand.vmem [shape: f32[1,256], index: 5, kind: input, shape index: {}]
  %s6 = inlined_call_operand.hbm [shape: f32[9,512], index: 6, kind: input, shape index: {}]
  %s7 = inlined_call_operand.hbm [shape: f32[8,128], index: 7, kind: output, shape index: {}]
  %s8 = sld [smem:[#allocation0]]
  $region62: #{tpu_custom_call.1} parent=0
    _
  %s10 = ssub.s32 1, %s8
  %s11 = scalar_select 0, %s10, %s8
  $region1: #{tpu_custom_call.1} parent=0
    #allocation3 [shape = 'u8[4096]{0}', space=vmem, size = 0x1000, scoped, tag = 'input window, operand 0, single buffered']
    #allocation4 [shape = 's32[1]{0}', space=sflag, size = 0x4, scoped, tag = 'scoped memory for tpu_custom_call.1']
    #allocation5 [shape = 's32[1]{0}', space=sflag, size = 0x4, scoped, tag = 'scoped memory for tpu_custom_call.1']
    #allocation6 [shape = 'u8[458752]{0}', space=vmem, size = 0x70000, scoped, tag = 'input window, operand 1, single buffered']
    #allocation7 [shape = 's32[1]{0}', space=sflag, size = 0x4, scoped, tag = 'scoped memory for tpu_custom_call.1']
    #allocation8 [shape = 'u8[589824]{0}', space=vmem, size = 0x90000, scoped, tag = 'input window, operand 2, single buffered']
    #allocation9 [shape = 'u8[786432]{0}', space=vmem, size = 0xc0000, scoped, tag = 'input window, operand 3, single buffered']
    #allocation10 [shape = 's32[1]{0}', space=sflag, size = 0x4, scoped, tag = 'scoped memory for tpu_custom_call.1']
    #allocation11 [shape = 'u8[12288]{0}', space=vmem, size = 0x3000, scoped, tag = 'input window, operand 4, single buffered']
    #allocation12 [shape = 'u8[32768]{0}', space=vmem, size = 0x8000, scoped, tag = 'input window, operand 6, single buffered']
    #allocation13 [shape = 's32[1]{0}', space=sflag, size = 0x4, scoped, tag = 'scoped memory for tpu_custom_call.1']
    #allocation14 [shape = 'u8[4096]{0}', space=vmem, size = 0x1000, scoped, tag = 'output window, operand 0, single buffered']
    %12 = vsyncpa [#allocation4], 0
    %13 = vsyncpa [#allocation7], 0
    %14 = vsyncpa [#allocation10], 0
    %15 = vsyncpa [#allocation13], 0
    %16 = vsyncpa [#allocation5], 0
    // Predicated region
    $region2: #{tpu_custom_call.1} parent=1 // pred_check
      _
    $region3: #{tpu_custom_call.1} parent=1 // pred_check_branch
      %18 = sbr.rel (0) target = $region5
    $region4: #{tpu_custom_call.1} parent=1 // pred_region
      %s20 = ssub.s32 128, 128
      %21 = vsyncadd [#allocation4], %s20
      %s23 = sshll.u32 [#allocation3], 4
      %s24 = int_to_ptr.vmem [resolvable:$true] %s23
      %26 = dma.hbm_to_vmem [thread:$0]  %s0, 128, %s24, [#allocation4]
    $region5: #{tpu_custom_call.1} parent=1 // pred_fallthru
      _
    // Predicated region
    $region6: #{tpu_custom_call.1} parent=1 // pred_check
      _
    $region7: #{tpu_custom_call.1} parent=1 // pred_check_branch
      %28 = sbr.rel (0) target = $region9
    $region8: #{tpu_custom_call.1} parent=1 // pred_region
      %s30 = ssub.s32 14336, 14336
      %31 = vsyncadd [#allocation7], %s30
      %s32 = sshll.u32 [#allocation6], 4
      %s33 = int_to_ptr.vmem [resolvable:$true] %s32
      %38 = dma.hbm_to_vmem [thread:$0]  %s1, 14336, %s33, [#allocation7], 896, 896, 56
    $region9: #{tpu_custom_call.1} parent=1 // pred_fallthru
      _
    // Predicated region
    $region10: #{tpu_custom_call.1} parent=1 // pred_check
      _
    $region11: #{tpu_custom_call.1} parent=1 // pred_check_branch
      %40 = sbr.rel (0) target = $region13
    $region12: #{tpu_custom_call.1} parent=1 // pred_region
      %s42 = ssub.s32 18432, 18432
      %43 = vsyncadd [#allocation7], %s42
      %s44 = sshll.u32 [#allocation8], 4
      %s45 = int_to_ptr.vmem [resolvable:$true] %s44
      %50 = dma.hbm_to_vmem [thread:$0]  %s2, 18432, %s45, [#allocation7], 576, 576, 36
    $region13: #{tpu_custom_call.1} parent=1 // pred_fallthru
      _
    // Predicated region
    $region14: #{tpu_custom_call.1} parent=1 // pred_check
      _
    $region15: #{tpu_custom_call.1} parent=1 // pred_check_branch
      %52 = sbr.rel (0) target = $region17
    $region16: #{tpu_custom_call.1} parent=1 // pred_region
      %s54 = ssub.s32 24576, 24576
      %55 = vsyncadd [#allocation10], %s54
      %s56 = sshll.u32 [#allocation9], 4
      %s57 = int_to_ptr.vmem [resolvable:$true] %s56
      %62 = dma.hbm_to_vmem [thread:$0]  %s3, 24576, %s57, [#allocation10], 384, 384, 24
    $region17: #{tpu_custom_call.1} parent=1 // pred_fallthru
      _
    // Predicated region
    $region18: #{tpu_custom_call.1} parent=1 // pred_check
      _
    $region19: #{tpu_custom_call.1} parent=1 // pred_check_branch
      %64 = sbr.rel (0) target = $region21
    $region20: #{tpu_custom_call.1} parent=1 // pred_region
      %s66 = ssub.s32 384, 384
      %67 = vsyncadd [#allocation10], %s66
      %s68 = sshll.u32 [#allocation11], 4
      %s69 = int_to_ptr.vmem [resolvable:$true] %s68
      %74 = dma.hbm_to_vmem [thread:$0]  %s4, 384, %s69, [#allocation10], 128, 128, 8
    $region21: #{tpu_custom_call.1} parent=1 // pred_fallthru
      _
    // Predicated region
    $region22: #{tpu_custom_call.1} parent=1 // pred_check
      _
    $region23: #{tpu_custom_call.1} parent=1 // pred_check_branch
      %76 = sbr.rel (0) target = $region25
    $region24: #{tpu_custom_call.1} parent=1 // pred_region
      _
    $region25: #{tpu_custom_call.1} parent=1 // pred_fallthru
      _
    // Predicated region
    $region26: #{tpu_custom_call.1} parent=1 // pred_check
      _
    $region27: #{tpu_custom_call.1} parent=1 // pred_check_branch
      %78 = sbr.rel (0) target = $region29
    $region28: #{tpu_custom_call.1} parent=1 // pred_region
      %s80 = ssub.s32 1024, 1024
      %81 = vsyncadd [#allocation13], %s80
      %s82 = sshll.u32 [#allocation12], 4
      %s83 = int_to_ptr.vmem [resolvable:$true] %s82
      %88 = dma.hbm_to_vmem [thread:$0]  %s6, 1024, %s83, [#allocation13], 512, 512, 32
    $region29: #{tpu_custom_call.1} parent=1 // pred_fallthru
      _
    // Predicated region
    $region30: #{tpu_custom_call.1} parent=1 // pred_check
      _
    $region31: #{tpu_custom_call.1} parent=1 // pred_check_branch
      %90 = sbr.rel (0) target = $region33
    $region32: #{tpu_custom_call.1} parent=1 // pred_region
      %91 = dma.done [#allocation4], 128
    $region33: #{tpu_custom_call.1} parent=1 // pred_fallthru
      _
    // Predicated region
    $region34: #{tpu_custom_call.1} parent=1 // pred_check
      _
    $region35: #{tpu_custom_call.1} parent=1 // pred_check_branch
      %93 = sbr.rel (0) target = $region37
    $region36: #{tpu_custom_call.1} parent=1 // pred_region
      %94 = dma.done [#allocation7], 14336
    $region37: #{tpu_custom_call.1} parent=1 // pred_fallthru
      _
    // Predicated region
    $region38: #{tpu_custom_call.1} parent=1 // pred_check
      _
    $region39: #{tpu_custom_call.1} parent=1 // pred_check_branch
      %96 = sbr.rel (0) target = $region41
    $region40: #{tpu_custom_call.1} parent=1 // pred_region
      %97 = dma.done [#allocation7], 18432
    $region41: #{tpu_custom_call.1} parent=1 // pred_fallthru
      _
    // Predicated region
    $region42: #{tpu_custom_call.1} parent=1 // pred_check
      _
    $region43: #{tpu_custom_call.1} parent=1 // pred_check_branch
      %99 = sbr.rel (0) target = $region45
    $region44: #{tpu_custom_call.1} parent=1 // pred_region
      %100 = dma.done [#allocation10], 24576
    $region45: #{tpu_custom_call.1} parent=1 // pred_fallthru
      _
    // Predicated region
    $region46: #{tpu_custom_call.1} parent=1 // pred_check
      _
    $region47: #{tpu_custom_call.1} parent=1 // pred_check_branch
      %102 = sbr.rel (0) target = $region49
    $region48: #{tpu_custom_call.1} parent=1 // pred_region
      %103 = dma.done [#allocation10], 384
    $region49: #{tpu_custom_call.1} parent=1 // pred_fallthru
      _
    // Predicated region
    $region50: #{tpu_custom_call.1} parent=1 // pred_check
      _
    $region51: #{tpu_custom_call.1} parent=1 // pred_check_branch
      %105 = sbr.rel (0) target = $region53
    $region52: #{tpu_custom_call.1} parent=1 // pred_region
      %106 = dma.done [#allocation13], 1024
    $region53: #{tpu_custom_call.1} parent=1 // pred_fallthru
      _
    %v108 = vld [vmem:[#allocation3] sm:$0xff]
    %v109 = vld [vmem:[#allocation11 + $0x15] sm:$0x1]
    %111 = vset.pattern.permute.xlu0 3
    %112 = vperm.xlu0 %111, %v108
    %v113 = vpop.permute.xlu0 %112
    %v115 = vlaneseq
    %v116 = vshrl.u32 %v115, 7
    %v117 = vsub.s32 0, %v116
    %v118 = vrot.slane %v109, %v117
    %v119 = vmul.f32 %v113, %v118
    %v120 = vlaneseq
    %v121 = vand.u32 %v120, 127
    %vm122 = vcmp.lt.s32.totalorder %v121, 64
    %v123 = vand.u32 2147483647, %v119
    %vm124 = vcmp.le.f32.partialorder %v123, 0.7853982
    %vm125 = vcmp.lt.s32.totalorder %v119, 0
    %v126 = vand.u32 %v119, 2139095040
    %v127 = vshrl.u32 %v126, 23
    %v128 = vsub.s32 %v127, 127
    %v129 = vand.u32 2147483647, %v119
    %v130 = vand.u32 %v129, 8388607
    %v131 = vor.u32 %v130, 8388608
    %v132 = vsub.s32 0, %v131
    %v133 = vadd.s32 %v128, 1
    %vm134 = vcmp.gt.s32.totalorder %v133, 0
    %v135 = vsel %vm134, %v133, 0
    %v136 = vshrl.u32 %v135, 5
    %v137 = vand.u32 %v135, 31
    %v138 = vsub.s32 32, %v137
    %v139 = vshrl.u32 683565275, %v138
    %v140 = vshll.u32 683565275, %v137
    %v141 = vshrl.u32 2475754826, %v138
    %v142 = vor.u32 %v140, %v141
    %v143 = vshll.u32 2475754826, %v137
    %v144 = vshrl.u32 2131351028, %v138
    %v145 = vor.u32 %v143, %v144
    %v146 = vshll.u32 2131351028, %v137
    %v147 = vshrl.u32 2102212464, %v138
    %v148 = vor.u32 %v146, %v147
    %v149 = vshll.u32 2102212464, %v137
    %v150 = vshrl.u32 920167782, %v138
    %v151 = vor.u32 %v149, %v150
    %v152 = vshll.u32 920167782, %v137
    %v153 = vshrl.u32 1326507024, %v138
    %v154 = vor.u32 %v152, %v153
    %vm155 = vcmp.lt.s32.totalorder %v136, 1
    %vm156 = vcmp.lt.s32.totalorder %v136, 2
    %vm157 = vcmp.lt.s32.totalorder %v136, 3
    %vm158 = vcmp.lt.s32.totalorder %v136, 4
    %v159 = vsel %vm155, %v139, %v142
    %v160 = vsel %vm158, %v148, 2102212464
    %v161 = vsel %vm157, %v145, %v160
    %v162 = vsel %vm156, %v159, %v161
    %v163 = vsel %vm155, %v142, %v145
    %v164 = vsel %vm158, %v151, 920167782
    %v165 = vsel %vm157, %v148, %v164
    %v166 = vsel %vm156, %v163, %v165
    %v167 = vsel %vm155, %v145, %v148
    %v168 = vsel %vm158, %v154, 1326507024
    %v169 = vsel %vm157, %v151, %v168
    %v170 = vsel %vm156, %v167, %v169
    %v171 = vshll.u32 %v131, 8
    %v172 = vmul.u32.u64.compose %v171, %v170
    %v173 = vextract.low.u32 %v172
    %v174 = vextract.high.u32 %v172
    %v175 = vmul.u32.u64.compose %v171, %v166
    %v176 = vextract.low.u32 %v175
    %v177 = vextract.high.u32 %v175
    %v178 = vmul.u32 %v171, %v162
    %v179 = vadd.s32 %v174, %v176
    %vm180 = vc.u32 %v174, %v176
    %v181 = vadd.s32 %v177, 1
    %v182 = vsel %vm180, %v181, %v177
    %v183 = vadd.s32 %v178, %v182
    %v184 = vadd.s32 %v183, 536870912
    %v185 = vshrl.u32 %v184, 30
    %v186 = vshll.u32 %v185, 30
    %v187 = vsub.s32 %v183, %v186
    %vm188 = vcmp.lt.s32.totalorder %v187, 0
    %v189 = vsub.s32 0, %v187
    %v190 = vsel %vm188, %v189, %v187
    %v191 = vclz %v190
    %v192 = vsub.s32 %v191, 2
    %vm193 = vcmp.gt.s32.totalorder 0, %v192
    %v194 = vsel %vm193, 0, %v192
    %v195 = vsub.s32 32, %v194
    %v196 = vshll.u32 %v187, %v194
    %v197 = vshrl.u32 %v179, %v195
    %v198 = vor.u32 %v196, %v197
    %v199 = vsub.s32 4294967266, %v194
    %v200 = vadd.s32 %v199, 127
    %v201 = vshll.u32 %v200, 23
    %v202 = vor.u32 4788187, %v201
    %v203 = vand.u32 2147483647, %v202
    %v205 = vcvt.s32.f32 %v198
    %v206 = vmul.f32 %v205, %v203
    %v207 = vxor.u32 %v206, 2147483648
    %v208 = vsel %vm125, %v207, %v206
    %v209 = vsub.s32 4, %v185
    %v210 = vsel %vm125, %v209, %v185
    %v211 = vsel %vm124, %v119, %v208
    %v212 = vsel %vm124, 0, %v210
    %v213 = vcosq.f32.pop %v211
    %v214 = vsinq.f32.pop %v211
    %vm215 = vweird.f32 %v119
    %v216 = vadd.s32 %v212, 3
    %v217 = vand.u32 %v216, 3
    %vm218 = vcmp.lt.s32.totalorder %v217, 2
    %vm219 = vcmp.eq.s32.totalorder %v217, 0
    %v220 = vxor.u32 %v214, 2147483648
    %v221 = vsel %vm219, %v213, %v220
    %vm222 = vcmp.eq.s32.totalorder %v217, 2
    %v223 = vxor.u32 %v213, 2147483648
    %v224 = vsel %vm222, %v223, %v214
    %v225 = vsel %vm218, %v221, %v224
    %v226 = vsel %vm215, nan, %v225
    %v227 = vand.u32 2147483647, %v119
    %vm228 = vcmp.le.f32.partialorder %v227, 0.7853982
    %vm229 = vcmp.lt.s32.totalorder %v119, 0
    %v230 = vand.u32 %v119, 2139095040
    %v231 = vshrl.u32 %v230, 23
    %v232 = vsub.s32 %v231, 127
    %v233 = vand.u32 2147483647, %v119
    %v234 = vand.u32 %v233, 8388607
    %v235 = vor.u32 %v234, 8388608
    %v236 = vsub.s32 0, %v235
    %v237 = vadd.s32 %v232, 1
    %vm238 = vcmp.gt.s32.totalorder %v237, 0
    %v239 = vsel %vm238, %v237, 0
    %v240 = vshrl.u32 %v239, 5
    %v241 = vand.u32 %v239, 31
    %v242 = vsub.s32 32, %v241
    %v243 = vshrl.u32 683565275, %v242
    %v244 = vshll.u32 683565275, %v241
    %v245 = vshrl.u32 2475754826, %v242
    %v246 = vor.u32 %v244, %v245
    %v247 = vshll.u32 2475754826, %v241
    %v248 = vshrl.u32 2131351028, %v242
    %v249 = vor.u32 %v247, %v248
    %v250 = vshll.u32 2131351028, %v241
    %v251 = vshrl.u32 2102212464, %v242
    %v252 = vor.u32 %v250, %v251
    %v253 = vshll.u32 2102212464, %v241
    %v254 = vshrl.u32 920167782, %v242
    %v255 = vor.u32 %v253, %v254
    %v256 = vshll.u32 920167782, %v241
    %v257 = vshrl.u32 1326507024, %v242
    %v258 = vor.u32 %v256, %v257
    %vm259 = vcmp.lt.s32.totalorder %v240, 1
    %vm260 = vcmp.lt.s32.totalorder %v240, 2
    %vm261 = vcmp.lt.s32.totalorder %v240, 3
    %vm262 = vcmp.lt.s32.totalorder %v240, 4
    %v263 = vsel %vm259, %v243, %v246
    %v264 = vsel %vm262, %v252, 2102212464
    %v265 = vsel %vm261, %v249, %v264
    %v266 = vsel %vm260, %v263, %v265
    %v267 = vsel %vm259, %v246, %v249
    %v268 = vsel %vm262, %v255, 920167782
    %v269 = vsel %vm261, %v252, %v268
    %v270 = vsel %vm260, %v267, %v269
    %v271 = vsel %vm259, %v249, %v252
    %v272 = vsel %vm262, %v258, 1326507024
    %v273 = vsel %vm261, %v255, %v272
    %v274 = vsel %vm260, %v271, %v273
    %v275 = vshll.u32 %v235, 8
    %v276 = vmul.u32.u64.compose %v275, %v274
    %v277 = vextract.low.u32 %v276
    %v278 = vextract.high.u32 %v276
    %v279 = vmul.u32.u64.compose %v275, %v270
    %v280 = vextract.low.u32 %v279
    %v281 = vextract.high.u32 %v279
    %v282 = vmul.u32 %v275, %v266
    %v283 = vadd.s32 %v278, %v280
    %vm284 = vc.u32 %v278, %v280
    %v285 = vadd.s32 %v281, 1
    %v286 = vsel %vm284, %v285, %v281
    %v287 = vadd.s32 %v282, %v286
    %v288 = vadd.s32 %v287, 536870912
    %v289 = vshrl.u32 %v288, 30
    %v290 = vshll.u32 %v289, 30
    %v291 = vsub.s32 %v287, %v290
    %vm292 = vcmp.lt.s32.totalorder %v291, 0
    %v293 = vsub.s32 0, %v291
    %v294 = vsel %vm292, %v293, %v291
    %v295 = vclz %v294
    %v296 = vsub.s32 %v295, 2
    %vm297 = vcmp.gt.s32.totalorder 0, %v296
    %v298 = vsel %vm297, 0, %v296
    %v299 = vsub.s32 32, %v298
    %v300 = vshll.u32 %v291, %v298
    %v301 = vshrl.u32 %v283, %v299
    %v302 = vor.u32 %v300, %v301
    %v303 = vsub.s32 4294967266, %v298
    %v304 = vadd.s32 %v303, 127
    %v305 = vshll.u32 %v304, 23
    %v306 = vor.u32 4788187, %v305
    %v307 = vand.u32 2147483647, %v306
    %v309 = vcvt.s32.f32 %v302
    %v310 = vmul.f32 %v309, %v307
    %v311 = vxor.u32 %v310, 2147483648
    %v312 = vsel %vm229, %v311, %v310
    %v313 = vsub.s32 4, %v289
    %v314 = vsel %vm229, %v313, %v289
    %v315 = vsel %vm228, %v119, %v312
    %v316 = vsel %vm228, 0, %v314
    %v317 = vcosq.f32.pop %v315
    %v318 = vsinq.f32.pop %v315
    %vm319 = vweird.f32 %v119
    %v320 = vand.u32 %v316, 3
    %vm321 = vcmp.lt.s32.totalorder %v320, 2
    %vm322 = vcmp.eq.s32.totalorder %v320, 0
    %v323 = vxor.u32 %v318, 2147483648
    %v324 = vsel %vm322, %v317, %v323
    %vm325 = vcmp.eq.s32.totalorder %v320, 2
    %v326 = vxor.u32 %v317, 2147483648
    %v327 = vsel %vm325, %v326, %v318
    %v328 = vsel %vm321, %v324, %v327
    %v329 = vsel %vm319, nan, %v328
    %v330 = vsel %vm122, %v226, %v329
    %s331 = scalar_lea.vmem [#allocation12], 2
    %v332 = vld [vmem:[%s331] ss:$8 sm:$0xf]
    %v333 = vld [vmem:[#allocation12] ss:$8 sm:$0xf]
    %334 = vset.pattern.permute.xlu0 0
    %335 = vperm.xlu0 %334, %v108
    %v336 = vpop.permute.xlu0 %335
    %v339 = vlaneseq
    %v340 = vshrl.u32 %v339, 7
    %v341 = vsub.s32 0, %v340
    %v342 = vrot.slane %v333, %v341
    %v343 = vlaneseq
    %v344 = vshrl.u32 %v343, 7
    %v345 = vsub.s32 1, %v344
    %v346 = vrot.slane %v333, %v345
    %v347 = vlaneseq
    %v348 = vshrl.u32 %v347, 7
    %v349 = vsub.s32 2, %v348
    %v350 = vrot.slane %v333, %v349
    %v351 = vlaneseq
    %v352 = vshrl.u32 %v351, 7
    %v353 = vsub.s32 3, %v352
    %v354 = vrot.slane %v333, %v353
    %v359 = vmul.f32 %v336, %v342
    %v360 = vmul.f32 %v336, %v346
    %v361 = vmul.f32 %v336, %v350
    %v362 = vmul.f32 %v336, %v354
    %v364 = vlaneseq
    %v365 = vshrl.u32 %v364, 7
    %v366 = vsub.s32 0, %v365
    %v367 = vrot.slane %v332, %v366
    %v368 = vlaneseq
    %v369 = vshrl.u32 %v368, 7
    %v370 = vsub.s32 1, %v369
    %v371 = vrot.slane %v332, %v370
    %v372 = vlaneseq
    %v373 = vshrl.u32 %v372, 7
    %v374 = vsub.s32 2, %v373
    %v375 = vrot.slane %v332, %v374
    %v376 = vlaneseq
    %v377 = vshrl.u32 %v376, 7
    %v378 = vsub.s32 3, %v377
    %v379 = vrot.slane %v332, %v378
    %v384 = vadd.f32 %v367, %v359
    %v385 = vadd.f32 %v371, %v360
    %v386 = vadd.f32 %v375, %v361
    %v387 = vadd.f32 %v379, %v362
    %s388 = scalar_lea.vmem [#allocation12], 1
    %v389 = vld [vmem:[%s388] ss:$8 sm:$0xf]
    %390 = vset.pattern.permute.xlu0 1
    %391 = vperm.xlu0 %390, %v108
    %v392 = vpop.permute.xlu0 %391
    %v395 = vlaneseq
    %v396 = vshrl.u32 %v395, 7
    %v397 = vsub.s32 0, %v396
    %v398 = vrot.slane %v389, %v397
    %v399 = vlaneseq
    %v400 = vshrl.u32 %v399, 7
    %v401 = vsub.s32 1, %v400
    %v402 = vrot.slane %v389, %v401
    %v403 = vlaneseq
    %v404 = vshrl.u32 %v403, 7
    %v405 = vsub.s32 2, %v404
    %v406 = vrot.slane %v389, %v405
    %v407 = vlaneseq
    %v408 = vshrl.u32 %v407, 7
    %v409 = vsub.s32 3, %v408
    %v410 = vrot.slane %v389, %v409
    %v415 = vmul.f32 %v392, %v398
    %v416 = vmul.f32 %v392, %v402
    %v417 = vmul.f32 %v392, %v406
    %v418 = vmul.f32 %v392, %v410
    %v419 = vadd.f32 %v384, %v415
    %v420 = vadd.f32 %v385, %v416
    %v421 = vadd.f32 %v386, %v417
    %v422 = vadd.f32 %v387, %v418
    %v423 = vmul.f32 %v419, 0.5
    %v424 = vmul.f32 %v420, 0.5
    %v425 = vmul.f32 %v421, 0.5
    %v426 = vmul.f32 %v422, 0.5
    %v427 = vmul.f32 %v419, %v419
    %v428 = vmul.f32 %v420, %v420
    %v429 = vmul.f32 %v421, %v421
    %v430 = vmul.f32 %v422, %v422
    %v431 = vmul.f32 %v427, %v419
    %v432 = vmul.f32 %v428, %v420
    %v433 = vmul.f32 %v429, %v421
    %v434 = vmul.f32 %v430, %v422
    %v435 = vmul.f32 %v431, 0.044715
    %v436 = vmul.f32 %v432, 0.044715
    %v437 = vmul.f32 %v433, 0.044715
    %v438 = vmul.f32 %v434, 0.044715
    %v439 = vadd.f32 %v419, %v435
    %v440 = vadd.f32 %v420, %v436
    %v441 = vadd.f32 %v421, %v437
    %v442 = vadd.f32 %v422, %v438
    %v443 = vmul.f32 %v439, 0.7978846
    %v444 = vmul.f32 %v440, 0.7978846
    %v445 = vmul.f32 %v441, 0.7978846
    %v446 = vmul.f32 %v442, 0.7978846
    %v447 = vtanh.pop %v443
    %v448 = vtanh.pop %v444
    %v449 = vtanh.pop %v445
    %v450 = vtanh.pop %v446
    %v451 = vadd.f32 %v447, 1.0
    %v452 = vadd.f32 %v448, 1.0
    %v453 = vadd.f32 %v449, 1.0
    %v454 = vadd.f32 %v450, 1.0
    %v455 = vmul.f32 %v423, %v451
    %v456 = vmul.f32 %v424, %v452
    %v457 = vmul.f32 %v425, %v453
    %v458 = vmul.f32 %v426, %v454
    %v459 = vadd.f32 %v455, %v456
    %v460 = vadd.f32 %v459, %v457
    %v461 = vadd.f32 %v460, %v458
    %462 = vadd.xlane.f32.xlu0 %v461
    %v463 = vpop.xlane.xlu0 %462
    %v464 = vrcp.pop 512.0
    %v465 = vmul.f32 %v463, %v464
    %v466 = vmul.f32 %v455, %v455
    %v467 = vmul.f32 %v456, %v456
    %v468 = vmul.f32 %v457, %v457
    %v469 = vmul.f32 %v458, %v458
    %v470 = vadd.f32 %v466, %v467
    %v471 = vadd.f32 %v470, %v468
    %v472 = vadd.f32 %v471, %v469
    %473 = vadd.xlane.f32.xlu0 %v472
    %v474 = vpop.xlane.xlu0 %473
    %v475 = vmul.f32 %v474, %v464
    %v476 = vmul.f32 %v465, %v465
    %v477 = vsub.f32 %v475, %v476
    %v478 = vsub.f32 %v455, %v465
    %v479 = vsub.f32 %v456, %v465
    %v480 = vsub.f32 %v457, %v465
    %v481 = vsub.f32 %v458, %v465
    %v482 = vadd.f32 %v477, 1e-05
    %v483 = vrsqrt.pop %v482
    %v484 = vmul.f32 %v478, %v483
    %v485 = vmul.f32 %v479, %v483
    %v486 = vmul.f32 %v480, %v483
    %v487 = vmul.f32 %v481, %v483
    %v488 = vpack.c.bf16 %v484, %v484
    %v489 = vpack.c.bf16 %v485, %v485
    %v490 = vpack.c.bf16 %v486, %v486
    %v491 = vpack.c.bf16 %v487, %v487
    %v492 = vld [vmem:[#allocation9] sm:$0xf]
    %v493 = vld [vmem:[#allocation9 + $0x18] sm:$0xf]
    %v494 = vld [vmem:[#allocation9 + $0x30] sm:$0xf]
    %v495 = vld [vmem:[#allocation9 + $0x48] sm:$0xf]
    %v496 = vld [vmem:[#allocation9 + $0x60] sm:$0xf]
    %v497 = vld [vmem:[#allocation9 + $0x78] sm:$0xf]
    %v498 = vld [vmem:[#allocation9 + $0x90] sm:$0xf]
    %v499 = vld [vmem:[#allocation9 + $0xa8] sm:$0xf]
    %v500 = vld [vmem:[#allocation9 + $0xc0] sm:$0xf]
    %v501 = vld [vmem:[#allocation9 + $0xd8] sm:$0xf]
    %v502 = vld [vmem:[#allocation9 + $0xf0] sm:$0xf]
    %v503 = vld [vmem:[#allocation9 + $0x108] sm:$0xf]
    %v504 = vld [vmem:[#allocation9 + $0x120] sm:$0xf]
    %v505 = vld [vmem:[#allocation9 + $0x138] sm:$0xf]
    %v506 = vld [vmem:[#allocation9 + $0x150] sm:$0xf]
    %v507 = vld [vmem:[#allocation9 + $0x168] sm:$0xf]
    %v508 = vld [vmem:[#allocation9 + $0x180] sm:$0xf]
    %v509 = vld [vmem:[#allocation9 + $0x198] sm:$0xf]
    %v510 = vld [vmem:[#allocation9 + $0x1b0] sm:$0xf]
    %v511 = vld [vmem:[#allocation9 + $0x1c8] sm:$0xf]
    %v512 = vld [vmem:[#allocation9 + $0x1e0] sm:$0xf]
    %v513 = vld [vmem:[#allocation9 + $0x1f8] sm:$0xf]
    %v514 = vld [vmem:[#allocation9 + $0x210] sm:$0xf]
    %v515 = vld [vmem:[#allocation9 + $0x228] sm:$0xf]
    %v516 = vld [vmem:[#allocation9 + $0x240] sm:$0xf]
    %v517 = vld [vmem:[#allocation9 + $0x258] sm:$0xf]
    %v518 = vld [vmem:[#allocation9 + $0x270] sm:$0xf]
    %v519 = vld [vmem:[#allocation9 + $0x288] sm:$0xf]
    %v520 = vld [vmem:[#allocation9 + $0x2a0] sm:$0xf]
    %v521 = vld [vmem:[#allocation9 + $0x2b8] sm:$0xf]
    %v522 = vld [vmem:[#allocation9 + $0x2d0] sm:$0xf]
    %v523 = vld [vmem:[#allocation9 + $0x2e8] sm:$0xf]
    %v524 = vld [vmem:[#allocation9 + $0x300] sm:$0xf]
    %v525 = vld [vmem:[#allocation9 + $0x318] sm:$0xf]
    %v526 = vld [vmem:[#allocation9 + $0x330] sm:$0xf]
    %v527 = vld [vmem:[#allocation9 + $0x348] sm:$0xf]
    %v528 = vld [vmem:[#allocation9 + $0x360] sm:$0xf]
    %v529 = vld [vmem:[#allocation9 + $0x378] sm:$0xf]
    %v530 = vld [vmem:[#allocation9 + $0x390] sm:$0xf]
    %v531 = vld [vmem:[#allocation9 + $0x3a8] sm:$0xf]
    %v532 = vld [vmem:[#allocation9 + $0x3c0] sm:$0xf]
    %v533 = vld [vmem:[#allocation9 + $0x3d8] sm:$0xf]
    %v534 = vld [vmem:[#allocation9 + $0x3f0] sm:$0xf]
    %v535 = vld [vmem:[#allocation9 + $0x408] sm:$0xf]
    %v536 = vld [vmem:[#allocation9 + $0x420] sm:$0xf]
    %v537 = vld [vmem:[#allocation9 + $0x438] sm:$0xf]
    %v538 = vld [vmem:[#allocation9 + $0x450] sm:$0xf]
    %v539 = vld [vmem:[#allocation9 + $0x468] sm:$0xf]
    %v540 = vld [vmem:[#allocation9 + $0x480] sm:$0xf]
    %v541 = vld [vmem:[#allocation9 + $0x498] sm:$0xf]
    %v542 = vld [vmem:[#allocation9 + $0x4b0] sm:$0xf]
    %v543 = vld [vmem:[#allocation9 + $0x4c8] sm:$0xf]
    %v544 = vld [vmem:[#allocation9 + $0x4e0] sm:$0xf]
    %v545 = vld [vmem:[#allocation9 + $0x4f8] sm:$0xf]
    %v546 = vld [vmem:[#allocation9 + $0x510] sm:$0xf]
    %v547 = vld [vmem:[#allocation9 + $0x528] sm:$0xf]
    %v548 = vld [vmem:[#allocation9 + $0x540] sm:$0xf]
    %v549 = vld [vmem:[#allocation9 + $0x558] sm:$0xf]
    %v550 = vld [vmem:[#allocation9 + $0x570] sm:$0xf]
    %v551 = vld [vmem:[#allocation9 + $0x588] sm:$0xf]
    %v552 = vld [vmem:[#allocation9 + $0x5a0] sm:$0xf]
    %v553 = vld [vmem:[#allocation9 + $0x5b8] sm:$0xf]
    %v554 = vld [vmem:[#allocation9 + $0x5d0] sm:$0xf]
    %v555 = vld [vmem:[#allocation9 + $0x5e8] sm:$0xf]
    %v556 = vld [vmem:[#allocation11] sm:$0x1]
    %v557 = vlaneseq
    %v558 = vshrl.u32 %v557, 7
    %v559 = vsub.s32 0, %v558
    %v560 = vrot.slane %v556, %v559
    %v625 = vunpack.c.l.b16 %v492
    %v626 = vunpack.c.l.b16 %v493
    %v627 = vunpack.c.l.b16 %v494
    %v628 = vunpack.c.l.b16 %v495
    %v629 = vunpack.c.l.b16 %v496
    %v630 = vunpack.c.l.b16 %v497
    %v631 = vunpack.c.l.b16 %v498
    %v632 = vunpack.c.l.b16 %v499
    %v633 = vunpack.c.l.b16 %v500
    %v634 = vunpack.c.l.b16 %v501
    %v635 = vunpack.c.l.b16 %v502
    %v636 = vunpack.c.l.b16 %v503
    %v637 = vunpack.c.l.b16 %v504
    %v638 = vunpack.c.l.b16 %v505
    %v639 = vunpack.c.l.b16 %v506
    %v640 = vunpack.c.l.b16 %v507
    %v641 = vunpack.c.l.b16 %v508
    %v642 = vunpack.c.l.b16 %v509
    %v643 = vunpack.c.l.b16 %v510
    %v644 = vunpack.c.l.b16 %v511
    %v645 = vunpack.c.l.b16 %v512
    %v646 = vunpack.c.l.b16 %v513
    %v647 = vunpack.c.l.b16 %v514
    %v648 = vunpack.c.l.b16 %v515
    %v649 = vunpack.c.l.b16 %v516
    %v650 = vunpack.c.l.b16 %v517
    %v651 = vunpack.c.l.b16 %v518
    %v652 = vunpack.c.l.b16 %v519
    %v653 = vunpack.c.l.b16 %v520
    %v654 = vunpack.c.l.b16 %v521
    %v655 = vunpack.c.l.b16 %v522
    %v656 = vunpack.c.l.b16 %v523
    %v657 = vunpack.c.l.b16 %v524
    %v658 = vunpack.c.l.b16 %v525
    %v659 = vunpack.c.l.b16 %v526
    %v660 = vunpack.c.l.b16 %v527
    %v661 = vunpack.c.l.b16 %v528
    %v662 = vunpack.c.l.b16 %v529
    %v663 = vunpack.c.l.b16 %v530
    %v664 = vunpack.c.l.b16 %v531
    %v665 = vunpack.c.l.b16 %v532
    %v666 = vunpack.c.l.b16 %v533
    %v667 = vunpack.c.l.b16 %v534
    %v668 = vunpack.c.l.b16 %v535
    %v669 = vunpack.c.l.b16 %v536
    %v670 = vunpack.c.l.b16 %v537
    %v671 = vunpack.c.l.b16 %v538
    %v672 = vunpack.c.l.b16 %v539
    %v673 = vunpack.c.l.b16 %v540
    %v674 = vunpack.c.l.b16 %v541
    %v675 = vunpack.c.l.b16 %v542
    %v676 = vunpack.c.l.b16 %v543
    %v677 = vunpack.c.l.b16 %v544
    %v678 = vunpack.c.l.b16 %v545
    %v679 = vunpack.c.l.b16 %v546
    %v680 = vunpack.c.l.b16 %v547
    %v681 = vunpack.c.l.b16 %v548
    %v682 = vunpack.c.l.b16 %v549
    %v683 = vunpack.c.l.b16 %v550
    %v684 = vunpack.c.l.b16 %v551
    %v685 = vunpack.c.l.b16 %v552
    %v686 = vunpack.c.l.b16 %v553
    %v687 = vunpack.c.l.b16 %v554
    %v688 = vunpack.c.l.b16 %v555
    %v689 = vpack.c.b16 %v626, %v625
    %v690 = vpack.c.b16 %v628, %v627
    %v691 = vpack.c.b16 %v630, %v629
    %v692 = vpack.c.b16 %v632, %v631
    %v693 = vpack.c.b16 %v634, %v633
    %v694 = vpack.c.b16 %v636, %v635
    %v695 = vpack.c.b16 %v638, %v637
    %v696 = vpack.c.b16 %v640, %v639
    %v697 = vpack.c.b16 %v642, %v641
    %v698 = vpack.c.b16 %v644, %v643
    %v699 = vpack.c.b16 %v646, %v645
    %v700 = vpack.c.b16 %v648, %v647
    %v701 = vpack.c.b16 %v650, %v649
    %v702 = vpack.c.b16 %v652, %v651
    %v703 = vpack.c.b16 %v654, %v653
    %v704 = vpack.c.b16 %v656, %v655
    %v705 = vpack.c.b16 %v658, %v657
    %v706 = vpack.c.b16 %v660, %v659
    %v707 = vpack.c.b16 %v662, %v661
    %v708 = vpack.c.b16 %v664, %v663
    %v709 = vpack.c.b16 %v666, %v665
    %v710 = vpack.c.b16 %v668, %v667
    %v711 = vpack.c.b16 %v670, %v669
    %v712 = vpack.c.b16 %v672, %v671
    %v713 = vpack.c.b16 %v674, %v673
    %v714 = vpack.c.b16 %v676, %v675
    %v715 = vpack.c.b16 %v678, %v677
    %v716 = vpack.c.b16 %v680, %v679
    %v717 = vpack.c.b16 %v682, %v681
    %v718 = vpack.c.b16 %v684, %v683
    %v719 = vpack.c.b16 %v686, %v685
    %v720 = vpack.c.b16 %v688, %v687
    %753 = vmatprep.subr.bf16.mxu0 0
    %754 = vmatpush1.bf16.msra.mxu0 %v689
    %755 = vmatprep.subr.bf16.mxu0 0
    %756 = vmatpush1.bf16.msra.mxu0 %v690
    %757 = vmatprep.subr.bf16.mxu0 0
    %758 = vmatpush1.bf16.msra.mxu0 %v691
    %759 = vmatprep.subr.bf16.mxu0 0
    %760 = vmatpush1.bf16.msra.mxu0 %v692
    %761 = vmatprep.subr.bf16.mxu0 0
    %762 = vmatpush1.bf16.msra.mxu0 %v693
    %763 = vmatprep.subr.bf16.mxu0 0
    %764 = vmatpush1.bf16.msra.mxu0 %v694
    %765 = vmatprep.subr.bf16.mxu0 0
    %766 = vmatpush1.bf16.msra.mxu0 %v695
    %767 = vmatprep.subr.bf16.mxu0 0
    %768 = vmatpush1.bf16.msra.mxu0 %v696
    %769 = vmatprep.subr.bf16.mxu0 0
    %770 = vmatpush1.bf16.msra.mxu0 %v697
    %771 = vmatprep.subr.bf16.mxu0 0
    %772 = vmatpush1.bf16.msra.mxu0 %v698
    %773 = vmatprep.subr.bf16.mxu0 0
    %774 = vmatpush1.bf16.msra.mxu0 %v699
    %775 = vmatprep.subr.bf16.mxu0 0
    %776 = vmatpush1.bf16.msra.mxu0 %v700
    %777 = vmatprep.subr.bf16.mxu0 0
    %778 = vmatpush1.bf16.msra.mxu0 %v701
    %779 = vmatprep.subr.bf16.mxu0 0
    %780 = vmatpush1.bf16.msra.mxu0 %v702
    %781 = vmatprep.subr.bf16.mxu0 0
    %782 = vmatpush1.bf16.msra.mxu0 %v703
    %783 = vmatprep.subr.bf16.mxu0 0
    %784 = vmatpush1.bf16.msra.mxu0 %v704
    %785 = vmatprep.mubr.bf16.mxu0 %v489
    %786 = vmatmul.mubr.bf16.gmra.mrb[0].mxu0 %v488
    %v787 = vpop.f32.mrb[0].mxu0
    %v788 = vadd.f32 %v560, %v787
    %v789 = vpop.f32.mrb[0].mxu0
    %v790 = vpop.f32.mrb[0].mxu0
    %v791 = vpop.f32.mrb[0].mxu0
    %792 = vdwg.mxu0
    %793 = vmatprep.subr.bf16.mxu0 0
    %794 = vmatpush1.bf16.msra.mxu0 %v705
    %795 = vmatprep.subr.bf16.mxu0 0
    %796 = vmatpush1.bf16.msra.mxu0 %v706
    %797 = vmatprep.subr.bf16.mxu0 0
    %798 = vmatpush1.bf16.msra.mxu0 %v707
    %799 = vmatprep.subr.bf16.mxu0 0
    %800 = vmatpush1.bf16.msra.mxu0 %v708
    %801 = vmatprep.subr.bf16.mxu0 0
    %802 = vmatpush1.bf16.msra.mxu0 %v709
    %803 = vmatprep.subr.bf16.mxu0 0
    %804 = vmatpush1.bf16.msra.mxu0 %v710
    %805 = vmatprep.subr.bf16.mxu0 0
    %806 = vmatpush1.bf16.msra.mxu0 %v711
    %807 = vmatprep.subr.bf16.mxu0 0
    %808 = vmatpush1.bf16.msra.mxu0 %v712
    %809 = vmatprep.subr.bf16.mxu0 0
    %810 = vmatpush1.bf16.msra.mxu0 %v713
    %811 = vmatprep.subr.bf16.mxu0 0
    %812 = vmatpush1.bf16.msra.mxu0 %v714
    %813 = vmatprep.subr.bf16.mxu0 0
    %814 = vmatpush1.bf16.msra.mxu0 %v715
    %815 = vmatprep.subr.bf16.mxu0 0
    %816 = vmatpush1.bf16.msra.mxu0 %v716
    %817 = vmatprep.subr.bf16.mxu0 0
    %818 = vmatpush1.bf16.msra.mxu0 %v717
    %819 = vmatprep.subr.bf16.mxu0 0
    %820 = vmatpush1.bf16.msra.mxu0 %v718
    %821 = vmatprep.subr.bf16.mxu0 0
    %822 = vmatpush1.bf16.msra.mxu0 %v719
    %823 = vmatprep.subr.bf16.mxu0 0
    %824 = vmatpush1.bf16.msra.mxu0 %v720
    %825 = vmatprep.mubr.bf16.mxu0 %v491
    %826 = vmatmul.mubr.bf16.gmra.mrb[0].mxu0 %v490
    %v827 = vpop.f32.mrb[0].mxu0
    %v828 = vadd.f32 %v788, %v827
    %v829 = vpop.f32.mrb[0].mxu0
    %v830 = vpop.f32.mrb[0].mxu0
    %v831 = vpop.f32.mrb[0].mxu0
    %832 = vdwg.mxu0
    %v833 = vld [vmem:[#allocation11 + $0x1] sm:$0x1]
    %v834 = vld [vmem:[#allocation11 + $0x2] sm:$0x1]
    %835 = vadd.xlane.f32.xlu0 %v828
    %v836 = vpop.xlane.xlu0 %835
    %v837 = vrcp.pop 128.0
    %v838 = vmul.f32 %v836, %v837
    %v839 = vmul.f32 %v828, %v828
    %840 = vadd.xlane.f32.xlu0 %v839
    %v841 = vpop.xlane.xlu0 %840
    %v842 = vmul.f32 %v841, %v837
    %v843 = vmul.f32 %v838, %v838
    %v844 = vsub.f32 %v842, %v843
    %v845 = vsub.f32 %v828, %v838
    %v846 = vadd.f32 %v844, 1e-05
    %v847 = vrsqrt.pop %v846
    %v848 = vmul.f32 %v845, %v847
    %v849 = vlaneseq
    %v850 = vshrl.u32 %v849, 7
    %v851 = vsub.s32 0, %v850
    %v852 = vrot.slane %v833, %v851
    %v853 = vmul.f32 %v848, %v852
    %v854 = vlaneseq
    %v855 = vshrl.u32 %v854, 7
    %v856 = vsub.s32 0, %v855
    %v857 = vrot.slane %v834, %v856
    %v858 = vadd.f32 %v853, %v857
    %s859 = scalar_lea.vmem [#allocation12], 4
    %v860 = vld [vmem:[%s859] ss:$8 sm:$0xf]
    %s861 = scalar_lea.vmem [#allocation12], 3
    %v862 = vld [vmem:[%s861] ss:$8 sm:$0xf]
    %863 = vset.pattern.permute.xlu0 2
    %864 = vperm.xlu0 %863, %v108
    %v865 = vpop.permute.xlu0 %864
    %v868 = vlaneseq
    %v869 = vshrl.u32 %v868, 7
    %v870 = vsub.s32 0, %v869
    %v871 = vrot.slane %v862, %v870
    %v872 = vlaneseq
    %v873 = vshrl.u32 %v872, 7
    %v874 = vsub.s32 1, %v873
    %v875 = vrot.slane %v862, %v874
    %v876 = vlaneseq
    %v877 = vshrl.u32 %v876, 7
    %v878 = vsub.s32 2, %v877
    %v879 = vrot.slane %v862, %v878
    %v880 = vlaneseq
    %v881 = vshrl.u32 %v880, 7
    %v882 = vsub.s32 3, %v881
    %v883 = vrot.slane %v862, %v882
    %v888 = vmul.f32 %v865, %v871
    %v889 = vmul.f32 %v865, %v875
    %v890 = vmul.f32 %v865, %v879
    %v891 = vmul.f32 %v865, %v883
    %v893 = vlaneseq
    %v894 = vshrl.u32 %v893, 7
    %v895 = vsub.s32 0, %v894
    %v896 = vrot.slane %v860, %v895
    %v897 = vlaneseq
    %v898 = vshrl.u32 %v897, 7
    %v899 = vsub.s32 1, %v898
    %v900 = vrot.slane %v860, %v899
    %v901 = vlaneseq
    %v902 = vshrl.u32 %v901, 7
    %v903 = vsub.s32 2, %v902
    %v904 = vrot.slane %v860, %v903
    %v905 = vlaneseq
    %v906 = vshrl.u32 %v905, 7
    %v907 = vsub.s32 3, %v906
    %v908 = vrot.slane %v860, %v907
    %v913 = vadd.f32 %v896, %v888
    %v914 = vadd.f32 %v900, %v889
    %v915 = vadd.f32 %v904, %v890
    %v916 = vadd.f32 %v908, %v891
    %v917 = vmul.f32 %v913, 0.5
    %v918 = vmul.f32 %v914, 0.5
    %v919 = vmul.f32 %v915, 0.5
    %v920 = vmul.f32 %v916, 0.5
    %v921 = vmul.f32 %v913, %v913
    %v922 = vmul.f32 %v914, %v914
    %v923 = vmul.f32 %v915, %v915
    %v924 = vmul.f32 %v916, %v916
    %v925 = vmul.f32 %v921, %v913
    %v926 = vmul.f32 %v922, %v914
    %v927 = vmul.f32 %v923, %v915
    %v928 = vmul.f32 %v924, %v916
    %v929 = vmul.f32 %v925, 0.044715
    %v930 = vmul.f32 %v926, 0.044715
    %v931 = vmul.f32 %v927, 0.044715
    %v932 = vmul.f32 %v928, 0.044715
    %v933 = vadd.f32 %v913, %v929
    %v934 = vadd.f32 %v914, %v930
    %v935 = vadd.f32 %v915, %v931
    %v936 = vadd.f32 %v916, %v932
    %v937 = vmul.f32 %v933, 0.7978846
    %v938 = vmul.f32 %v934, 0.7978846
    %v939 = vmul.f32 %v935, 0.7978846
    %v940 = vmul.f32 %v936, 0.7978846
    %v941 = vtanh.pop %v937
    %v942 = vtanh.pop %v938
    %v943 = vtanh.pop %v939
    %v944 = vtanh.pop %v940
    %v945 = vadd.f32 %v941, 1.0
    %v946 = vadd.f32 %v942, 1.0
    %v947 = vadd.f32 %v943, 1.0
    %v948 = vadd.f32 %v944, 1.0
    %v949 = vmul.f32 %v917, %v945
    %v950 = vmul.f32 %v918, %v946
    %v951 = vmul.f32 %v919, %v947
    %v952 = vmul.f32 %v920, %v948
    %v953 = vadd.f32 %v949, %v950
    %v954 = vadd.f32 %v953, %v951
    %v955 = vadd.f32 %v954, %v952
    %956 = vadd.xlane.f32.xlu0 %v955
    %v957 = vpop.xlane.xlu0 %956
    %v958 = vmul.f32 %v957, %v464
    %v959 = vmul.f32 %v949, %v949
    %v960 = vmul.f32 %v950, %v950
    %v961 = vmul.f32 %v951, %v951
    %v962 = vmul.f32 %v952, %v952
    %v963 = vadd.f32 %v959, %v960
    %v964 = vadd.f32 %v963, %v961
    %v965 = vadd.f32 %v964, %v962
    %966 = vadd.xlane.f32.xlu0 %v965
    %v967 = vpop.xlane.xlu0 %966
    %v968 = vmul.f32 %v967, %v464
    %v969 = vmul.f32 %v958, %v958
    %v970 = vsub.f32 %v968, %v969
    %v971 = vsub.f32 %v949, %v958
    %v972 = vsub.f32 %v950, %v958
    %v973 = vsub.f32 %v951, %v958
    %v974 = vsub.f32 %v952, %v958
    %v975 = vadd.f32 %v970, 1e-05
    %v976 = vrsqrt.pop %v975
    %v977 = vmul.f32 %v971, %v976
    %v978 = vmul.f32 %v972, %v976
    %v979 = vmul.f32 %v973, %v976
    %v980 = vmul.f32 %v974, %v976
    %v981 = vpack.c.bf16 %v977, %v977
    %v982 = vpack.c.bf16 %v978, %v978
    %v983 = vpack.c.bf16 %v979, %v979
    %v984 = vpack.c.bf16 %v980, %v980
    %v985 = vld [vmem:[#allocation9 + $0x4] sm:$0xf]
    %v986 = vld [vmem:[#allocation9 + $0x1c] sm:$0xf]
    %v987 = vld [vmem:[#allocation9 + $0x34] sm:$0xf]
    %v988 = vld [vmem:[#allocation9 + $0x4c] sm:$0xf]
    %v989 = vld [vmem:[#allocation9 + $0x64] sm:$0xf]
    %v990 = vld [vmem:[#allocation9 + $0x7c] sm:$0xf]
    %v991 = vld [vmem:[#allocation9 + $0x94] sm:$0xf]
    %v992 = vld [vmem:[#allocation9 + $0xac] sm:$0xf]
    %v993 = vld [vmem:[#allocation9 + $0xc4] sm:$0xf]
    %v994 = vld [vmem:[#allocation9 + $0xdc] sm:$0xf]
    %v995 = vld [vmem:[#allocation9 + $0xf4] sm:$0xf]
    %v996 = vld [vmem:[#allocation9 + $0x10c] sm:$0xf]
    %v997 = vld [vmem:[#allocation9 + $0x124] sm:$0xf]
    %v998 = vld [vmem:[#allocation9 + $0x13c] sm:$0xf]
    %v999 = vld [vmem:[#allocation9 + $0x154] sm:$0xf]
    %v1000 = vld [vmem:[#allocation9 + $0x16c] sm:$0xf]
    %v1001 = vld [vmem:[#allocation9 + $0x184] sm:$0xf]
    %v1002 = vld [vmem:[#allocation9 + $0x19c] sm:$0xf]
    %v1003 = vld [vmem:[#allocation9 + $0x1b4] sm:$0xf]
    %v1004 = vld [vmem:[#allocation9 + $0x1cc] sm:$0xf]
    %v1005 = vld [vmem:[#allocation9 + $0x1e4] sm:$0xf]
    %v1006 = vld [vmem:[#allocation9 + $0x1fc] sm:$0xf]
    %v1007 = vld [vmem:[#allocation9 + $0x214] sm:$0xf]
    %v1008 = vld [vmem:[#allocation9 + $0x22c] sm:$0xf]
    %v1009 = vld [vmem:[#allocation9 + $0x244] sm:$0xf]
    %v1010 = vld [vmem:[#allocation9 + $0x25c] sm:$0xf]
    %v1011 = vld [vmem:[#allocation9 + $0x274] sm:$0xf]
    %v1012 = vld [vmem:[#allocation9 + $0x28c] sm:$0xf]
    %v1013 = vld [vmem:[#allocation9 + $0x2a4] sm:$0xf]
    %v1014 = vld [vmem:[#allocation9 + $0x2bc] sm:$0xf]
    %v1015 = vld [vmem:[#allocation9 + $0x2d4] sm:$0xf]
    %v1016 = vld [vmem:[#allocation9 + $0x2ec] sm:$0xf]
    %v1017 = vld [vmem:[#allocation9 + $0x304] sm:$0xf]
    %v1018 = vld [vmem:[#allocation9 + $0x31c] sm:$0xf]
    %v1019 = vld [vmem:[#allocation9 + $0x334] sm:$0xf]
    %v1020 = vld [vmem:[#allocation9 + $0x34c] sm:$0xf]
    %v1021 = vld [vmem:[#allocation9 + $0x364] sm:$0xf]
    %v1022 = vld [vmem:[#allocation9 + $0x37c] sm:$0xf]
    %v1023 = vld [vmem:[#allocation9 + $0x394] sm:$0xf]
    %v1024 = vld [vmem:[#allocation9 + $0x3ac] sm:$0xf]
    %v1025 = vld [vmem:[#allocation9 + $0x3c4] sm:$0xf]
    %v1026 = vld [vmem:[#allocation9 + $0x3dc] sm:$0xf]
    %v1027 = vld [vmem:[#allocation9 + $0x3f4] sm:$0xf]
    %v1028 = vld [vmem:[#allocation9 + $0x40c] sm:$0xf]
    %v1029 = vld [vmem:[#allocation9 + $0x424] sm:$0xf]
    %v1030 = vld [vmem:[#allocation9 + $0x43c] sm:$0xf]
    %v1031 = vld [vmem:[#allocation9 + $0x454] sm:$0xf]
    %v1032 = vld [vmem:[#allocation9 + $0x46c] sm:$0xf]
    %v1033 = vld [vmem:[#allocation9 + $0x484] sm:$0xf]
    %v1034 = vld [vmem:[#allocation9 + $0x49c] sm:$0xf]
    %v1035 = vld [vmem:[#allocation9 + $0x4b4] sm:$0xf]
    %v1036 = vld [vmem:[#allocation9 + $0x4cc] sm:$0xf]
    %v1037 = vld [vmem:[#allocation9 + $0x4e4] sm:$0xf]
    %v1038 = vld [vmem:[#allocation9 + $0x4fc] sm:$0xf]
    %v1039 = vld [vmem:[#allocation9 + $0x514] sm:$0xf]
    %v1040 = vld [vmem:[#allocation9 + $0x52c] sm:$0xf]
    %v1041 = vld [vmem:[#allocation9 + $0x544] sm:$0xf]
    %v1042 = vld [vmem:[#allocation9 + $0x55c] sm:$0xf]
    %v1043 = vld [vmem:[#allocation9 + $0x574] sm:$0xf]
    %v1044 = vld [vmem:[#allocation9 + $0x58c] sm:$0xf]
    %v1045 = vld [vmem:[#allocation9 + $0x5a4] sm:$0xf]
    %v1046 = vld [vmem:[#allocation9 + $0x5bc] sm:$0xf]
    %v1047 = vld [vmem:[#allocation9 + $0x5d4] sm:$0xf]
    %v1048 = vld [vmem:[#allocation9 + $0x5ec] sm:$0xf]
    %v1049 = vld [vmem:[#allocation11 + $0x3] sm:$0x1]
    %v1050 = vlaneseq
    %v1051 = vshrl.u32 %v1050, 7
    %v1052 = vsub.s32 0, %v1051
    %v1053 = vrot.slane %v1049, %v1052
    %v1118 = vunpack.c.l.b16 %v985
    %v1119 = vunpack.c.l.b16 %v986
    %v1120 = vunpack.c.l.b16 %v987
    %v1121 = vunpack.c.l.b16 %v988
    %v1122 = vunpack.c.l.b16 %v989
    %v1123 = vunpack.c.l.b16 %v990
    %v1124 = vunpack.c.l.b16 %v991
    %v1125 = vunpack.c.l.b16 %v992
    %v1126 = vunpack.c.l.b16 %v993
    %v1127 = vunpack.c.l.b16 %v994
    %v1128 = vunpack.c.l.b16 %v995
    %v1129 = vunpack.c.l.b16 %v996
    %v1130 = vunpack.c.l.b16 %v997
    %v1131 = vunpack.c.l.b16 %v998
    %v1132 = vunpack.c.l.b16 %v999
    %v1133 = vunpack.c.l.b16 %v1000
    %v1134 = vunpack.c.l.b16 %v1001
    %v1135 = vunpack.c.l.b16 %v1002
    %v1136 = vunpack.c.l.b16 %v1003
    %v1137 = vunpack.c.l.b16 %v1004
    %v1138 = vunpack.c.l.b16 %v1005
    %v1139 = vunpack.c.l.b16 %v1006
    %v1140 = vunpack.c.l.b16 %v1007
    %v1141 = vunpack.c.l.b16 %v1008
    %v1142 = vunpack.c.l.b16 %v1009
    %v1143 = vunpack.c.l.b16 %v1010
    %v1144 = vunpack.c.l.b16 %v1011
    %v1145 = vunpack.c.l.b16 %v1012
    %v1146 = vunpack.c.l.b16 %v1013
    %v1147 = vunpack.c.l.b16 %v1014
    %v1148 = vunpack.c.l.b16 %v1015
    %v1149 = vunpack.c.l.b16 %v1016
    %v1150 = vunpack.c.l.b16 %v1017
    %v1151 = vunpack.c.l.b16 %v1018
    %v1152 = vunpack.c.l.b16 %v1019
    %v1153 = vunpack.c.l.b16 %v1020
    %v1154 = vunpack.c.l.b16 %v1021
    %v1155 = vunpack.c.l.b16 %v1022
    %v1156 = vunpack.c.l.b16 %v1023
    %v1157 = vunpack.c.l.b16 %v1024
    %v1158 = vunpack.c.l.b16 %v1025
    %v1159 = vunpack.c.l.b16 %v1026
    %v1160 = vunpack.c.l.b16 %v1027
    %v1161 = vunpack.c.l.b16 %v1028
    %v1162 = vunpack.c.l.b16 %v1029
    %v1163 = vunpack.c.l.b16 %v1030
    %v1164 = vunpack.c.l.b16 %v1031
    %v1165 = vunpack.c.l.b16 %v1032
    %v1166 = vunpack.c.l.b16 %v1033
    %v1167 = vunpack.c.l.b16 %v1034
    %v1168 = vunpack.c.l.b16 %v1035
    %v1169 = vunpack.c.l.b16 %v1036
    %v1170 = vunpack.c.l.b16 %v1037
    %v1171 = vunpack.c.l.b16 %v1038
    %v1172 = vunpack.c.l.b16 %v1039
    %v1173 = vunpack.c.l.b16 %v1040
    %v1174 = vunpack.c.l.b16 %v1041
    %v1175 = vunpack.c.l.b16 %v1042
    %v1176 = vunpack.c.l.b16 %v1043
    %v1177 = vunpack.c.l.b16 %v1044
    %v1178 = vunpack.c.l.b16 %v1045
    %v1179 = vunpack.c.l.b16 %v1046
    %v1180 = vunpack.c.l.b16 %v1047
    %v1181 = vunpack.c.l.b16 %v1048
    %v1182 = vpack.c.b16 %v1119, %v1118
    %v1183 = vpack.c.b16 %v1121, %v1120
    %v1184 = vpack.c.b16 %v1123, %v1122
    %v1185 = vpack.c.b16 %v1125, %v1124
    %v1186 = vpack.c.b16 %v1127, %v1126
    %v1187 = vpack.c.b16 %v1129, %v1128
    %v1188 = vpack.c.b16 %v1131, %v1130
    %v1189 = vpack.c.b16 %v1133, %v1132
    %v1190 = vpack.c.b16 %v1135, %v1134
    %v1191 = vpack.c.b16 %v1137, %v1136
    %v1192 = vpack.c.b16 %v1139, %v1138
    %v1193 = vpack.c.b16 %v1141, %v1140
    %v1194 = vpack.c.b16 %v1143, %v1142
    %v1195 = vpack.c.b16 %v1145, %v1144
    %v1196 = vpack.c.b16 %v1147, %v1146
    %v1197 = vpack.c.b16 %v1149, %v1148
    %v1198 = vpack.c.b16 %v1151, %v1150
    %v1199 = vpack.c.b16 %v1153, %v1152
    %v1200 = vpack.c.b16 %v1155, %v1154
    %v1201 = vpack.c.b16 %v1157, %v1156
    %v1202 = vpack.c.b16 %v1159, %v1158
    %v1203 = vpack.c.b16 %v1161, %v1160
    %v1204 = vpack.c.b16 %v1163, %v1162
    %v1205 = vpack.c.b16 %v1165, %v1164
    %v1206 = vpack.c.b16 %v1167, %v1166
    %v1207 = vpack.c.b16 %v1169, %v1168
    %v1208 = vpack.c.b16 %v1171, %v1170
    %v1209 = vpack.c.b16 %v1173, %v1172
    %v1210 = vpack.c.b16 %v1175, %v1174
    %v1211 = vpack.c.b16 %v1177, %v1176
    %v1212 = vpack.c.b16 %v1179, %v1178
    %v1213 = vpack.c.b16 %v1181, %v1180
    %1246 = vmatprep.subr.bf16.mxu0 0
    %1247 = vmatpush1.bf16.msra.mxu0 %v1182
    %1248 = vmatprep.subr.bf16.mxu0 0
    %1249 = vmatpush1.bf16.msra.mxu0 %v1183
    %1250 = vmatprep.subr.bf16.mxu0 0
    %1251 = vmatpush1.bf16.msra.mxu0 %v1184
    %1252 = vmatprep.subr.bf16.mxu0 0
    %1253 = vmatpush1.bf16.msra.mxu0 %v1185
    %1254 = vmatprep.subr.bf16.mxu0 0
    %1255 = vmatpush1.bf16.msra.mxu0 %v1186
    %1256 = vmatprep.subr.bf16.mxu0 0
    %1257 = vmatpush1.bf16.msra.mxu0 %v1187
    %1258 = vmatprep.subr.bf16.mxu0 0
    %1259 = vmatpush1.bf16.msra.mxu0 %v1188
    %1260 = vmatprep.subr.bf16.mxu0 0
    %1261 = vmatpush1.bf16.msra.mxu0 %v1189
    %1262 = vmatprep.subr.bf16.mxu0 0
    %1263 = vmatpush1.bf16.msra.mxu0 %v1190
    %1264 = vmatprep.subr.bf16.mxu0 0
    %1265 = vmatpush1.bf16.msra.mxu0 %v1191
    %1266 = vmatprep.subr.bf16.mxu0 0
    %1267 = vmatpush1.bf16.msra.mxu0 %v1192
    %1268 = vmatprep.subr.bf16.mxu0 0
    %1269 = vmatpush1.bf16.msra.mxu0 %v1193
    %1270 = vmatprep.subr.bf16.mxu0 0
    %1271 = vmatpush1.bf16.msra.mxu0 %v1194
    %1272 = vmatprep.subr.bf16.mxu0 0
    %1273 = vmatpush1.bf16.msra.mxu0 %v1195
    %1274 = vmatprep.subr.bf16.mxu0 0
    %1275 = vmatpush1.bf16.msra.mxu0 %v1196
    %1276 = vmatprep.subr.bf16.mxu0 0
    %1277 = vmatpush1.bf16.msra.mxu0 %v1197
    %1278 = vmatprep.mubr.bf16.mxu0 %v982
    %1279 = vmatmul.mubr.bf16.gmra.mrb[0].mxu0 %v981
    %v1280 = vpop.f32.mrb[0].mxu0
    %v1281 = vadd.f32 %v1053, %v1280
    %v1282 = vpop.f32.mrb[0].mxu0
    %v1283 = vpop.f32.mrb[0].mxu0
    %v1284 = vpop.f32.mrb[0].mxu0
    %1285 = vdwg.mxu0
    %1286 = vmatprep.subr.bf16.mxu0 0
    %1287 = vmatpush1.bf16.msra.mxu0 %v1198
    %1288 = vmatprep.subr.bf16.mxu0 0
    %1289 = vmatpush1.bf16.msra.mxu0 %v1199
    %1290 = vmatprep.subr.bf16.mxu0 0
    %1291 = vmatpush1.bf16.msra.mxu0 %v1200
    %1292 = vmatprep.subr.bf16.mxu0 0
    %1293 = vmatpush1.bf16.msra.mxu0 %v1201
    %1294 = vmatprep.subr.bf16.mxu0 0
    %1295 = vmatpush1.bf16.msra.mxu0 %v1202
    %1296 = vmatprep.subr.bf16.mxu0 0
    %1297 = vmatpush1.bf16.msra.mxu0 %v1203
    %1298 = vmatprep.subr.bf16.mxu0 0
    %1299 = vmatpush1.bf16.msra.mxu0 %v1204
    %1300 = vmatprep.subr.bf16.mxu0 0
    %1301 = vmatpush1.bf16.msra.mxu0 %v1205
    %1302 = vmatprep.subr.bf16.mxu0 0
    %1303 = vmatpush1.bf16.msra.mxu0 %v1206
    %1304 = vmatprep.subr.bf16.mxu0 0
    %1305 = vmatpush1.bf16.msra.mxu0 %v1207
    %1306 = vmatprep.subr.bf16.mxu0 0
    %1307 = vmatpush1.bf16.msra.mxu0 %v1208
    %1308 = vmatprep.subr.bf16.mxu0 0
    %1309 = vmatpush1.bf16.msra.mxu0 %v1209
    %1310 = vmatprep.subr.bf16.mxu0 0
    %1311 = vmatpush1.bf16.msra.mxu0 %v1210
    %1312 = vmatprep.subr.bf16.mxu0 0
    %1313 = vmatpush1.bf16.msra.mxu0 %v1211
    %1314 = vmatprep.subr.bf16.mxu0 0
    %1315 = vmatpush1.bf16.msra.mxu0 %v1212
    %1316 = vmatprep.subr.bf16.mxu0 0
    %1317 = vmatpush1.bf16.msra.mxu0 %v1213
    %1318 = vmatprep.mubr.bf16.mxu0 %v984
    %1319 = vmatmul.mubr.bf16.gmra.mrb[0].mxu0 %v983
    %v1320 = vpop.f32.mrb[0].mxu0
    %v1321 = vadd.f32 %v1281, %v1320
    %v1322 = vpop.f32.mrb[0].mxu0
    %v1323 = vpop.f32.mrb[0].mxu0
    %v1324 = vpop.f32.mrb[0].mxu0
    %1325 = vdwg.mxu0
    %v1326 = vld [vmem:[#allocation11 + $0x4] sm:$0x1]
    %v1327 = vld [vmem:[#allocation11 + $0x5] sm:$0x1]
    %1328 = vadd.xlane.f32.xlu0 %v1321
    %v1329 = vpop.xlane.xlu0 %1328
    %v1330 = vmul.f32 %v1329, %v837
    %v1331 = vmul.f32 %v1321, %v1321
    %1332 = vadd.xlane.f32.xlu0 %v1331
    %v1333 = vpop.xlane.xlu0 %1332
    %v1334 = vmul.f32 %v1333, %v837
    %v1335 = vmul.f32 %v1330, %v1330
    %v1336 = vsub.f32 %v1334, %v1335
    %v1337 = vsub.f32 %v1321, %v1330
    %v1338 = vadd.f32 %v1336, 1e-05
    %v1339 = vrsqrt.pop %v1338
    %v1340 = vmul.f32 %v1337, %v1339
    %v1341 = vlaneseq
    %v1342 = vshrl.u32 %v1341, 7
    %v1343 = vsub.s32 0, %v1342
    %v1344 = vrot.slane %v1326, %v1343
    %v1345 = vmul.f32 %v1340, %v1344
    %v1346 = vlaneseq
    %v1347 = vshrl.u32 %v1346, 7
    %v1348 = vsub.s32 0, %v1347
    %v1349 = vrot.slane %v1327, %v1348
    %v1350 = vadd.f32 %v1345, %v1349
    %v1351 = vpack.c.bf16 %v858, %v858
    %v1352 = vld [vmem:[#allocation6] sm:$0xf]
    %v1353 = vld [vmem:[#allocation6 + $0x38] sm:$0xf]
    %v1354 = vld [vmem:[#allocation6 + $0x70] sm:$0xf]
    %v1355 = vld [vmem:[#allocation6 + $0xa8] sm:$0xf]
    %v1356 = vld [vmem:[#allocation6 + $0xe0] sm:$0xf]
    %v1357 = vld [vmem:[#allocation6 + $0x118] sm:$0xf]
    %v1358 = vld [vmem:[#allocation6 + $0x150] sm:$0xf]
    %v1359 = vld [vmem:[#allocation6 + $0x188] sm:$0xf]
    %v1360 = vld [vmem:[#allocation6 + $0x1c0] sm:$0xf]
    %v1361 = vld [vmem:[#allocation6 + $0x1f8] sm:$0xf]
    %v1362 = vld [vmem:[#allocation6 + $0x230] sm:$0xf]
    %v1363 = vld [vmem:[#allocation6 + $0x268] sm:$0xf]
    %v1364 = vld [vmem:[#allocation6 + $0x2a0] sm:$0xf]
    %v1365 = vld [vmem:[#allocation6 + $0x2d8] sm:$0xf]
    %v1366 = vld [vmem:[#allocation6 + $0x310] sm:$0xf]
    %v1367 = vld [vmem:[#allocation6 + $0x348] sm:$0xf]
    %v1368 = vld [vmem:[#allocation11 + $0x6] sm:$0x1]
    %v1369 = vlaneseq
    %v1370 = vshrl.u32 %v1369, 7
    %v1371 = vsub.s32 0, %v1370
    %v1372 = vrot.slane %v1368, %v1371
    %v1389 = vunpack.c.l.b16 %v1352
    %v1390 = vunpack.c.l.b16 %v1353
    %v1391 = vunpack.c.l.b16 %v1354
    %v1392 = vunpack.c.l.b16 %v1355
    %v1393 = vunpack.c.l.b16 %v1356
    %v1394 = vunpack.c.l.b16 %v1357
    %v1395 = vunpack.c.l.b16 %v1358
    %v1396 = vunpack.c.l.b16 %v1359
    %v1397 = vunpack.c.l.b16 %v1360
    %v1398 = vunpack.c.l.b16 %v1361
    %v1399 = vunpack.c.l.b16 %v1362
    %v1400 = vunpack.c.l.b16 %v1363
    %v1401 = vunpack.c.l.b16 %v1364
    %v1402 = vunpack.c.l.b16 %v1365
    %v1403 = vunpack.c.l.b16 %v1366
    %v1404 = vunpack.c.l.b16 %v1367
    %v1405 = vpack.c.b16 %v1390, %v1389
    %v1406 = vpack.c.b16 %v1392, %v1391
    %v1407 = vpack.c.b16 %v1394, %v1393
    %v1408 = vpack.c.b16 %v1396, %v1395
    %v1409 = vpack.c.b16 %v1398, %v1397
    %v1410 = vpack.c.b16 %v1400, %v1399
    %v1411 = vpack.c.b16 %v1402, %v1401
    %v1412 = vpack.c.b16 %v1404, %v1403
    %1421 = vmatprep.subr.bf16.mxu0 0
    %1422 = vmatpush1.bf16.msra.mxu0 %v1405
    %1423 = vmatprep.subr.bf16.mxu0 0
    %1424 = vmatpush1.bf16.msra.mxu0 %v1406
    %1425 = vmatprep.subr.bf16.mxu0 0
    %1426 = vmatpush1.bf16.msra.mxu0 %v1407
    %1427 = vmatprep.subr.bf16.mxu0 0
    %1428 = vmatpush1.bf16.msra.mxu0 %v1408
    %1429 = vmatprep.subr.bf16.mxu0 0
    %1430 = vmatpush1.bf16.msra.mxu0 %v1409
    %1431 = vmatprep.subr.bf16.mxu0 0
    %1432 = vmatpush1.bf16.msra.mxu0 %v1410
    %1433 = vmatprep.subr.bf16.mxu0 0
    %1434 = vmatpush1.bf16.msra.mxu0 %v1411
    %1435 = vmatprep.subr.bf16.mxu0 0
    %1436 = vmatpush1.bf16.msra.mxu0 %v1412
    %1437 = vmatprep.subr.bf16.mxu0 0
    %1438 = vmatpush1.bf16.msra.mxu0 0
    %1439 = vmatprep.subr.bf16.mxu0 0
    %1440 = vmatpush1.bf16.msra.mxu0 0
    %1441 = vmatprep.subr.bf16.mxu0 0
    %1442 = vmatpush1.bf16.msra.mxu0 0
    %1443 = vmatprep.subr.bf16.mxu0 0
    %1444 = vmatpush1.bf16.msra.mxu0 0
    %1445 = vmatprep.subr.bf16.mxu0 0
    %1446 = vmatpush1.bf16.msra.mxu0 0
    %1447 = vmatprep.subr.bf16.mxu0 0
    %1448 = vmatpush1.bf16.msra.mxu0 0
    %1449 = vmatprep.subr.bf16.mxu0 0
    %1450 = vmatpush1.bf16.msra.mxu0 0
    %1451 = vmatprep.subr.bf16.mxu0 0
    %1452 = vmatpush1.bf16.msra.mxu0 0
    %1453 = vmatprep.mubr.bf16.mxu0 0
    %1454 = vmatmul.mubr.bf16.gmra.mrb[0].mxu0 %v1351
    %v1455 = vpop.f32.mrb[0].mxu0
    %v1456 = vadd.f32 %v1372, %v1455
    %v1457 = vpop.f32.mrb[0].mxu0
    %v1458 = vpop.f32.mrb[0].mxu0
    %v1459 = vpop.f32.mrb[0].mxu0
    %1460 = vdwg.mxu0
    %v1461 = vpack.c.bf16 %v1456, %v1456
    %v1462 = vld [vmem:[#allocation6 + $0x4] sm:$0xf]
    %v1463 = vld [vmem:[#allocation6 + $0x3c] sm:$0xf]
    %v1464 = vld [vmem:[#allocation6 + $0x74] sm:$0xf]
    %v1465 = vld [vmem:[#allocation6 + $0xac] sm:$0xf]
    %v1466 = vld [vmem:[#allocation6 + $0xe4] sm:$0xf]
    %v1467 = vld [vmem:[#allocation6 + $0x11c] sm:$0xf]
    %v1468 = vld [vmem:[#allocation6 + $0x154] sm:$0xf]
    %v1469 = vld [vmem:[#allocation6 + $0x18c] sm:$0xf]
    %v1470 = vld [vmem:[#allocation6 + $0x1c4] sm:$0xf]
    %v1471 = vld [vmem:[#allocation6 + $0x1fc] sm:$0xf]
    %v1472 = vld [vmem:[#allocation6 + $0x234] sm:$0xf]
    %v1473 = vld [vmem:[#allocation6 + $0x26c] sm:$0xf]
    %v1474 = vld [vmem:[#allocation6 + $0x2a4] sm:$0xf]
    %v1475 = vld [vmem:[#allocation6 + $0x2dc] sm:$0xf]
    %v1476 = vld [vmem:[#allocation6 + $0x314] sm:$0xf]
    %v1477 = vld [vmem:[#allocation6 + $0x34c] sm:$0xf]
    %v1478 = vld [vmem:[#allocation11 + $0x7] sm:$0x1]
    %v1479 = vlaneseq
    %v1480 = vshrl.u32 %v1479, 7
    %v1481 = vsub.s32 0, %v1480
    %v1482 = vrot.slane %v1478, %v1481
    %v1499 = vunpack.c.l.b16 %v1462
    %v1500 = vunpack.c.l.b16 %v1463
    %v1501 = vunpack.c.l.b16 %v1464
    %v1502 = vunpack.c.l.b16 %v1465
    %v1503 = vunpack.c.l.b16 %v1466
    %v1504 = vunpack.c.l.b16 %v1467
    %v1505 = vunpack.c.l.b16 %v1468
    %v1506 = vunpack.c.l.b16 %v1469
    %v1507 = vunpack.c.l.b16 %v1470
    %v1508 = vunpack.c.l.b16 %v1471
    %v1509 = vunpack.c.l.b16 %v1472
    %v1510 = vunpack.c.l.b16 %v1473
    %v1511 = vunpack.c.l.b16 %v1474
    %v1512 = vunpack.c.l.b16 %v1475
    %v1513 = vunpack.c.l.b16 %v1476
    %v1514 = vunpack.c.l.b16 %v1477
    %v1515 = vpack.c.b16 %v1500, %v1499
    %v1516 = vpack.c.b16 %v1502, %v1501
    %v1517 = vpack.c.b16 %v1504, %v1503
    %v1518 = vpack.c.b16 %v1506, %v1505
    %v1519 = vpack.c.b16 %v1508, %v1507
    %v1520 = vpack.c.b16 %v1510, %v1509
    %v1521 = vpack.c.b16 %v1512, %v1511
    %v1522 = vpack.c.b16 %v1514, %v1513
    %1531 = vmatprep.subr.bf16.mxu0 0
    %1532 = vmatpush1.bf16.msra.mxu0 %v1515
    %1533 = vmatprep.subr.bf16.mxu0 0
    %1534 = vmatpush1.bf16.msra.mxu0 %v1516
    %1535 = vmatprep.subr.bf16.mxu0 0
    %1536 = vmatpush1.bf16.msra.mxu0 %v1517
    %1537 = vmatprep.subr.bf16.mxu0 0
    %1538 = vmatpush1.bf16.msra.mxu0 %v1518
    %1539 = vmatprep.subr.bf16.mxu0 0
    %1540 = vmatpush1.bf16.msra.mxu0 %v1519
    %1541 = vmatprep.subr.bf16.mxu0 0
    %1542 = vmatpush1.bf16.msra.mxu0 %v1520
    %1543 = vmatprep.subr.bf16.mxu0 0
    %1544 = vmatpush1.bf16.msra.mxu0 %v1521
    %1545 = vmatprep.subr.bf16.mxu0 0
    %1546 = vmatpush1.bf16.msra.mxu0 %v1522
    %1547 = vmatprep.subr.bf16.mxu0 0
    %1548 = vmatpush1.bf16.msra.mxu0 0
    %1549 = vmatprep.subr.bf16.mxu0 0
    %1550 = vmatpush1.bf16.msra.mxu0 0
    %1551 = vmatprep.subr.bf16.mxu0 0
    %1552 = vmatpush1.bf16.msra.mxu0 0
    %1553 = vmatprep.subr.bf16.mxu0 0
    %1554 = vmatpush1.bf16.msra.mxu0 0
    %1555 = vmatprep.subr.bf16.mxu0 0
    %1556 = vmatpush1.bf16.msra.mxu0 0
    %1557 = vmatprep.subr.bf16.mxu0 0
    %1558 = vmatpush1.bf16.msra.mxu0 0
    %1559 = vmatprep.subr.bf16.mxu0 0
    %1560 = vmatpush1.bf16.msra.mxu0 0
    %1561 = vmatprep.subr.bf16.mxu0 0
    %1562 = vmatpush1.bf16.msra.mxu0 0
    %1563 = vmatprep.mubr.bf16.mxu0 0
    %1564 = vmatmul.mubr.bf16.gmra.mrb[0].mxu0 %v1461
    %v1565 = vpop.f32.mrb[0].mxu0
    %v1566 = vadd.f32 %v1482, %v1565
    %v1567 = vpop.f32.mrb[0].mxu0
    %v1568 = vpop.f32.mrb[0].mxu0
    %v1569 = vpop.f32.mrb[0].mxu0
    %1570 = vdwg.mxu0
    %v1571 = vadd.f32 %v1350, %v1566
    %v1572 = vld [vmem:[#allocation11 + $0x8] sm:$0x1]
    %v1573 = vld [vmem:[#allocation11 + $0x9] sm:$0x1]
    %1574 = vadd.xlane.f32.xlu0 %v1571
    %v1575 = vpop.xlane.xlu0 %1574
    %v1576 = vmul.f32 %v1575, %v837
    %v1577 = vmul.f32 %v1571, %v1571
    %1578 = vadd.xlane.f32.xlu0 %v1577
    %v1579 = vpop.xlane.xlu0 %1578
    %v1580 = vmul.f32 %v1579, %v837
    %v1581 = vmul.f32 %v1576, %v1576
    %v1582 = vsub.f32 %v1580, %v1581
    %v1583 = vsub.f32 %v1571, %v1576
    %v1584 = vadd.f32 %v1582, 1e-05
    %v1585 = vrsqrt.pop %v1584
    %v1586 = vmul.f32 %v1583, %v1585
    %v1587 = vlaneseq
    %v1588 = vshrl.u32 %v1587, 7
    %v1589 = vsub.s32 0, %v1588
    %v1590 = vrot.slane %v1572, %v1589
    %v1591 = vmul.f32 %v1586, %v1590
    %v1592 = vlaneseq
    %v1593 = vshrl.u32 %v1592, 7
    %v1594 = vsub.s32 0, %v1593
    %v1595 = vrot.slane %v1573, %v1594
    %v1596 = vadd.f32 %v1591, %v1595
    %v1597 = vpack.c.bf16 %v1596, %v1596
    %v1598 = vld [vmem:[#allocation6 + $0x8] sm:$0xff]
    %v1599 = vld [vmem:[#allocation6 + $0x10] sm:$0xff]
    %v1600 = vld [vmem:[#allocation6 + $0x40] sm:$0xff]
    %v1601 = vld [vmem:[#allocation6 + $0x48] sm:$0xff]
    %v1602 = vld [vmem:[#allocation6 + $0x78] sm:$0xff]
    %v1603 = vld [vmem:[#allocation6 + $0x80] sm:$0xff]
    %v1604 = vld [vmem:[#allocation6 + $0xb0] sm:$0xff]
    %v1605 = vld [vmem:[#allocation6 + $0xb8] sm:$0xff]
    %v1606 = vld [vmem:[#allocation6 + $0xe8] sm:$0xff]
    %v1607 = vld [vmem:[#allocation6 + $0xf0] sm:$0xff]
    %v1608 = vld [vmem:[#allocation6 + $0x120] sm:$0xff]
    %v1609 = vld [vmem:[#allocation6 + $0x128] sm:$0xff]
    %v1610 = vld [vmem:[#allocation6 + $0x158] sm:$0xff]
    %v1611 = vld [vmem:[#allocation6 + $0x160] sm:$0xff]
    %v1612 = vld [vmem:[#allocation6 + $0x190] sm:$0xff]
    %v1613 = vld [vmem:[#allocation6 + $0x198] sm:$0xff]
    %v1614 = vld [vmem:[#allocation6 + $0x1c8] sm:$0xff]
    %v1615 = vld [vmem:[#allocation6 + $0x1d0] sm:$0xff]
    %v1616 = vld [vmem:[#allocation6 + $0x200] sm:$0xff]
    %v1617 = vld [vmem:[#allocation6 + $0x208] sm:$0xff]
    %v1618 = vld [vmem:[#allocation6 + $0x238] sm:$0xff]
    %v1619 = vld [vmem:[#allocation6 + $0x240] sm:$0xff]
    %v1620 = vld [vmem:[#allocation6 + $0x270] sm:$0xff]
    %v1621 = vld [vmem:[#allocation6 + $0x278] sm:$0xff]
    %v1622 = vld [vmem:[#allocation6 + $0x2a8] sm:$0xff]
    %v1623 = vld [vmem:[#allocation6 + $0x2b0] sm:$0xff]
    %v1624 = vld [vmem:[#allocation6 + $0x2e0] sm:$0xff]
    %v1625 = vld [vmem:[#allocation6 + $0x2e8] sm:$0xff]
    %v1626 = vld [vmem:[#allocation6 + $0x318] sm:$0xff]
    %v1627 = vld [vmem:[#allocation6 + $0x320] sm:$0xff]
    %v1628 = vld [vmem:[#allocation6 + $0x350] sm:$0xff]
    %v1629 = vld [vmem:[#allocation6 + $0x358] sm:$0xff]
    %s1630 = scalar_lea.vmem [#allocation12], 5
    %v1631 = vld [vmem:[%s1630] ss:$8 sm:$0xf]
    %v1633 = vlaneseq
    %v1634 = vshrl.u32 %v1633, 7
    %v1635 = vsub.s32 0, %v1634
    %v1636 = vrot.slane %v1631, %v1635
    %v1637 = vlaneseq
    %v1638 = vshrl.u32 %v1637, 7
    %v1639 = vsub.s32 1, %v1638
    %v1640 = vrot.slane %v1631, %v1639
    %v1641 = vlaneseq
    %v1642 = vshrl.u32 %v1641, 7
    %v1643 = vsub.s32 2, %v1642
    %v1644 = vrot.slane %v1631, %v1643
    %v1645 = vlaneseq
    %v1646 = vshrl.u32 %v1645, 7
    %v1647 = vsub.s32 3, %v1646
    %v1648 = vrot.slane %v1631, %v1647
    %v1685 = vunpack.c.l.b16 %v1598
    %v1686 = vunpack.c.h.b16 %v1598
    %v1687 = vunpack.c.l.b16 %v1599
    %v1688 = vunpack.c.h.b16 %v1599
    %v1689 = vunpack.c.l.b16 %v1600
    %v1690 = vunpack.c.h.b16 %v1600
    %v1691 = vunpack.c.l.b16 %v1601
    %v1692 = vunpack.c.h.b16 %v1601
    %v1693 = vunpack.c.l.b16 %v1602
    %v1694 = vunpack.c.h.b16 %v1602
    %v1695 = vunpack.c.l.b16 %v1603
    %v1696 = vunpack.c.h.b16 %v1603
    %v1697 = vunpack.c.l.b16 %v1604
    %v1698 = vunpack.c.h.b16 %v1604
    %v1699 = vunpack.c.l.b16 %v1605
    %v1700 = vunpack.c.h.b16 %v1605
    %v1701 = vunpack.c.l.b16 %v1606
    %v1702 = vunpack.c.h.b16 %v1606
    %v1703 = vunpack.c.l.b16 %v1607
    %v1704 = vunpack.c.h.b16 %v1607
    %v1705 = vunpack.c.l.b16 %v1608
    %v1706 = vunpack.c.h.b16 %v1608
    %v1707 = vunpack.c.l.b16 %v1609
    %v1708 = vunpack.c.h.b16 %v1609
    %v1709 = vunpack.c.l.b16 %v1610
    %v1710 = vunpack.c.h.b16 %v1610
    %v1711 = vunpack.c.l.b16 %v1611
    %v1712 = vunpack.c.h.b16 %v1611
    %v1713 = vunpack.c.l.b16 %v1612
    %v1714 = vunpack.c.h.b16 %v1612
    %v1715 = vunpack.c.l.b16 %v1613
    %v1716 = vunpack.c.h.b16 %v1613
    %v1717 = vunpack.c.l.b16 %v1614
    %v1718 = vunpack.c.h.b16 %v1614
    %v1719 = vunpack.c.l.b16 %v1615
    %v1720 = vunpack.c.h.b16 %v1615
    %v1721 = vunpack.c.l.b16 %v1616
    %v1722 = vunpack.c.h.b16 %v1616
    %v1723 = vunpack.c.l.b16 %v1617
    %v1724 = vunpack.c.h.b16 %v1617
    %v1725 = vunpack.c.l.b16 %v1618
    %v1726 = vunpack.c.h.b16 %v1618
    %v1727 = vunpack.c.l.b16 %v1619
    %v1728 = vunpack.c.h.b16 %v1619
    %v1729 = vunpack.c.l.b16 %v1620
    %v1730 = vunpack.c.h.b16 %v1620
    %v1731 = vunpack.c.l.b16 %v1621
    %v1732 = vunpack.c.h.b16 %v1621
    %v1733 = vunpack.c.l.b16 %v1622
    %v1734 = vunpack.c.h.b16 %v1622
    %v1735 = vunpack.c.l.b16 %v1623
    %v1736 = vunpack.c.h.b16 %v1623
    %v1737 = vunpack.c.l.b16 %v1624
    %v1738 = vunpack.c.h.b16 %v1624
    %v1739 = vunpack.c.l.b16 %v1625
    %v1740 = vunpack.c.h.b16 %v1625
    %v1741 = vunpack.c.l.b16 %v1626
    %v1742 = vunpack.c.h.b16 %v1626
    %v1743 = vunpack.c.l.b16 %v1627
    %v1744 = vunpack.c.h.b16 %v1627
    %v1745 = vunpack.c.l.b16 %v1628
    %v1746 = vunpack.c.h.b16 %v1628
    %v1747 = vunpack.c.l.b16 %v1629
    %v1748 = vunpack.c.h.b16 %v1629
    %v1749 = vpack.c.b16 %v1689, %v1685
    %v1750 = vpack.c.b16 %v1690, %v1686
    %v1751 = vpack.c.b16 %v1691, %v1687
    %v1752 = vpack.c.b16 %v1692, %v1688
    %v1753 = vpack.c.b16 %v1697, %v1693
    %v1754 = vpack.c.b16 %v1698, %v1694
    %v1755 = vpack.c.b16 %v1699, %v1695
    %v1756 = vpack.c.b16 %v1700, %v1696
    %v1757 = vpack.c.b16 %v1705, %v1701
    %v1758 = vpack.c.b16 %v1706, %v1702
    %v1759 = vpack.c.b16 %v1707, %v1703
    %v1760 = vpack.c.b16 %v1708, %v1704
    %v1761 = vpack.c.b16 %v1713, %v1709
    %v1762 = vpack.c.b16 %v1714, %v1710
    %v1763 = vpack.c.b16 %v1715, %v1711
    %v1764 = vpack.c.b16 %v1716, %v1712
    %v1765 = vpack.c.b16 %v1721, %v1717
    %v1766 = vpack.c.b16 %v1722, %v1718
    %v1767 = vpack.c.b16 %v1723, %v1719
    %v1768 = vpack.c.b16 %v1724, %v1720
    %v1769 = vpack.c.b16 %v1729, %v1725
    %v1770 = vpack.c.b16 %v1730, %v1726
    %v1771 = vpack.c.b16 %v1731, %v1727
    %v1772 = vpack.c.b16 %v1732, %v1728
    %v1773 = vpack.c.b16 %v1737, %v1733
    %v1774 = vpack.c.b16 %v1738, %v1734
    %v1775 = vpack.c.b16 %v1739, %v1735
    %v1776 = vpack.c.b16 %v1740, %v1736
    %v1777 = vpack.c.b16 %v1745, %v1741
    %v1778 = vpack.c.b16 %v1746, %v1742
    %v1779 = vpack.c.b16 %v1747, %v1743
    %v1780 = vpack.c.b16 %v1748, %v1744
    %1813 = vmatprep.subr.bf16.mxu0 %v1750
    %1814 = vmatpush1.bf16.msra.mxu0 %v1749
    %1815 = vmatprep.subr.bf16.mxu0 %v1754
    %1816 = vmatpush1.bf16.msra.mxu0 %v1753
    %1817 = vmatprep.subr.bf16.mxu0 %v1758
    %1818 = vmatpush1.bf16.msra.mxu0 %v1757
    %1819 = vmatprep.subr.bf16.mxu0 %v1762
    %1820 = vmatpush1.bf16.msra.mxu0 %v1761
    %1821 = vmatprep.subr.bf16.mxu0 %v1766
    %1822 = vmatpush1.bf16.msra.mxu0 %v1765
    %1823 = vmatprep.subr.bf16.mxu0 %v1770
    %1824 = vmatpush1.bf16.msra.mxu0 %v1769
    %1825 = vmatprep.subr.bf16.mxu0 %v1774
    %1826 = vmatpush1.bf16.msra.mxu0 %v1773
    %1827 = vmatprep.subr.bf16.mxu0 %v1778
    %1828 = vmatpush1.bf16.msra.mxu0 %v1777
    %1829 = vmatprep.subr.bf16.mxu0 0
    %1830 = vmatpush1.bf16.msra.mxu0 0
    %1831 = vmatprep.subr.bf16.mxu0 0
    %1832 = vmatpush1.bf16.msra.mxu0 0
    %1833 = vmatprep.subr.bf16.mxu0 0
    %1834 = vmatpush1.bf16.msra.mxu0 0
    %1835 = vmatprep.subr.bf16.mxu0 0
    %1836 = vmatpush1.bf16.msra.mxu0 0
    %1837 = vmatprep.subr.bf16.mxu0 0
    %1838 = vmatpush1.bf16.msra.mxu0 0
    %1839 = vmatprep.subr.bf16.mxu0 0
    %1840 = vmatpush1.bf16.msra.mxu0 0
    %1841 = vmatprep.subr.bf16.mxu0 0
    %1842 = vmatpush1.bf16.msra.mxu0 0
    %1843 = vmatprep.subr.bf16.mxu0 0
    %1844 = vmatpush1.bf16.msra.mxu0 0
    %1845 = vmatprep.mubr.bf16.mxu0 0
    %1846 = vmatmul.mubr.bf16.gmra.mrb[0].mxu0 %v1597
    %v1847 = vpop.f32.mrb[0].mxu0
    %v1848 = vadd.f32 %v1636, %v1847
    %v1849 = vpop.f32.mrb[0].mxu0
    %v1850 = vadd.f32 %v1640, %v1849
    %v1851 = vpop.f32.mrb[0].mxu0
    %v1852 = vpop.f32.mrb[0].mxu0
    %1853 = vdwg.mxu0
    %1854 = vmatprep.subr.bf16.mxu0 %v1752
    %1855 = vmatpush1.bf16.msra.mxu0 %v1751
    %1856 = vmatprep.subr.bf16.mxu0 %v1756
    %1857 = vmatpush1.bf16.msra.mxu0 %v1755
    %1858 = vmatprep.subr.bf16.mxu0 %v1760
    %1859 = vmatpush1.bf16.msra.mxu0 %v1759
    %1860 = vmatprep.subr.bf16.mxu0 %v1764
    %1861 = vmatpush1.bf16.msra.mxu0 %v1763
    %1862 = vmatprep.subr.bf16.mxu0 %v1768
    %1863 = vmatpush1.bf16.msra.mxu0 %v1767
    %1864 = vmatprep.subr.bf16.mxu0 %v1772
    %1865 = vmatpush1.bf16.msra.mxu0 %v1771
    %1866 = vmatprep.subr.bf16.mxu0 %v1776
    %1867 = vmatpush1.bf16.msra.mxu0 %v1775
    %1868 = vmatprep.subr.bf16.mxu0 %v1780
    %1869 = vmatpush1.bf16.msra.mxu0 %v1779
    %1870 = vmatprep.subr.bf16.mxu0 0
    %1871 = vmatpush1.bf16.msra.mxu0 0
    %1872 = vmatprep.subr.bf16.mxu0 0
    %1873 = vmatpush1.bf16.msra.mxu0 0
    %1874 = vmatprep.subr.bf16.mxu0 0
    %1875 = vmatpush1.bf16.msra.mxu0 0
    %1876 = vmatprep.subr.bf16.mxu0 0
    %1877 = vmatpush1.bf16.msra.mxu0 0
    %1878 = vmatprep.subr.bf16.mxu0 0
    %1879 = vmatpush1.bf16.msra.mxu0 0
    %1880 = vmatprep.subr.bf16.mxu0 0
    %1881 = vmatpush1.bf16.msra.mxu0 0
    %1882 = vmatprep.subr.bf16.mxu0 0
    %1883 = vmatpush1.bf16.msra.mxu0 0
    %1884 = vmatprep.subr.bf16.mxu0 0
    %1885 = vmatpush1.bf16.msra.mxu0 0
    %1886 = vmatprep.mubr.bf16.mxu0 0
    %1887 = vmatmul.mubr.bf16.gmra.mrb[0].mxu0 %v1597
    %v1888 = vpop.f32.mrb[0].mxu0
    %v1889 = vadd.f32 %v1644, %v1888
    %v1890 = vpop.f32.mrb[0].mxu0
    %v1891 = vadd.f32 %v1648, %v1890
    %v1892 = vpop.f32.mrb[0].mxu0
    %v1893 = vpop.f32.mrb[0].mxu0
    %1894 = vdwg.mxu0
    %v1895 = vmul.f32 %v1848, 0.5
    %v1896 = vmul.f32 %v1850, 0.5
    %v1897 = vmul.f32 %v1889, 0.5
    %v1898 = vmul.f32 %v1891, 0.5
    %v1899 = vmul.f32 %v1848, %v1848
    %v1900 = vmul.f32 %v1850, %v1850
    %v1901 = vmul.f32 %v1889, %v1889
    %v1902 = vmul.f32 %v1891, %v1891
    %v1903 = vmul.f32 %v1899, %v1848
    %v1904 = vmul.f32 %v1900, %v1850
    %v1905 = vmul.f32 %v1901, %v1889
    %v1906 = vmul.f32 %v1902, %v1891
    %v1907 = vmul.f32 %v1903, 0.044715
    %v1908 = vmul.f32 %v1904, 0.044715
    %v1909 = vmul.f32 %v1905, 0.044715
    %v1910 = vmul.f32 %v1906, 0.044715
    %v1911 = vadd.f32 %v1848, %v1907
    %v1912 = vadd.f32 %v1850, %v1908
    %v1913 = vadd.f32 %v1889, %v1909
    %v1914 = vadd.f32 %v1891, %v1910
    %v1915 = vmul.f32 %v1911, 0.7978846
    %v1916 = vmul.f32 %v1912, 0.7978846
    %v1917 = vmul.f32 %v1913, 0.7978846
    %v1918 = vmul.f32 %v1914, 0.7978846
    %v1919 = vtanh.pop %v1915
    %v1920 = vtanh.pop %v1916
    %v1921 = vtanh.pop %v1917
    %v1922 = vtanh.pop %v1918
    %v1923 = vadd.f32 %v1919, 1.0
    %v1924 = vadd.f32 %v1920, 1.0
    %v1925 = vadd.f32 %v1921, 1.0
    %v1926 = vadd.f32 %v1922, 1.0
    %v1927 = vmul.f32 %v1895, %v1923
    %v1928 = vmul.f32 %v1896, %v1924
    %v1929 = vmul.f32 %v1897, %v1925
    %v1930 = vmul.f32 %v1898, %v1926
    %v1931 = vpack.c.bf16 %v1927, %v1927
    %v1932 = vpack.c.bf16 %v1928, %v1928
    %v1933 = vpack.c.bf16 %v1929, %v1929
    %v1934 = vpack.c.bf16 %v1930, %v1930
    %v1935 = vld [vmem:[#allocation9 + $0x8] sm:$0xf]
    %v1936 = vld [vmem:[#allocation9 + $0x20] sm:$0xf]
    %v1937 = vld [vmem:[#allocation9 + $0x38] sm:$0xf]
    %v1938 = vld [vmem:[#allocation9 + $0x50] sm:$0xf]
    %v1939 = vld [vmem:[#allocation9 + $0x68] sm:$0xf]
    %v1940 = vld [vmem:[#allocation9 + $0x80] sm:$0xf]
    %v1941 = vld [vmem:[#allocation9 + $0x98] sm:$0xf]
    %v1942 = vld [vmem:[#allocation9 + $0xb0] sm:$0xf]
    %v1943 = vld [vmem:[#allocation9 + $0xc8] sm:$0xf]
    %v1944 = vld [vmem:[#allocation9 + $0xe0] sm:$0xf]
    %v1945 = vld [vmem:[#allocation9 + $0xf8] sm:$0xf]
    %v1946 = vld [vmem:[#allocation9 + $0x110] sm:$0xf]
    %v1947 = vld [vmem:[#allocation9 + $0x128] sm:$0xf]
    %v1948 = vld [vmem:[#allocation9 + $0x140] sm:$0xf]
    %v1949 = vld [vmem:[#allocation9 + $0x158] sm:$0xf]
    %v1950 = vld [vmem:[#allocation9 + $0x170] sm:$0xf]
    %v1951 = vld [vmem:[#allocation9 + $0x188] sm:$0xf]
    %v1952 = vld [vmem:[#allocation9 + $0x1a0] sm:$0xf]
    %v1953 = vld [vmem:[#allocation9 + $0x1b8] sm:$0xf]
    %v1954 = vld [vmem:[#allocation9 + $0x1d0] sm:$0xf]
    %v1955 = vld [vmem:[#allocation9 + $0x1e8] sm:$0xf]
    %v1956 = vld [vmem:[#allocation9 + $0x200] sm:$0xf]
    %v1957 = vld [vmem:[#allocation9 + $0x218] sm:$0xf]
    %v1958 = vld [vmem:[#allocation9 + $0x230] sm:$0xf]
    %v1959 = vld [vmem:[#allocation9 + $0x248] sm:$0xf]
    %v1960 = vld [vmem:[#allocation9 + $0x260] sm:$0xf]
    %v1961 = vld [vmem:[#allocation9 + $0x278] sm:$0xf]
    %v1962 = vld [vmem:[#allocation9 + $0x290] sm:$0xf]
    %v1963 = vld [vmem:[#allocation9 + $0x2a8] sm:$0xf]
    %v1964 = vld [vmem:[#allocation9 + $0x2c0] sm:$0xf]
    %v1965 = vld [vmem:[#allocation9 + $0x2d8] sm:$0xf]
    %v1966 = vld [vmem:[#allocation9 + $0x2f0] sm:$0xf]
    %v1967 = vld [vmem:[#allocation9 + $0x308] sm:$0xf]
    %v1968 = vld [vmem:[#allocation9 + $0x320] sm:$0xf]
    %v1969 = vld [vmem:[#allocation9 + $0x338] sm:$0xf]
    %v1970 = vld [vmem:[#allocation9 + $0x350] sm:$0xf]
    %v1971 = vld [vmem:[#allocation9 + $0x368] sm:$0xf]
    %v1972 = vld [vmem:[#allocation9 + $0x380] sm:$0xf]
    %v1973 = vld [vmem:[#allocation9 + $0x398] sm:$0xf]
    %v1974 = vld [vmem:[#allocation9 + $0x3b0] sm:$0xf]
    %v1975 = vld [vmem:[#allocation9 + $0x3c8] sm:$0xf]
    %v1976 = vld [vmem:[#allocation9 + $0x3e0] sm:$0xf]
    %v1977 = vld [vmem:[#allocation9 + $0x3f8] sm:$0xf]
    %v1978 = vld [vmem:[#allocation9 + $0x410] sm:$0xf]
    %v1979 = vld [vmem:[#allocation9 + $0x428] sm:$0xf]
    %v1980 = vld [vmem:[#allocation9 + $0x440] sm:$0xf]
    %v1981 = vld [vmem:[#allocation9 + $0x458] sm:$0xf]
    %v1982 = vld [vmem:[#allocation9 + $0x470] sm:$0xf]
    %v1983 = vld [vmem:[#allocation9 + $0x488] sm:$0xf]
    %v1984 = vld [vmem:[#allocation9 + $0x4a0] sm:$0xf]
    %v1985 = vld [vmem:[#allocation9 + $0x4b8] sm:$0xf]
    %v1986 = vld [vmem:[#allocation9 + $0x4d0] sm:$0xf]
    %v1987 = vld [vmem:[#allocation9 + $0x4e8] sm:$0xf]
    %v1988 = vld [vmem:[#allocation9 + $0x500] sm:$0xf]
    %v1989 = vld [vmem:[#allocation9 + $0x518] sm:$0xf]
    %v1990 = vld [vmem:[#allocation9 + $0x530] sm:$0xf]
    %v1991 = vld [vmem:[#allocation9 + $0x548] sm:$0xf]
    %v1992 = vld [vmem:[#allocation9 + $0x560] sm:$0xf]
    %v1993 = vld [vmem:[#allocation9 + $0x578] sm:$0xf]
    %v1994 = vld [vmem:[#allocation9 + $0x590] sm:$0xf]
    %v1995 = vld [vmem:[#allocation9 + $0x5a8] sm:$0xf]
    %v1996 = vld [vmem:[#allocation9 + $0x5c0] sm:$0xf]
    %v1997 = vld [vmem:[#allocation9 + $0x5d8] sm:$0xf]
    %v1998 = vld [vmem:[#allocation9 + $0x5f0] sm:$0xf]
    %v1999 = vld [vmem:[#allocation11 + $0xa] sm:$0x1]
    %v2000 = vlaneseq
    %v2001 = vshrl.u32 %v2000, 7
    %v2002 = vsub.s32 0, %v2001
    %v2003 = vrot.slane %v1999, %v2002
    %v2068 = vunpack.c.l.b16 %v1935
    %v2069 = vunpack.c.l.b16 %v1936
    %v2070 = vunpack.c.l.b16 %v1937
    %v2071 = vunpack.c.l.b16 %v1938
    %v2072 = vunpack.c.l.b16 %v1939
    %v2073 = vunpack.c.l.b16 %v1940
    %v2074 = vunpack.c.l.b16 %v1941
    %v2075 = vunpack.c.l.b16 %v1942
    %v2076 = vunpack.c.l.b16 %v1943
    %v2077 = vunpack.c.l.b16 %v1944
    %v2078 = vunpack.c.l.b16 %v1945
    %v2079 = vunpack.c.l.b16 %v1946
    %v2080 = vunpack.c.l.b16 %v1947
    %v2081 = vunpack.c.l.b16 %v1948
    %v2082 = vunpack.c.l.b16 %v1949
    %v2083 = vunpack.c.l.b16 %v1950
    %v2084 = vunpack.c.l.b16 %v1951
    %v2085 = vunpack.c.l.b16 %v1952
    %v2086 = vunpack.c.l.b16 %v1953
    %v2087 = vunpack.c.l.b16 %v1954
    %v2088 = vunpack.c.l.b16 %v1955
    %v2089 = vunpack.c.l.b16 %v1956
    %v2090 = vunpack.c.l.b16 %v1957
    %v2091 = vunpack.c.l.b16 %v1958
    %v2092 = vunpack.c.l.b16 %v1959
    %v2093 = vunpack.c.l.b16 %v1960
    %v2094 = vunpack.c.l.b16 %v1961
    %v2095 = vunpack.c.l.b16 %v1962
    %v2096 = vunpack.c.l.b16 %v1963
    %v2097 = vunpack.c.l.b16 %v1964
    %v2098 = vunpack.c.l.b16 %v1965
    %v2099 = vunpack.c.l.b16 %v1966
    %v2100 = vunpack.c.l.b16 %v1967
    %v2101 = vunpack.c.l.b16 %v1968
    %v2102 = vunpack.c.l.b16 %v1969
    %v2103 = vunpack.c.l.b16 %v1970
    %v2104 = vunpack.c.l.b16 %v1971
    %v2105 = vunpack.c.l.b16 %v1972
    %v2106 = vunpack.c.l.b16 %v1973
    %v2107 = vunpack.c.l.b16 %v1974
    %v2108 = vunpack.c.l.b16 %v1975
    %v2109 = vunpack.c.l.b16 %v1976
    %v2110 = vunpack.c.l.b16 %v1977
    %v2111 = vunpack.c.l.b16 %v1978
    %v2112 = vunpack.c.l.b16 %v1979
    %v2113 = vunpack.c.l.b16 %v1980
    %v2114 = vunpack.c.l.b16 %v1981
    %v2115 = vunpack.c.l.b16 %v1982
    %v2116 = vunpack.c.l.b16 %v1983
    %v2117 = vunpack.c.l.b16 %v1984
    %v2118 = vunpack.c.l.b16 %v1985
    %v2119 = vunpack.c.l.b16 %v1986
    %v2120 = vunpack.c.l.b16 %v1987
    %v2121 = vunpack.c.l.b16 %v1988
    %v2122 = vunpack.c.l.b16 %v1989
    %v2123 = vunpack.c.l.b16 %v1990
    %v2124 = vunpack.c.l.b16 %v1991
    %v2125 = vunpack.c.l.b16 %v1992
    %v2126 = vunpack.c.l.b16 %v1993
    %v2127 = vunpack.c.l.b16 %v1994
    %v2128 = vunpack.c.l.b16 %v1995
    %v2129 = vunpack.c.l.b16 %v1996
    %v2130 = vunpack.c.l.b16 %v1997
    %v2131 = vunpack.c.l.b16 %v1998
    %v2132 = vpack.c.b16 %v2069, %v2068
    %v2133 = vpack.c.b16 %v2071, %v2070
    %v2134 = vpack.c.b16 %v2073, %v2072
    %v2135 = vpack.c.b16 %v2075, %v2074
    %v2136 = vpack.c.b16 %v2077, %v2076
    %v2137 = vpack.c.b16 %v2079, %v2078
    %v2138 = vpack.c.b16 %v2081, %v2080
    %v2139 = vpack.c.b16 %v2083, %v2082
    %v2140 = vpack.c.b16 %v2085, %v2084
    %v2141 = vpack.c.b16 %v2087, %v2086
    %v2142 = vpack.c.b16 %v2089, %v2088
    %v2143 = vpack.c.b16 %v2091, %v2090
    %v2144 = vpack.c.b16 %v2093, %v2092
    %v2145 = vpack.c.b16 %v2095, %v2094
    %v2146 = vpack.c.b16 %v2097, %v2096
    %v2147 = vpack.c.b16 %v2099, %v2098
    %v2148 = vpack.c.b16 %v2101, %v2100
    %v2149 = vpack.c.b16 %v2103, %v2102
    %v2150 = vpack.c.b16 %v2105, %v2104
    %v2151 = vpack.c.b16 %v2107, %v2106
    %v2152 = vpack.c.b16 %v2109, %v2108
    %v2153 = vpack.c.b16 %v2111, %v2110
    %v2154 = vpack.c.b16 %v2113, %v2112
    %v2155 = vpack.c.b16 %v2115, %v2114
    %v2156 = vpack.c.b16 %v2117, %v2116
    %v2157 = vpack.c.b16 %v2119, %v2118
    %v2158 = vpack.c.b16 %v2121, %v2120
    %v2159 = vpack.c.b16 %v2123, %v2122
    %v2160 = vpack.c.b16 %v2125, %v2124
    %v2161 = vpack.c.b16 %v2127, %v2126
    %v2162 = vpack.c.b16 %v2129, %v2128
    %v2163 = vpack.c.b16 %v2131, %v2130
    %2196 = vmatprep.subr.bf16.mxu0 0
    %2197 = vmatpush1.bf16.msra.mxu0 %v2132
    %2198 = vmatprep.subr.bf16.mxu0 0
    %2199 = vmatpush1.bf16.msra.mxu0 %v2133
    %2200 = vmatprep.subr.bf16.mxu0 0
    %2201 = vmatpush1.bf16.msra.mxu0 %v2134
    %2202 = vmatprep.subr.bf16.mxu0 0
    %2203 = vmatpush1.bf16.msra.mxu0 %v2135
    %2204 = vmatprep.subr.bf16.mxu0 0
    %2205 = vmatpush1.bf16.msra.mxu0 %v2136
    %2206 = vmatprep.subr.bf16.mxu0 0
    %2207 = vmatpush1.bf16.msra.mxu0 %v2137
    %2208 = vmatprep.subr.bf16.mxu0 0
    %2209 = vmatpush1.bf16.msra.mxu0 %v2138
    %2210 = vmatprep.subr.bf16.mxu0 0
    %2211 = vmatpush1.bf16.msra.mxu0 %v2139
    %2212 = vmatprep.subr.bf16.mxu0 0
    %2213 = vmatpush1.bf16.msra.mxu0 %v2140
    %2214 = vmatprep.subr.bf16.mxu0 0
    %2215 = vmatpush1.bf16.msra.mxu0 %v2141
    %2216 = vmatprep.subr.bf16.mxu0 0
    %2217 = vmatpush1.bf16.msra.mxu0 %v2142
    %2218 = vmatprep.subr.bf16.mxu0 0
    %2219 = vmatpush1.bf16.msra.mxu0 %v2143
    %2220 = vmatprep.subr.bf16.mxu0 0
    %2221 = vmatpush1.bf16.msra.mxu0 %v2144
    %2222 = vmatprep.subr.bf16.mxu0 0
    %2223 = vmatpush1.bf16.msra.mxu0 %v2145
    %2224 = vmatprep.subr.bf16.mxu0 0
    %2225 = vmatpush1.bf16.msra.mxu0 %v2146
    %2226 = vmatprep.subr.bf16.mxu0 0
    %2227 = vmatpush1.bf16.msra.mxu0 %v2147
    %2228 = vmatprep.mubr.bf16.mxu0 %v1932
    %2229 = vmatmul.mubr.bf16.gmra.mrb[0].mxu0 %v1931
    %v2230 = vpop.f32.mrb[0].mxu0
    %v2231 = vadd.f32 %v2003, %v2230
    %v2232 = vpop.f32.mrb[0].mxu0
    %v2233 = vpop.f32.mrb[0].mxu0
    %v2234 = vpop.f32.mrb[0].mxu0
    %2235 = vdwg.mxu0
    %2236 = vmatprep.subr.bf16.mxu0 0
    %2237 = vmatpush1.bf16.msra.mxu0 %v2148
    %2238 = vmatprep.subr.bf16.mxu0 0
    %2239 = vmatpush1.bf16.msra.mxu0 %v2149
    %2240 = vmatprep.subr.bf16.mxu0 0
    %2241 = vmatpush1.bf16.msra.mxu0 %v2150
    %2242 = vmatprep.subr.bf16.mxu0 0
    %2243 = vmatpush1.bf16.msra.mxu0 %v2151
    %2244 = vmatprep.subr.bf16.mxu0 0
    %2245 = vmatpush1.bf16.msra.mxu0 %v2152
    %2246 = vmatprep.subr.bf16.mxu0 0
    %2247 = vmatpush1.bf16.msra.mxu0 %v2153
    %2248 = vmatprep.subr.bf16.mxu0 0
    %2249 = vmatpush1.bf16.msra.mxu0 %v2154
    %2250 = vmatprep.subr.bf16.mxu0 0
    %2251 = vmatpush1.bf16.msra.mxu0 %v2155
    %2252 = vmatprep.subr.bf16.mxu0 0
    %2253 = vmatpush1.bf16.msra.mxu0 %v2156
    %2254 = vmatprep.subr.bf16.mxu0 0
    %2255 = vmatpush1.bf16.msra.mxu0 %v2157
    %2256 = vmatprep.subr.bf16.mxu0 0
    %2257 = vmatpush1.bf16.msra.mxu0 %v2158
    %2258 = vmatprep.subr.bf16.mxu0 0
    %2259 = vmatpush1.bf16.msra.mxu0 %v2159
    %2260 = vmatprep.subr.bf16.mxu0 0
    %2261 = vmatpush1.bf16.msra.mxu0 %v2160
    %2262 = vmatprep.subr.bf16.mxu0 0
    %2263 = vmatpush1.bf16.msra.mxu0 %v2161
    %2264 = vmatprep.subr.bf16.mxu0 0
    %2265 = vmatpush1.bf16.msra.mxu0 %v2162
    %2266 = vmatprep.subr.bf16.mxu0 0
    %2267 = vmatpush1.bf16.msra.mxu0 %v2163
    %2268 = vmatprep.mubr.bf16.mxu0 %v1934
    %2269 = vmatmul.mubr.bf16.gmra.mrb[0].mxu0 %v1933
    %v2270 = vpop.f32.mrb[0].mxu0
    %v2271 = vadd.f32 %v2231, %v2270
    %v2272 = vpop.f32.mrb[0].mxu0
    %v2273 = vpop.f32.mrb[0].mxu0
    %v2274 = vpop.f32.mrb[0].mxu0
    %2275 = vdwg.mxu0
    %v2276 = vadd.f32 %v1596, %v2271
    %2277 = vadd.xlane.f32.xlu0 %v2276
    %v2278 = vpop.xlane.xlu0 %2277
    %v2279 = vmul.f32 %v2278, %v837
    %v2280 = vmul.f32 %v2276, %v2276
    %2281 = vadd.xlane.f32.xlu0 %v2280
    %v2282 = vpop.xlane.xlu0 %2281
    %v2283 = vmul.f32 %v2282, %v837
    %v2284 = vmul.f32 %v2279, %v2279
    %v2285 = vsub.f32 %v2283, %v2284
    %v2286 = vsub.f32 %v2276, %v2279
    %v2287 = vadd.f32 %v2285, 1e-05
    %v2288 = vrsqrt.pop %v2287
    %v2289 = vmul.f32 %v2286, %v2288
    %v2290 = vmul.f32 %v2289, %v1590
    %v2291 = vadd.f32 %v2290, %v1595
    %v2292 = vpack.c.bf16 %v1350, %v1350
    %v2293 = vld [vmem:[#allocation6 + $0x18] sm:$0xf]
    %v2294 = vld [vmem:[#allocation6 + $0x50] sm:$0xf]
    %v2295 = vld [vmem:[#allocation6 + $0x88] sm:$0xf]
    %v2296 = vld [vmem:[#allocation6 + $0xc0] sm:$0xf]
    %v2297 = vld [vmem:[#allocation6 + $0xf8] sm:$0xf]
    %v2298 = vld [vmem:[#allocation6 + $0x130] sm:$0xf]
    %v2299 = vld [vmem:[#allocation6 + $0x168] sm:$0xf]
    %v2300 = vld [vmem:[#allocation6 + $0x1a0] sm:$0xf]
    %v2301 = vld [vmem:[#allocation6 + $0x1d8] sm:$0xf]
    %v2302 = vld [vmem:[#allocation6 + $0x210] sm:$0xf]
    %v2303 = vld [vmem:[#allocation6 + $0x248] sm:$0xf]
    %v2304 = vld [vmem:[#allocation6 + $0x280] sm:$0xf]
    %v2305 = vld [vmem:[#allocation6 + $0x2b8] sm:$0xf]
    %v2306 = vld [vmem:[#allocation6 + $0x2f0] sm:$0xf]
    %v2307 = vld [vmem:[#allocation6 + $0x328] sm:$0xf]
    %v2308 = vld [vmem:[#allocation6 + $0x360] sm:$0xf]
    %v2309 = vld [vmem:[#allocation11 + $0xb] sm:$0x1]
    %v2310 = vlaneseq
    %v2311 = vshrl.u32 %v2310, 7
    %v2312 = vsub.s32 0, %v2311
    %v2313 = vrot.slane %v2309, %v2312
    %v2330 = vunpack.c.l.b16 %v2293
    %v2331 = vunpack.c.l.b16 %v2294
    %v2332 = vunpack.c.l.b16 %v2295
    %v2333 = vunpack.c.l.b16 %v2296
    %v2334 = vunpack.c.l.b16 %v2297
    %v2335 = vunpack.c.l.b16 %v2298
    %v2336 = vunpack.c.l.b16 %v2299
    %v2337 = vunpack.c.l.b16 %v2300
    %v2338 = vunpack.c.l.b16 %v2301
    %v2339 = vunpack.c.l.b16 %v2302
    %v2340 = vunpack.c.l.b16 %v2303
    %v2341 = vunpack.c.l.b16 %v2304
    %v2342 = vunpack.c.l.b16 %v2305
    %v2343 = vunpack.c.l.b16 %v2306
    %v2344 = vunpack.c.l.b16 %v2307
    %v2345 = vunpack.c.l.b16 %v2308
    %v2346 = vpack.c.b16 %v2331, %v2330
    %v2347 = vpack.c.b16 %v2333, %v2332
    %v2348 = vpack.c.b16 %v2335, %v2334
    %v2349 = vpack.c.b16 %v2337, %v2336
    %v2350 = vpack.c.b16 %v2339, %v2338
    %v2351 = vpack.c.b16 %v2341, %v2340
    %v2352 = vpack.c.b16 %v2343, %v2342
    %v2353 = vpack.c.b16 %v2345, %v2344
    %2362 = vmatprep.subr.bf16.mxu0 0
    %2363 = vmatpush1.bf16.msra.mxu0 %v2346
    %2364 = vmatprep.subr.bf16.mxu0 0
    %2365 = vmatpush1.bf16.msra.mxu0 %v2347
    %2366 = vmatprep.subr.bf16.mxu0 0
    %2367 = vmatpush1.bf16.msra.mxu0 %v2348
    %2368 = vmatprep.subr.bf16.mxu0 0
    %2369 = vmatpush1.bf16.msra.mxu0 %v2349
    %2370 = vmatprep.subr.bf16.mxu0 0
    %2371 = vmatpush1.bf16.msra.mxu0 %v2350
    %2372 = vmatprep.subr.bf16.mxu0 0
    %2373 = vmatpush1.bf16.msra.mxu0 %v2351
    %2374 = vmatprep.subr.bf16.mxu0 0
    %2375 = vmatpush1.bf16.msra.mxu0 %v2352
    %2376 = vmatprep.subr.bf16.mxu0 0
    %2377 = vmatpush1.bf16.msra.mxu0 %v2353
    %2378 = vmatprep.subr.bf16.mxu0 0
    %2379 = vmatpush1.bf16.msra.mxu0 0
    %2380 = vmatprep.subr.bf16.mxu0 0
    %2381 = vmatpush1.bf16.msra.mxu0 0
    %2382 = vmatprep.subr.bf16.mxu0 0
    %2383 = vmatpush1.bf16.msra.mxu0 0
    %2384 = vmatprep.subr.bf16.mxu0 0
    %2385 = vmatpush1.bf16.msra.mxu0 0
    %2386 = vmatprep.subr.bf16.mxu0 0
    %2387 = vmatpush1.bf16.msra.mxu0 0
    %2388 = vmatprep.subr.bf16.mxu0 0
    %2389 = vmatpush1.bf16.msra.mxu0 0
    %2390 = vmatprep.subr.bf16.mxu0 0
    %2391 = vmatpush1.bf16.msra.mxu0 0
    %2392 = vmatprep.subr.bf16.mxu0 0
    %2393 = vmatpush1.bf16.msra.mxu0 0
    %2394 = vmatprep.mubr.bf16.mxu0 0
    %2395 = vmatmul.mubr.bf16.gmra.mrb[0].mxu0 %v2292
    %v2396 = vpop.f32.mrb[0].mxu0
    %v2397 = vadd.f32 %v2313, %v2396
    %v2398 = vpop.f32.mrb[0].mxu0
    %v2399 = vpop.f32.mrb[0].mxu0
    %v2400 = vpop.f32.mrb[0].mxu0
    %2401 = vdwg.mxu0
    %v2402 = vpack.c.bf16 %v2397, %v2397
    %v2403 = vld [vmem:[#allocation6 + $0x1c] sm:$0xf]
    %v2404 = vld [vmem:[#allocation6 + $0x54] sm:$0xf]
    %v2405 = vld [vmem:[#allocation6 + $0x8c] sm:$0xf]
    %v2406 = vld [vmem:[#allocation6 + $0xc4] sm:$0xf]
    %v2407 = vld [vmem:[#allocation6 + $0xfc] sm:$0xf]
    %v2408 = vld [vmem:[#allocation6 + $0x134] sm:$0xf]
    %v2409 = vld [vmem:[#allocation6 + $0x16c] sm:$0xf]
    %v2410 = vld [vmem:[#allocation6 + $0x1a4] sm:$0xf]
    %v2411 = vld [vmem:[#allocation6 + $0x1dc] sm:$0xf]
    %v2412 = vld [vmem:[#allocation6 + $0x214] sm:$0xf]
    %v2413 = vld [vmem:[#allocation6 + $0x24c] sm:$0xf]
    %v2414 = vld [vmem:[#allocation6 + $0x284] sm:$0xf]
    %v2415 = vld [vmem:[#allocation6 + $0x2bc] sm:$0xf]
    %v2416 = vld [vmem:[#allocation6 + $0x2f4] sm:$0xf]
    %v2417 = vld [vmem:[#allocation6 + $0x32c] sm:$0xf]
    %v2418 = vld [vmem:[#allocation6 + $0x364] sm:$0xf]
    %v2419 = vld [vmem:[#allocation11 + $0xc] sm:$0x1]
    %v2420 = vlaneseq
    %v2421 = vshrl.u32 %v2420, 7
    %v2422 = vsub.s32 0, %v2421
    %v2423 = vrot.slane %v2419, %v2422
    %v2440 = vunpack.c.l.b16 %v2403
    %v2441 = vunpack.c.l.b16 %v2404
    %v2442 = vunpack.c.l.b16 %v2405
    %v2443 = vunpack.c.l.b16 %v2406
    %v2444 = vunpack.c.l.b16 %v2407
    %v2445 = vunpack.c.l.b16 %v2408
    %v2446 = vunpack.c.l.b16 %v2409
    %v2447 = vunpack.c.l.b16 %v2410
    %v2448 = vunpack.c.l.b16 %v2411
    %v2449 = vunpack.c.l.b16 %v2412
    %v2450 = vunpack.c.l.b16 %v2413
    %v2451 = vunpack.c.l.b16 %v2414
    %v2452 = vunpack.c.l.b16 %v2415
    %v2453 = vunpack.c.l.b16 %v2416
    %v2454 = vunpack.c.l.b16 %v2417
    %v2455 = vunpack.c.l.b16 %v2418
    %v2456 = vpack.c.b16 %v2441, %v2440
    %v2457 = vpack.c.b16 %v2443, %v2442
    %v2458 = vpack.c.b16 %v2445, %v2444
    %v2459 = vpack.c.b16 %v2447, %v2446
    %v2460 = vpack.c.b16 %v2449, %v2448
    %v2461 = vpack.c.b16 %v2451, %v2450
    %v2462 = vpack.c.b16 %v2453, %v2452
    %v2463 = vpack.c.b16 %v2455, %v2454
    %2472 = vmatprep.subr.bf16.mxu0 0
    %2473 = vmatpush1.bf16.msra.mxu0 %v2456
    %2474 = vmatprep.subr.bf16.mxu0 0
    %2475 = vmatpush1.bf16.msra.mxu0 %v2457
    %2476 = vmatprep.subr.bf16.mxu0 0
    %2477 = vmatpush1.bf16.msra.mxu0 %v2458
    %2478 = vmatprep.subr.bf16.mxu0 0
    %2479 = vmatpush1.bf16.msra.mxu0 %v2459
    %2480 = vmatprep.subr.bf16.mxu0 0
    %2481 = vmatpush1.bf16.msra.mxu0 %v2460
    %2482 = vmatprep.subr.bf16.mxu0 0
    %2483 = vmatpush1.bf16.msra.mxu0 %v2461
    %2484 = vmatprep.subr.bf16.mxu0 0
    %2485 = vmatpush1.bf16.msra.mxu0 %v2462
    %2486 = vmatprep.subr.bf16.mxu0 0
    %2487 = vmatpush1.bf16.msra.mxu0 %v2463
    %2488 = vmatprep.subr.bf16.mxu0 0
    %2489 = vmatpush1.bf16.msra.mxu0 0
    %2490 = vmatprep.subr.bf16.mxu0 0
    %2491 = vmatpush1.bf16.msra.mxu0 0
    %2492 = vmatprep.subr.bf16.mxu0 0
    %2493 = vmatpush1.bf16.msra.mxu0 0
    %2494 = vmatprep.subr.bf16.mxu0 0
    %2495 = vmatpush1.bf16.msra.mxu0 0
    %2496 = vmatprep.subr.bf16.mxu0 0
    %2497 = vmatpush1.bf16.msra.mxu0 0
    %2498 = vmatprep.subr.bf16.mxu0 0
    %2499 = vmatpush1.bf16.msra.mxu0 0
    %2500 = vmatprep.subr.bf16.mxu0 0
    %2501 = vmatpush1.bf16.msra.mxu0 0
    %2502 = vmatprep.subr.bf16.mxu0 0
    %2503 = vmatpush1.bf16.msra.mxu0 0
    %2504 = vmatprep.mubr.bf16.mxu0 0
    %2505 = vmatmul.mubr.bf16.gmra.mrb[0].mxu0 %v2402
    %v2506 = vpop.f32.mrb[0].mxu0
    %v2507 = vadd.f32 %v2423, %v2506
    %v2508 = vpop.f32.mrb[0].mxu0
    %v2509 = vpop.f32.mrb[0].mxu0
    %v2510 = vpop.f32.mrb[0].mxu0
    %2511 = vdwg.mxu0
    %v2512 = vadd.f32 %v858, %v2507
    %v2513 = vld [vmem:[#allocation11 + $0xd] sm:$0x1]
    %v2514 = vld [vmem:[#allocation11 + $0xe] sm:$0x1]
    %2515 = vadd.xlane.f32.xlu0 %v2512
    %v2516 = vpop.xlane.xlu0 %2515
    %v2517 = vmul.f32 %v2516, %v837
    %v2518 = vmul.f32 %v2512, %v2512
    %2519 = vadd.xlane.f32.xlu0 %v2518
    %v2520 = vpop.xlane.xlu0 %2519
    %v2521 = vmul.f32 %v2520, %v837
    %v2522 = vmul.f32 %v2517, %v2517
    %v2523 = vsub.f32 %v2521, %v2522
    %v2524 = vsub.f32 %v2512, %v2517
    %v2525 = vadd.f32 %v2523, 1e-05
    %v2526 = vrsqrt.pop %v2525
    %v2527 = vmul.f32 %v2524, %v2526
    %v2528 = vlaneseq
    %v2529 = vshrl.u32 %v2528, 7
    %v2530 = vsub.s32 0, %v2529
    %v2531 = vrot.slane %v2513, %v2530
    %v2532 = vmul.f32 %v2527, %v2531
    %v2533 = vlaneseq
    %v2534 = vshrl.u32 %v2533, 7
    %v2535 = vsub.s32 0, %v2534
    %v2536 = vrot.slane %v2514, %v2535
    %v2537 = vadd.f32 %v2532, %v2536
    %v2538 = vpack.c.bf16 %v2537, %v2537
    %v2539 = vld [vmem:[#allocation6 + $0x20] sm:$0xff]
    %v2540 = vld [vmem:[#allocation6 + $0x28] sm:$0xff]
    %v2541 = vld [vmem:[#allocation6 + $0x58] sm:$0xff]
    %v2542 = vld [vmem:[#allocation6 + $0x60] sm:$0xff]
    %v2543 = vld [vmem:[#allocation6 + $0x90] sm:$0xff]
    %v2544 = vld [vmem:[#allocation6 + $0x98] sm:$0xff]
    %v2545 = vld [vmem:[#allocation6 + $0xc8] sm:$0xff]
    %v2546 = vld [vmem:[#allocation6 + $0xd0] sm:$0xff]
    %v2547 = vld [vmem:[#allocation6 + $0x100] sm:$0xff]
    %v2548 = vld [vmem:[#allocation6 + $0x108] sm:$0xff]
    %v2549 = vld [vmem:[#allocation6 + $0x138] sm:$0xff]
    %v2550 = vld [vmem:[#allocation6 + $0x140] sm:$0xff]
    %v2551 = vld [vmem:[#allocation6 + $0x170] sm:$0xff]
    %v2552 = vld [vmem:[#allocation6 + $0x178] sm:$0xff]
    %v2553 = vld [vmem:[#allocation6 + $0x1a8] sm:$0xff]
    %v2554 = vld [vmem:[#allocation6 + $0x1b0] sm:$0xff]
    %v2555 = vld [vmem:[#allocation6 + $0x1e0] sm:$0xff]
    %v2556 = vld [vmem:[#allocation6 + $0x1e8] sm:$0xff]
    %v2557 = vld [vmem:[#allocation6 + $0x218] sm:$0xff]
    %v2558 = vld [vmem:[#allocation6 + $0x220] sm:$0xff]
    %v2559 = vld [vmem:[#allocation6 + $0x250] sm:$0xff]
    %v2560 = vld [vmem:[#allocation6 + $0x258] sm:$0xff]
    %v2561 = vld [vmem:[#allocation6 + $0x288] sm:$0xff]
    %v2562 = vld [vmem:[#allocation6 + $0x290] sm:$0xff]
    %v2563 = vld [vmem:[#allocation6 + $0x2c0] sm:$0xff]
    %v2564 = vld [vmem:[#allocation6 + $0x2c8] sm:$0xff]
    %v2565 = vld [vmem:[#allocation6 + $0x2f8] sm:$0xff]
    %v2566 = vld [vmem:[#allocation6 + $0x300] sm:$0xff]
    %v2567 = vld [vmem:[#allocation6 + $0x330] sm:$0xff]
    %v2568 = vld [vmem:[#allocation6 + $0x338] sm:$0xff]
    %v2569 = vld [vmem:[#allocation6 + $0x368] sm:$0xff]
    %v2570 = vld [vmem:[#allocation6 + $0x370] sm:$0xff]
    %s2571 = scalar_lea.vmem [#allocation12], 6
    %v2572 = vld [vmem:[%s2571] ss:$8 sm:$0xf]
    %v2574 = vlaneseq
    %v2575 = vshrl.u32 %v2574, 7
    %v2576 = vsub.s32 0, %v2575
    %v2577 = vrot.slane %v2572, %v2576
    %v2578 = vlaneseq
    %v2579 = vshrl.u32 %v2578, 7
    %v2580 = vsub.s32 1, %v2579
    %v2581 = vrot.slane %v2572, %v2580
    %v2582 = vlaneseq
    %v2583 = vshrl.u32 %v2582, 7
    %v2584 = vsub.s32 2, %v2583
    %v2585 = vrot.slane %v2572, %v2584
    %v2586 = vlaneseq
    %v2587 = vshrl.u32 %v2586, 7
    %v2588 = vsub.s32 3, %v2587
    %v2589 = vrot.slane %v2572, %v2588
    %v2626 = vunpack.c.l.b16 %v2539
    %v2627 = vunpack.c.h.b16 %v2539
    %v2628 = vunpack.c.l.b16 %v2540
    %v2629 = vunpack.c.h.b16 %v2540
    %v2630 = vunpack.c.l.b16 %v2541
    %v2631 = vunpack.c.h.b16 %v2541
    %v2632 = vunpack.c.l.b16 %v2542
    %v2633 = vunpack.c.h.b16 %v2542
    %v2634 = vunpack.c.l.b16 %v2543
    %v2635 = vunpack.c.h.b16 %v2543
    %v2636 = vunpack.c.l.b16 %v2544
    %v2637 = vunpack.c.h.b16 %v2544
    %v2638 = vunpack.c.l.b16 %v2545
    %v2639 = vunpack.c.h.b16 %v2545
    %v2640 = vunpack.c.l.b16 %v2546
    %v2641 = vunpack.c.h.b16 %v2546
    %v2642 = vunpack.c.l.b16 %v2547
    %v2643 = vunpack.c.h.b16 %v2547
    %v2644 = vunpack.c.l.b16 %v2548
    %v2645 = vunpack.c.h.b16 %v2548
    %v2646 = vunpack.c.l.b16 %v2549
    %v2647 = vunpack.c.h.b16 %v2549
    %v2648 = vunpack.c.l.b16 %v2550
    %v2649 = vunpack.c.h.b16 %v2550
    %v2650 = vunpack.c.l.b16 %v2551
    %v2651 = vunpack.c.h.b16 %v2551
    %v2652 = vunpack.c.l.b16 %v2552
    %v2653 = vunpack.c.h.b16 %v2552
    %v2654 = vunpack.c.l.b16 %v2553
    %v2655 = vunpack.c.h.b16 %v2553
    %v2656 = vunpack.c.l.b16 %v2554
    %v2657 = vunpack.c.h.b16 %v2554
    %v2658 = vunpack.c.l.b16 %v2555
    %v2659 = vunpack.c.h.b16 %v2555
    %v2660 = vunpack.c.l.b16 %v2556
    %v2661 = vunpack.c.h.b16 %v2556
    %v2662 = vunpack.c.l.b16 %v2557
    %v2663 = vunpack.c.h.b16 %v2557
    %v2664 = vunpack.c.l.b16 %v2558
    %v2665 = vunpack.c.h.b16 %v2558
    %v2666 = vunpack.c.l.b16 %v2559
    %v2667 = vunpack.c.h.b16 %v2559
    %v2668 = vunpack.c.l.b16 %v2560
    %v2669 = vunpack.c.h.b16 %v2560
    %v2670 = vunpack.c.l.b16 %v2561
    %v2671 = vunpack.c.h.b16 %v2561
    %v2672 = vunpack.c.l.b16 %v2562
    %v2673 = vunpack.c.h.b16 %v2562
    %v2674 = vunpack.c.l.b16 %v2563
    %v2675 = vunpack.c.h.b16 %v2563
    %v2676 = vunpack.c.l.b16 %v2564
    %v2677 = vunpack.c.h.b16 %v2564
    %v2678 = vunpack.c.l.b16 %v2565
    %v2679 = vunpack.c.h.b16 %v2565
    %v2680 = vunpack.c.l.b16 %v2566
    %v2681 = vunpack.c.h.b16 %v2566
    %v2682 = vunpack.c.l.b16 %v2567
    %v2683 = vunpack.c.h.b16 %v2567
    %v2684 = vunpack.c.l.b16 %v2568
    %v2685 = vunpack.c.h.b16 %v2568
    %v2686 = vunpack.c.l.b16 %v2569
    %v2687 = vunpack.c.h.b16 %v2569
    %v2688 = vunpack.c.l.b16 %v2570
    %v2689 = vunpack.c.h.b16 %v2570
    %v2690 = vpack.c.b16 %v2630, %v2626
    %v2691 = vpack.c.b16 %v2631, %v2627
    %v2692 = vpack.c.b16 %v2632, %v2628
    %v2693 = vpack.c.b16 %v2633, %v2629
    %v2694 = vpack.c.b16 %v2638, %v2634
    %v2695 = vpack.c.b16 %v2639, %v2635
    %v2696 = vpack.c.b16 %v2640, %v2636
    %v2697 = vpack.c.b16 %v2641, %v2637
    %v2698 = vpack.c.b16 %v2646, %v2642
    %v2699 = vpack.c.b16 %v2647, %v2643
    %v2700 = vpack.c.b16 %v2648, %v2644
    %v2701 = vpack.c.b16 %v2649, %v2645
    %v2702 = vpack.c.b16 %v2654, %v2650
    %v2703 = vpack.c.b16 %v2655, %v2651
    %v2704 = vpack.c.b16 %v2656, %v2652
    %v2705 = vpack.c.b16 %v2657, %v2653
    %v2706 = vpack.c.b16 %v2662, %v2658
    %v2707 = vpack.c.b16 %v2663, %v2659
    %v2708 = vpack.c.b16 %v2664, %v2660
    %v2709 = vpack.c.b16 %v2665, %v2661
    %v2710 = vpack.c.b16 %v2670, %v2666
    %v2711 = vpack.c.b16 %v2671, %v2667
    %v2712 = vpack.c.b16 %v2672, %v2668
    %v2713 = vpack.c.b16 %v2673, %v2669
    %v2714 = vpack.c.b16 %v2678, %v2674
    %v2715 = vpack.c.b16 %v2679, %v2675
    %v2716 = vpack.c.b16 %v2680, %v2676
    %v2717 = vpack.c.b16 %v2681, %v2677
    %v2718 = vpack.c.b16 %v2686, %v2682
    %v2719 = vpack.c.b16 %v2687, %v2683
    %v2720 = vpack.c.b16 %v2688, %v2684
    %v2721 = vpack.c.b16 %v2689, %v2685
    %2754 = vmatprep.subr.bf16.mxu0 %v2691
    %2755 = vmatpush1.bf16.msra.mxu0 %v2690
    %2756 = vmatprep.subr.bf16.mxu0 %v2695
    %2757 = vmatpush1.bf16.msra.mxu0 %v2694
    %2758 = vmatprep.subr.bf16.mxu0 %v2699
    %2759 = vmatpush1.bf16.msra.mxu0 %v2698
    %2760 = vmatprep.subr.bf16.mxu0 %v2703
    %2761 = vmatpush1.bf16.msra.mxu0 %v2702
    %2762 = vmatprep.subr.bf16.mxu0 %v2707
    %2763 = vmatpush1.bf16.msra.mxu0 %v2706
    %2764 = vmatprep.subr.bf16.mxu0 %v2711
    %2765 = vmatpush1.bf16.msra.mxu0 %v2710
    %2766 = vmatprep.subr.bf16.mxu0 %v2715
    %2767 = vmatpush1.bf16.msra.mxu0 %v2714
    %2768 = vmatprep.subr.bf16.mxu0 %v2719
    %2769 = vmatpush1.bf16.msra.mxu0 %v2718
    %2770 = vmatprep.subr.bf16.mxu0 0
    %2771 = vmatpush1.bf16.msra.mxu0 0
    %2772 = vmatprep.subr.bf16.mxu0 0
    %2773 = vmatpush1.bf16.msra.mxu0 0
    %2774 = vmatprep.subr.bf16.mxu0 0
    %2775 = vmatpush1.bf16.msra.mxu0 0
    %2776 = vmatprep.subr.bf16.mxu0 0
    %2777 = vmatpush1.bf16.msra.mxu0 0
    %2778 = vmatprep.subr.bf16.mxu0 0
    %2779 = vmatpush1.bf16.msra.mxu0 0
    %2780 = vmatprep.subr.bf16.mxu0 0
    %2781 = vmatpush1.bf16.msra.mxu0 0
    %2782 = vmatprep.subr.bf16.mxu0 0
    %2783 = vmatpush1.bf16.msra.mxu0 0
    %2784 = vmatprep.subr.bf16.mxu0 0
    %2785 = vmatpush1.bf16.msra.mxu0 0
    %2786 = vmatprep.mubr.bf16.mxu0 0
    %2787 = vmatmul.mubr.bf16.gmra.mrb[0].mxu0 %v2538
    %v2788 = vpop.f32.mrb[0].mxu0
    %v2789 = vadd.f32 %v2577, %v2788
    %v2790 = vpop.f32.mrb[0].mxu0
    %v2791 = vadd.f32 %v2581, %v2790
    %v2792 = vpop.f32.mrb[0].mxu0
    %v2793 = vpop.f32.mrb[0].mxu0
    %2794 = vdwg.mxu0
    %2795 = vmatprep.subr.bf16.mxu0 %v2693
    %2796 = vmatpush1.bf16.msra.mxu0 %v2692
    %2797 = vmatprep.subr.bf16.mxu0 %v2697
    %2798 = vmatpush1.bf16.msra.mxu0 %v2696
    %2799 = vmatprep.subr.bf16.mxu0 %v2701
    %2800 = vmatpush1.bf16.msra.mxu0 %v2700
    %2801 = vmatprep.subr.bf16.mxu0 %v2705
    %2802 = vmatpush1.bf16.msra.mxu0 %v2704
    %2803 = vmatprep.subr.bf16.mxu0 %v2709
    %2804 = vmatpush1.bf16.msra.mxu0 %v2708
    %2805 = vmatprep.subr.bf16.mxu0 %v2713
    %2806 = vmatpush1.bf16.msra.mxu0 %v2712
    %2807 = vmatprep.subr.bf16.mxu0 %v2717
    %2808 = vmatpush1.bf16.msra.mxu0 %v2716
    %2809 = vmatprep.subr.bf16.mxu0 %v2721
    %2810 = vmatpush1.bf16.msra.mxu0 %v2720
    %2811 = vmatprep.subr.bf16.mxu0 0
    %2812 = vmatpush1.bf16.msra.mxu0 0
    %2813 = vmatprep.subr.bf16.mxu0 0
    %2814 = vmatpush1.bf16.msra.mxu0 0
    %2815 = vmatprep.subr.bf16.mxu0 0
    %2816 = vmatpush1.bf16.msra.mxu0 0
    %2817 = vmatprep.subr.bf16.mxu0 0
    %2818 = vmatpush1.bf16.msra.mxu0 0
    %2819 = vmatprep.subr.bf16.mxu0 0
    %2820 = vmatpush1.bf16.msra.mxu0 0
    %2821 = vmatprep.subr.bf16.mxu0 0
    %2822 = vmatpush1.bf16.msra.mxu0 0
    %2823 = vmatprep.subr.bf16.mxu0 0
    %2824 = vmatpush1.bf16.msra.mxu0 0
    %2825 = vmatprep.subr.bf16.mxu0 0
    %2826 = vmatpush1.bf16.msra.mxu0 0
    %2827 = vmatprep.mubr.bf16.mxu0 0
    %2828 = vmatmul.mubr.bf16.gmra.mrb[0].mxu0 %v2538
    %v2829 = vpop.f32.mrb[0].mxu0
    %v2830 = vadd.f32 %v2585, %v2829
    %v2831 = vpop.f32.mrb[0].mxu0
    %v2832 = vadd.f32 %v2589, %v2831
    %v2833 = vpop.f32.mrb[0].mxu0
    %v2834 = vpop.f32.mrb[0].mxu0
    %2835 = vdwg.mxu0
    %v2836 = vmul.f32 %v2789, 0.5
    %v2837 = vmul.f32 %v2791, 0.5
    %v2838 = vmul.f32 %v2830, 0.5
    %v2839 = vmul.f32 %v2832, 0.5
    %v2840 = vmul.f32 %v2789, %v2789
    %v2841 = vmul.f32 %v2791, %v2791
    %v2842 = vmul.f32 %v2830, %v2830
    %v2843 = vmul.f32 %v2832, %v2832
    %v2844 = vmul.f32 %v2840, %v2789
    %v2845 = vmul.f32 %v2841, %v2791
    %v2846 = vmul.f32 %v2842, %v2830
    %v2847 = vmul.f32 %v2843, %v2832
    %v2848 = vmul.f32 %v2844, 0.044715
    %v2849 = vmul.f32 %v2845, 0.044715
    %v2850 = vmul.f32 %v2846, 0.044715
    %v2851 = vmul.f32 %v2847, 0.044715
    %v2852 = vadd.f32 %v2789, %v2848
    %v2853 = vadd.f32 %v2791, %v2849
    %v2854 = vadd.f32 %v2830, %v2850
    %v2855 = vadd.f32 %v2832, %v2851
    %v2856 = vmul.f32 %v2852, 0.7978846
    %v2857 = vmul.f32 %v2853, 0.7978846
    %v2858 = vmul.f32 %v2854, 0.7978846
    %v2859 = vmul.f32 %v2855, 0.7978846
    %v2860 = vtanh.pop %v2856
    %v2861 = vtanh.pop %v2857
    %v2862 = vtanh.pop %v2858
    %v2863 = vtanh.pop %v2859
    %v2864 = vadd.f32 %v2860, 1.0
    %v2865 = vadd.f32 %v2861, 1.0
    %v2866 = vadd.f32 %v2862, 1.0
    %v2867 = vadd.f32 %v2863, 1.0
    %v2868 = vmul.f32 %v2836, %v2864
    %v2869 = vmul.f32 %v2837, %v2865
    %v2870 = vmul.f32 %v2838, %v2866
    %v2871 = vmul.f32 %v2839, %v2867
    %v2872 = vpack.c.bf16 %v2868, %v2868
    %v2873 = vpack.c.bf16 %v2869, %v2869
    %v2874 = vpack.c.bf16 %v2870, %v2870
    %v2875 = vpack.c.bf16 %v2871, %v2871
    %v2876 = vld [vmem:[#allocation9 + $0xc] sm:$0xf]
    %v2877 = vld [vmem:[#allocation9 + $0x24] sm:$0xf]
    %v2878 = vld [vmem:[#allocation9 + $0x3c] sm:$0xf]
    %v2879 = vld [vmem:[#allocation9 + $0x54] sm:$0xf]
    %v2880 = vld [vmem:[#allocation9 + $0x6c] sm:$0xf]
    %v2881 = vld [vmem:[#allocation9 + $0x84] sm:$0xf]
    %v2882 = vld [vmem:[#allocation9 + $0x9c] sm:$0xf]
    %v2883 = vld [vmem:[#allocation9 + $0xb4] sm:$0xf]
    %v2884 = vld [vmem:[#allocation9 + $0xcc] sm:$0xf]
    %v2885 = vld [vmem:[#allocation9 + $0xe4] sm:$0xf]
    %v2886 = vld [vmem:[#allocation9 + $0xfc] sm:$0xf]
    %v2887 = vld [vmem:[#allocation9 + $0x114] sm:$0xf]
    %v2888 = vld [vmem:[#allocation9 + $0x12c] sm:$0xf]
    %v2889 = vld [vmem:[#allocation9 + $0x144] sm:$0xf]
    %v2890 = vld [vmem:[#allocation9 + $0x15c] sm:$0xf]
    %v2891 = vld [vmem:[#allocation9 + $0x174] sm:$0xf]
    %v2892 = vld [vmem:[#allocation9 + $0x18c] sm:$0xf]
    %v2893 = vld [vmem:[#allocation9 + $0x1a4] sm:$0xf]
    %v2894 = vld [vmem:[#allocation9 + $0x1bc] sm:$0xf]
    %v2895 = vld [vmem:[#allocation9 + $0x1d4] sm:$0xf]
    %v2896 = vld [vmem:[#allocation9 + $0x1ec] sm:$0xf]
    %v2897 = vld [vmem:[#allocation9 + $0x204] sm:$0xf]
    %v2898 = vld [vmem:[#allocation9 + $0x21c] sm:$0xf]
    %v2899 = vld [vmem:[#allocation9 + $0x234] sm:$0xf]
    %v2900 = vld [vmem:[#allocation9 + $0x24c] sm:$0xf]
    %v2901 = vld [vmem:[#allocation9 + $0x264] sm:$0xf]
    %v2902 = vld [vmem:[#allocation9 + $0x27c] sm:$0xf]
    %v2903 = vld [vmem:[#allocation9 + $0x294] sm:$0xf]
    %v2904 = vld [vmem:[#allocation9 + $0x2ac] sm:$0xf]
    %v2905 = vld [vmem:[#allocation9 + $0x2c4] sm:$0xf]
    %v2906 = vld [vmem:[#allocation9 + $0x2dc] sm:$0xf]
    %v2907 = vld [vmem:[#allocation9 + $0x2f4] sm:$0xf]
    %v2908 = vld [vmem:[#allocation9 + $0x30c] sm:$0xf]
    %v2909 = vld [vmem:[#allocation9 + $0x324] sm:$0xf]
    %v2910 = vld [vmem:[#allocation9 + $0x33c] sm:$0xf]
    %v2911 = vld [vmem:[#allocation9 + $0x354] sm:$0xf]
    %v2912 = vld [vmem:[#allocation9 + $0x36c] sm:$0xf]
    %v2913 = vld [vmem:[#allocation9 + $0x384] sm:$0xf]
    %v2914 = vld [vmem:[#allocation9 + $0x39c] sm:$0xf]
    %v2915 = vld [vmem:[#allocation9 + $0x3b4] sm:$0xf]
    %v2916 = vld [vmem:[#allocation9 + $0x3cc] sm:$0xf]
    %v2917 = vld [vmem:[#allocation9 + $0x3e4] sm:$0xf]
    %v2918 = vld [vmem:[#allocation9 + $0x3fc] sm:$0xf]
    %v2919 = vld [vmem:[#allocation9 + $0x414] sm:$0xf]
    %v2920 = vld [vmem:[#allocation9 + $0x42c] sm:$0xf]
    %v2921 = vld [vmem:[#allocation9 + $0x444] sm:$0xf]
    %v2922 = vld [vmem:[#allocation9 + $0x45c] sm:$0xf]
    %v2923 = vld [vmem:[#allocation9 + $0x474] sm:$0xf]
    %v2924 = vld [vmem:[#allocation9 + $0x48c] sm:$0xf]
    %v2925 = vld [vmem:[#allocation9 + $0x4a4] sm:$0xf]
    %v2926 = vld [vmem:[#allocation9 + $0x4bc] sm:$0xf]
    %v2927 = vld [vmem:[#allocation9 + $0x4d4] sm:$0xf]
    %v2928 = vld [vmem:[#allocation9 + $0x4ec] sm:$0xf]
    %v2929 = vld [vmem:[#allocation9 + $0x504] sm:$0xf]
    %v2930 = vld [vmem:[#allocation9 + $0x51c] sm:$0xf]
    %v2931 = vld [vmem:[#allocation9 + $0x534] sm:$0xf]
    %v2932 = vld [vmem:[#allocation9 + $0x54c] sm:$0xf]
    %v2933 = vld [vmem:[#allocation9 + $0x564] sm:$0xf]
    %v2934 = vld [vmem:[#allocation9 + $0x57c] sm:$0xf]
    %v2935 = vld [vmem:[#allocation9 + $0x594] sm:$0xf]
    %v2936 = vld [vmem:[#allocation9 + $0x5ac] sm:$0xf]
    %v2937 = vld [vmem:[#allocation9 + $0x5c4] sm:$0xf]
    %v2938 = vld [vmem:[#allocation9 + $0x5dc] sm:$0xf]
    %v2939 = vld [vmem:[#allocation9 + $0x5f4] sm:$0xf]
    %v2940 = vld [vmem:[#allocation11 + $0xf] sm:$0x1]
    %v2941 = vlaneseq
    %v2942 = vshrl.u32 %v2941, 7
    %v2943 = vsub.s32 0, %v2942
    %v2944 = vrot.slane %v2940, %v2943
    %v3009 = vunpack.c.l.b16 %v2876
    %v3010 = vunpack.c.l.b16 %v2877
    %v3011 = vunpack.c.l.b16 %v2878
    %v3012 = vunpack.c.l.b16 %v2879
    %v3013 = vunpack.c.l.b16 %v2880
    %v3014 = vunpack.c.l.b16 %v2881
    %v3015 = vunpack.c.l.b16 %v2882
    %v3016 = vunpack.c.l.b16 %v2883
    %v3017 = vunpack.c.l.b16 %v2884
    %v3018 = vunpack.c.l.b16 %v2885
    %v3019 = vunpack.c.l.b16 %v2886
    %v3020 = vunpack.c.l.b16 %v2887
    %v3021 = vunpack.c.l.b16 %v2888
    %v3022 = vunpack.c.l.b16 %v2889
    %v3023 = vunpack.c.l.b16 %v2890
    %v3024 = vunpack.c.l.b16 %v2891
    %v3025 = vunpack.c.l.b16 %v2892
    %v3026 = vunpack.c.l.b16 %v2893
    %v3027 = vunpack.c.l.b16 %v2894
    %v3028 = vunpack.c.l.b16 %v2895
    %v3029 = vunpack.c.l.b16 %v2896
    %v3030 = vunpack.c.l.b16 %v2897
    %v3031 = vunpack.c.l.b16 %v2898
    %v3032 = vunpack.c.l.b16 %v2899
    %v3033 = vunpack.c.l.b16 %v2900
    %v3034 = vunpack.c.l.b16 %v2901
    %v3035 = vunpack.c.l.b16 %v2902
    %v3036 = vunpack.c.l.b16 %v2903
    %v3037 = vunpack.c.l.b16 %v2904
    %v3038 = vunpack.c.l.b16 %v2905
    %v3039 = vunpack.c.l.b16 %v2906
    %v3040 = vunpack.c.l.b16 %v2907
    %v3041 = vunpack.c.l.b16 %v2908
    %v3042 = vunpack.c.l.b16 %v2909
    %v3043 = vunpack.c.l.b16 %v2910
    %v3044 = vunpack.c.l.b16 %v2911
    %v3045 = vunpack.c.l.b16 %v2912
    %v3046 = vunpack.c.l.b16 %v2913
    %v3047 = vunpack.c.l.b16 %v2914
    %v3048 = vunpack.c.l.b16 %v2915
    %v3049 = vunpack.c.l.b16 %v2916
    %v3050 = vunpack.c.l.b16 %v2917
    %v3051 = vunpack.c.l.b16 %v2918
    %v3052 = vunpack.c.l.b16 %v2919
    %v3053 = vunpack.c.l.b16 %v2920
    %v3054 = vunpack.c.l.b16 %v2921
    %v3055 = vunpack.c.l.b16 %v2922
    %v3056 = vunpack.c.l.b16 %v2923
    %v3057 = vunpack.c.l.b16 %v2924
    %v3058 = vunpack.c.l.b16 %v2925
    %v3059 = vunpack.c.l.b16 %v2926
    %v3060 = vunpack.c.l.b16 %v2927
    %v3061 = vunpack.c.l.b16 %v2928
    %v3062 = vunpack.c.l.b16 %v2929
    %v3063 = vunpack.c.l.b16 %v2930
    %v3064 = vunpack.c.l.b16 %v2931
    %v3065 = vunpack.c.l.b16 %v2932
    %v3066 = vunpack.c.l.b16 %v2933
    %v3067 = vunpack.c.l.b16 %v2934
    %v3068 = vunpack.c.l.b16 %v2935
    %v3069 = vunpack.c.l.b16 %v2936
    %v3070 = vunpack.c.l.b16 %v2937
    %v3071 = vunpack.c.l.b16 %v2938
    %v3072 = vunpack.c.l.b16 %v2939
    %v3073 = vpack.c.b16 %v3010, %v3009
    %v3074 = vpack.c.b16 %v3012, %v3011
    %v3075 = vpack.c.b16 %v3014, %v3013
    %v3076 = vpack.c.b16 %v3016, %v3015
    %v3077 = vpack.c.b16 %v3018, %v3017
    %v3078 = vpack.c.b16 %v3020, %v3019
    %v3079 = vpack.c.b16 %v3022, %v3021
    %v3080 = vpack.c.b16 %v3024, %v3023
    %v3081 = vpack.c.b16 %v3026, %v3025
    %v3082 = vpack.c.b16 %v3028, %v3027
    %v3083 = vpack.c.b16 %v3030, %v3029
    %v3084 = vpack.c.b16 %v3032, %v3031
    %v3085 = vpack.c.b16 %v3034, %v3033
    %v3086 = vpack.c.b16 %v3036, %v3035
    %v3087 = vpack.c.b16 %v3038, %v3037
    %v3088 = vpack.c.b16 %v3040, %v3039
    %v3089 = vpack.c.b16 %v3042, %v3041
    %v3090 = vpack.c.b16 %v3044, %v3043
    %v3091 = vpack.c.b16 %v3046, %v3045
    %v3092 = vpack.c.b16 %v3048, %v3047
    %v3093 = vpack.c.b16 %v3050, %v3049
    %v3094 = vpack.c.b16 %v3052, %v3051
    %v3095 = vpack.c.b16 %v3054, %v3053
    %v3096 = vpack.c.b16 %v3056, %v3055
    %v3097 = vpack.c.b16 %v3058, %v3057
    %v3098 = vpack.c.b16 %v3060, %v3059
    %v3099 = vpack.c.b16 %v3062, %v3061
    %v3100 = vpack.c.b16 %v3064, %v3063
    %v3101 = vpack.c.b16 %v3066, %v3065
    %v3102 = vpack.c.b16 %v3068, %v3067
    %v3103 = vpack.c.b16 %v3070, %v3069
    %v3104 = vpack.c.b16 %v3072, %v3071
    %3137 = vmatprep.subr.bf16.mxu0 0
    %3138 = vmatpush1.bf16.msra.mxu0 %v3073
    %3139 = vmatprep.subr.bf16.mxu0 0
    %3140 = vmatpush1.bf16.msra.mxu0 %v3074
    %3141 = vmatprep.subr.bf16.mxu0 0
    %3142 = vmatpush1.bf16.msra.mxu0 %v3075
    %3143 = vmatprep.subr.bf16.mxu0 0
    %3144 = vmatpush1.bf16.msra.mxu0 %v3076
    %3145 = vmatprep.subr.bf16.mxu0 0
    %3146 = vmatpush1.bf16.msra.mxu0 %v3077
    %3147 = vmatprep.subr.bf16.mxu0 0
    %3148 = vmatpush1.bf16.msra.mxu0 %v3078
    %3149 = vmatprep.subr.bf16.mxu0 0
    %3150 = vmatpush1.bf16.msra.mxu0 %v3079
    %3151 = vmatprep.subr.bf16.mxu0 0
    %3152 = vmatpush1.bf16.msra.mxu0 %v3080
    %3153 = vmatprep.subr.bf16.mxu0 0
    %3154 = vmatpush1.bf16.msra.mxu0 %v3081
    %3155 = vmatprep.subr.bf16.mxu0 0
    %3156 = vmatpush1.bf16.msra.mxu0 %v3082
    %3157 = vmatprep.subr.bf16.mxu0 0
    %3158 = vmatpush1.bf16.msra.mxu0 %v3083
    %3159 = vmatprep.subr.bf16.mxu0 0
    %3160 = vmatpush1.bf16.msra.mxu0 %v3084
    %3161 = vmatprep.subr.bf16.mxu0 0
    %3162 = vmatpush1.bf16.msra.mxu0 %v3085
    %3163 = vmatprep.subr.bf16.mxu0 0
    %3164 = vmatpush1.bf16.msra.mxu0 %v3086
    %3165 = vmatprep.subr.bf16.mxu0 0
    %3166 = vmatpush1.bf16.msra.mxu0 %v3087
    %3167 = vmatprep.subr.bf16.mxu0 0
    %3168 = vmatpush1.bf16.msra.mxu0 %v3088
    %3169 = vmatprep.mubr.bf16.mxu0 %v2873
    %3170 = vmatmul.mubr.bf16.gmra.mrb[0].mxu0 %v2872
    %v3171 = vpop.f32.mrb[0].mxu0
    %v3172 = vadd.f32 %v2944, %v3171
    %v3173 = vpop.f32.mrb[0].mxu0
    %v3174 = vpop.f32.mrb[0].mxu0
    %v3175 = vpop.f32.mrb[0].mxu0
    %3176 = vdwg.mxu0
    %3177 = vmatprep.subr.bf16.mxu0 0
    %3178 = vmatpush1.bf16.msra.mxu0 %v3089
    %3179 = vmatprep.subr.bf16.mxu0 0
    %3180 = vmatpush1.bf16.msra.mxu0 %v3090
    %3181 = vmatprep.subr.bf16.mxu0 0
    %3182 = vmatpush1.bf16.msra.mxu0 %v3091
    %3183 = vmatprep.subr.bf16.mxu0 0
    %3184 = vmatpush1.bf16.msra.mxu0 %v3092
    %3185 = vmatprep.subr.bf16.mxu0 0
    %3186 = vmatpush1.bf16.msra.mxu0 %v3093
    %3187 = vmatprep.subr.bf16.mxu0 0
    %3188 = vmatpush1.bf16.msra.mxu0 %v3094
    %3189 = vmatprep.subr.bf16.mxu0 0
    %3190 = vmatpush1.bf16.msra.mxu0 %v3095
    %3191 = vmatprep.subr.bf16.mxu0 0
    %3192 = vmatpush1.bf16.msra.mxu0 %v3096
    %3193 = vmatprep.subr.bf16.mxu0 0
    %3194 = vmatpush1.bf16.msra.mxu0 %v3097
    %3195 = vmatprep.subr.bf16.mxu0 0
    %3196 = vmatpush1.bf16.msra.mxu0 %v3098
    %3197 = vmatprep.subr.bf16.mxu0 0
    %3198 = vmatpush1.bf16.msra.mxu0 %v3099
    %3199 = vmatprep.subr.bf16.mxu0 0
    %3200 = vmatpush1.bf16.msra.mxu0 %v3100
    %3201 = vmatprep.subr.bf16.mxu0 0
    %3202 = vmatpush1.bf16.msra.mxu0 %v3101
    %3203 = vmatprep.subr.bf16.mxu0 0
    %3204 = vmatpush1.bf16.msra.mxu0 %v3102
    %3205 = vmatprep.subr.bf16.mxu0 0
    %3206 = vmatpush1.bf16.msra.mxu0 %v3103
    %3207 = vmatprep.subr.bf16.mxu0 0
    %3208 = vmatpush1.bf16.msra.mxu0 %v3104
    %3209 = vmatprep.mubr.bf16.mxu0 %v2875
    %3210 = vmatmul.mubr.bf16.gmra.mrb[0].mxu0 %v2874
    %v3211 = vpop.f32.mrb[0].mxu0
    %v3212 = vadd.f32 %v3172, %v3211
    %v3213 = vpop.f32.mrb[0].mxu0
    %v3214 = vpop.f32.mrb[0].mxu0
    %v3215 = vpop.f32.mrb[0].mxu0
    %3216 = vdwg.mxu0
    %v3217 = vadd.f32 %v2537, %v3212
    %3218 = vadd.xlane.f32.xlu0 %v3217
    %v3219 = vpop.xlane.xlu0 %3218
    %v3220 = vmul.f32 %v3219, %v837
    %v3221 = vmul.f32 %v3217, %v3217
    %3222 = vadd.xlane.f32.xlu0 %v3221
    %v3223 = vpop.xlane.xlu0 %3222
    %v3224 = vmul.f32 %v3223, %v837
    %v3225 = vmul.f32 %v3220, %v3220
    %v3226 = vsub.f32 %v3224, %v3225
    %v3227 = vsub.f32 %v3217, %v3220
    %v3228 = vadd.f32 %v3226, 1e-05
    %v3229 = vrsqrt.pop %v3228
    %v3230 = vmul.f32 %v3227, %v3229
    %v3231 = vmul.f32 %v3230, %v2531
    %v3232 = vadd.f32 %v3231, %v2536
    %3233 = vst [vmem:[#allocation2] sm:$0xff] %v2291
    %3234 = vst [vmem:[#allocation2 + $0x8] sm:$0xff] %v3232
    %v3235 = vld [vmem:[#allocation2] sm:$0xff]
    %v3236 = vld [vmem:[#allocation2 + $0x8] sm:$0xff]
    %v3237 = vpack.c.bf16 %v3235, %v3235
    %v3238 = vpack.c.bf16 %v3236, %v3236
    %v3239 = vld [vmem:[#allocation8] sm:$0xff]
    %v3240 = vld [vmem:[#allocation8 + $0x8] sm:$0xff]
    %v3241 = vld [vmem:[#allocation8 + $0x24] sm:$0xff]
    %v3242 = vld [vmem:[#allocation8 + $0x2c] sm:$0xff]
    %v3243 = vld [vmem:[#allocation8 + $0x48] sm:$0xff]
    %v3244 = vld [vmem:[#allocation8 + $0x50] sm:$0xff]
    %v3245 = vld [vmem:[#allocation8 + $0x6c] sm:$0xff]
    %v3246 = vld [vmem:[#allocation8 + $0x74] sm:$0xff]
    %v3247 = vld [vmem:[#allocation8 + $0x90] sm:$0xff]
    %v3248 = vld [vmem:[#allocation8 + $0x98] sm:$0xff]
    %v3249 = vld [vmem:[#allocation8 + $0xb4] sm:$0xff]
    %v3250 = vld [vmem:[#allocation8 + $0xbc] sm:$0xff]
    %v3251 = vld [vmem:[#allocation8 + $0xd8] sm:$0xff]
    %v3252 = vld [vmem:[#allocation8 + $0xe0] sm:$0xff]
    %v3253 = vld [vmem:[#allocation8 + $0xfc] sm:$0xff]
    %v3254 = vld [vmem:[#allocation8 + $0x104] sm:$0xff]
    %v3255 = vld [vmem:[#allocation8 + $0x120] sm:$0xff]
    %v3256 = vld [vmem:[#allocation8 + $0x128] sm:$0xff]
    %v3257 = vld [vmem:[#allocation8 + $0x144] sm:$0xff]
    %v3258 = vld [vmem:[#allocation8 + $0x14c] sm:$0xff]
    %v3259 = vld [vmem:[#allocation8 + $0x168] sm:$0xff]
    %v3260 = vld [vmem:[#allocation8 + $0x170] sm:$0xff]
    %v3261 = vld [vmem:[#allocation8 + $0x18c] sm:$0xff]
    %v3262 = vld [vmem:[#allocation8 + $0x194] sm:$0xff]
    %v3263 = vld [vmem:[#allocation8 + $0x1b0] sm:$0xff]
    %v3264 = vld [vmem:[#allocation8 + $0x1b8] sm:$0xff]
    %v3265 = vld [vmem:[#allocation8 + $0x1d4] sm:$0xff]
    %v3266 = vld [vmem:[#allocation8 + $0x1dc] sm:$0xff]
    %v3267 = vld [vmem:[#allocation8 + $0x1f8] sm:$0xff]
    %v3268 = vld [vmem:[#allocation8 + $0x200] sm:$0xff]
    %v3269 = vld [vmem:[#allocation8 + $0x21c] sm:$0xff]
    %v3270 = vld [vmem:[#allocation8 + $0x224] sm:$0xff]
    %v3271 = vld [vmem:[#allocation8 + $0x240] sm:$0xff]
    %v3272 = vld [vmem:[#allocation8 + $0x248] sm:$0xff]
    %v3273 = vld [vmem:[#allocation8 + $0x264] sm:$0xff]
    %v3274 = vld [vmem:[#allocation8 + $0x26c] sm:$0xff]
    %v3275 = vld [vmem:[#allocation8 + $0x288] sm:$0xff]
    %v3276 = vld [vmem:[#allocation8 + $0x290] sm:$0xff]
    %v3277 = vld [vmem:[#allocation8 + $0x2ac] sm:$0xff]
    %v3278 = vld [vmem:[#allocation8 + $0x2b4] sm:$0xff]
    %v3279 = vld [vmem:[#allocation8 + $0x2d0] sm:$0xff]
    %v3280 = vld [vmem:[#allocation8 + $0x2d8] sm:$0xff]
    %v3281 = vld [vmem:[#allocation8 + $0x2f4] sm:$0xff]
    %v3282 = vld [vmem:[#allocation8 + $0x2fc] sm:$0xff]
    %v3283 = vld [vmem:[#allocation8 + $0x318] sm:$0xff]
    %v3284 = vld [vmem:[#allocation8 + $0x320] sm:$0xff]
    %v3285 = vld [vmem:[#allocation8 + $0x33c] sm:$0xff]
    %v3286 = vld [vmem:[#allocation8 + $0x344] sm:$0xff]
    %v3287 = vld [vmem:[#allocation8 + $0x360] sm:$0xff]
    %v3288 = vld [vmem:[#allocation8 + $0x368] sm:$0xff]
    %v3289 = vld [vmem:[#allocation8 + $0x384] sm:$0xff]
    %v3290 = vld [vmem:[#allocation8 + $0x38c] sm:$0xff]
    %v3291 = vld [vmem:[#allocation8 + $0x3a8] sm:$0xff]
    %v3292 = vld [vmem:[#allocation8 + $0x3b0] sm:$0xff]
    %v3293 = vld [vmem:[#allocation8 + $0x3cc] sm:$0xff]
    %v3294 = vld [vmem:[#allocation8 + $0x3d4] sm:$0xff]
    %v3295 = vld [vmem:[#allocation8 + $0x3f0] sm:$0xff]
    %v3296 = vld [vmem:[#allocation8 + $0x3f8] sm:$0xff]
    %v3297 = vld [vmem:[#allocation8 + $0x414] sm:$0xff]
    %v3298 = vld [vmem:[#allocation8 + $0x41c] sm:$0xff]
    %v3299 = vld [vmem:[#allocation8 + $0x438] sm:$0xff]
    %v3300 = vld [vmem:[#allocation8 + $0x440] sm:$0xff]
    %v3301 = vld [vmem:[#allocation8 + $0x45c] sm:$0xff]
    %v3302 = vld [vmem:[#allocation8 + $0x464] sm:$0xff]
    %s3303 = scalar_lea.vmem [#allocation12], 7
    %v3304 = vld [vmem:[%s3303] ss:$8 sm:$0xf]
    %v3306 = vlaneseq
    %v3307 = vshrl.u32 %v3306, 7
    %v3308 = vsub.s32 0, %v3307
    %v3309 = vrot.slane %v3304, %v3308
    %v3310 = vlaneseq
    %v3311 = vshrl.u32 %v3310, 7
    %v3312 = vsub.s32 1, %v3311
    %v3313 = vrot.slane %v3304, %v3312
    %v3314 = vlaneseq
    %v3315 = vshrl.u32 %v3314, 7
    %v3316 = vsub.s32 2, %v3315
    %v3317 = vrot.slane %v3304, %v3316
    %v3318 = vlaneseq
    %v3319 = vshrl.u32 %v3318, 7
    %v3320 = vsub.s32 3, %v3319
    %v3321 = vrot.slane %v3304, %v3320
    %v3390 = vunpack.c.l.b16 %v3239
    %v3391 = vunpack.c.h.b16 %v3239
    %v3392 = vunpack.c.l.b16 %v3240
    %v3393 = vunpack.c.h.b16 %v3240
    %v3394 = vunpack.c.l.b16 %v3241
    %v3395 = vunpack.c.h.b16 %v3241
    %v3396 = vunpack.c.l.b16 %v3242
    %v3397 = vunpack.c.h.b16 %v3242
    %v3398 = vunpack.c.l.b16 %v3243
    %v3399 = vunpack.c.h.b16 %v3243
    %v3400 = vunpack.c.l.b16 %v3244
    %v3401 = vunpack.c.h.b16 %v3244
    %v3402 = vunpack.c.l.b16 %v3245
    %v3403 = vunpack.c.h.b16 %v3245
    %v3404 = vunpack.c.l.b16 %v3246
    %v3405 = vunpack.c.h.b16 %v3246
    %v3406 = vunpack.c.l.b16 %v3247
    %v3407 = vunpack.c.h.b16 %v3247
    %v3408 = vunpack.c.l.b16 %v3248
    %v3409 = vunpack.c.h.b16 %v3248
    %v3410 = vunpack.c.l.b16 %v3249
    %v3411 = vunpack.c.h.b16 %v3249
    %v3412 = vunpack.c.l.b16 %v3250
    %v3413 = vunpack.c.h.b16 %v3250
    %v3414 = vunpack.c.l.b16 %v3251
    %v3415 = vunpack.c.h.b16 %v3251
    %v3416 = vunpack.c.l.b16 %v3252
    %v3417 = vunpack.c.h.b16 %v3252
    %v3418 = vunpack.c.l.b16 %v3253
    %v3419 = vunpack.c.h.b16 %v3253
    %v3420 = vunpack.c.l.b16 %v3254
    %v3421 = vunpack.c.h.b16 %v3254
    %v3422 = vunpack.c.l.b16 %v3255
    %v3423 = vunpack.c.h.b16 %v3255
    %v3424 = vunpack.c.l.b16 %v3256
    %v3425 = vunpack.c.h.b16 %v3256
    %v3426 = vunpack.c.l.b16 %v3257
    %v3427 = vunpack.c.h.b16 %v3257
    %v3428 = vunpack.c.l.b16 %v3258
    %v3429 = vunpack.c.h.b16 %v3258
    %v3430 = vunpack.c.l.b16 %v3259
    %v3431 = vunpack.c.h.b16 %v3259
    %v3432 = vunpack.c.l.b16 %v3260
    %v3433 = vunpack.c.h.b16 %v3260
    %v3434 = vunpack.c.l.b16 %v3261
    %v3435 = vunpack.c.h.b16 %v3261
    %v3436 = vunpack.c.l.b16 %v3262
    %v3437 = vunpack.c.h.b16 %v3262
    %v3438 = vunpack.c.l.b16 %v3263
    %v3439 = vunpack.c.h.b16 %v3263
    %v3440 = vunpack.c.l.b16 %v3264
    %v3441 = vunpack.c.h.b16 %v3264
    %v3442 = vunpack.c.l.b16 %v3265
    %v3443 = vunpack.c.h.b16 %v3265
    %v3444 = vunpack.c.l.b16 %v3266
    %v3445 = vunpack.c.h.b16 %v3266
    %v3446 = vunpack.c.l.b16 %v3267
    %v3447 = vunpack.c.h.b16 %v3267
    %v3448 = vunpack.c.l.b16 %v3268
    %v3449 = vunpack.c.h.b16 %v3268
    %v3450 = vunpack.c.l.b16 %v3269
    %v3451 = vunpack.c.h.b16 %v3269
    %v3452 = vunpack.c.l.b16 %v3270
    %v3453 = vunpack.c.h.b16 %v3270
    %v3454 = vunpack.c.l.b16 %v3271
    %v3455 = vunpack.c.h.b16 %v3271
    %v3456 = vunpack.c.l.b16 %v3272
    %v3457 = vunpack.c.h.b16 %v3272
    %v3458 = vunpack.c.l.b16 %v3273
    %v3459 = vunpack.c.h.b16 %v3273
    %v3460 = vunpack.c.l.b16 %v3274
    %v3461 = vunpack.c.h.b16 %v3274
    %v3462 = vunpack.c.l.b16 %v3275
    %v3463 = vunpack.c.h.b16 %v3275
    %v3464 = vunpack.c.l.b16 %v3276
    %v3465 = vunpack.c.h.b16 %v3276
    %v3466 = vunpack.c.l.b16 %v3277
    %v3467 = vunpack.c.h.b16 %v3277
    %v3468 = vunpack.c.l.b16 %v3278
    %v3469 = vunpack.c.h.b16 %v3278
    %v3470 = vunpack.c.l.b16 %v3279
    %v3471 = vunpack.c.h.b16 %v3279
    %v3472 = vunpack.c.l.b16 %v3280
    %v3473 = vunpack.c.h.b16 %v3280
    %v3474 = vunpack.c.l.b16 %v3281
    %v3475 = vunpack.c.h.b16 %v3281
    %v3476 = vunpack.c.l.b16 %v3282
    %v3477 = vunpack.c.h.b16 %v3282
    %v3478 = vunpack.c.l.b16 %v3283
    %v3479 = vunpack.c.h.b16 %v3283
    %v3480 = vunpack.c.l.b16 %v3284
    %v3481 = vunpack.c.h.b16 %v3284
    %v3482 = vunpack.c.l.b16 %v3285
    %v3483 = vunpack.c.h.b16 %v3285
    %v3484 = vunpack.c.l.b16 %v3286
    %v3485 = vunpack.c.h.b16 %v3286
    %v3486 = vunpack.c.l.b16 %v3287
    %v3487 = vunpack.c.h.b16 %v3287
    %v3488 = vunpack.c.l.b16 %v3288
    %v3489 = vunpack.c.h.b16 %v3288
    %v3490 = vunpack.c.l.b16 %v3289
    %v3491 = vunpack.c.h.b16 %v3289
    %v3492 = vunpack.c.l.b16 %v3290
    %v3493 = vunpack.c.h.b16 %v3290
    %v3494 = vunpack.c.l.b16 %v3291
    %v3495 = vunpack.c.h.b16 %v3291
    %v3496 = vunpack.c.l.b16 %v3292
    %v3497 = vunpack.c.h.b16 %v3292
    %v3498 = vunpack.c.l.b16 %v3293
    %v3499 = vunpack.c.h.b16 %v3293
    %v3500 = vunpack.c.l.b16 %v3294
    %v3501 = vunpack.c.h.b16 %v3294
    %v3502 = vunpack.c.l.b16 %v3295
    %v3503 = vunpack.c.h.b16 %v3295
    %v3504 = vunpack.c.l.b16 %v3296
    %v3505 = vunpack.c.h.b16 %v3296
    %v3506 = vunpack.c.l.b16 %v3297
    %v3507 = vunpack.c.h.b16 %v3297
    %v3508 = vunpack.c.l.b16 %v3298
    %v3509 = vunpack.c.h.b16 %v3298
    %v3510 = vunpack.c.l.b16 %v3299
    %v3511 = vunpack.c.h.b16 %v3299
    %v3512 = vunpack.c.l.b16 %v3300
    %v3513 = vunpack.c.h.b16 %v3300
    %v3514 = vunpack.c.l.b16 %v3301
    %v3515 = vunpack.c.h.b16 %v3301
    %v3516 = vunpack.c.l.b16 %v3302
    %v3517 = vunpack.c.h.b16 %v3302
    %v3518 = vpack.c.b16 %v3394, %v3390
    %v3519 = vpack.c.b16 %v3395, %v3391
    %v3520 = vpack.c.b16 %v3396, %v3392
    %v3521 = vpack.c.b16 %v3397, %v3393
    %v3522 = vpack.c.b16 %v3402, %v3398
    %v3523 = vpack.c.b16 %v3403, %v3399
    %v3524 = vpack.c.b16 %v3404, %v3400
    %v3525 = vpack.c.b16 %v3405, %v3401
    %v3526 = vpack.c.b16 %v3410, %v3406
    %v3527 = vpack.c.b16 %v3411, %v3407
    %v3528 = vpack.c.b16 %v3412, %v3408
    %v3529 = vpack.c.b16 %v3413, %v3409
    %v3530 = vpack.c.b16 %v3418, %v3414
    %v3531 = vpack.c.b16 %v3419, %v3415
    %v3532 = vpack.c.b16 %v3420, %v3416
    %v3533 = vpack.c.b16 %v3421, %v3417
    %v3534 = vpack.c.b16 %v3426, %v3422
    %v3535 = vpack.c.b16 %v3427, %v3423
    %v3536 = vpack.c.b16 %v3428, %v3424
    %v3537 = vpack.c.b16 %v3429, %v3425
    %v3538 = vpack.c.b16 %v3434, %v3430
    %v3539 = vpack.c.b16 %v3435, %v3431
    %v3540 = vpack.c.b16 %v3436, %v3432
    %v3541 = vpack.c.b16 %v3437, %v3433
    %v3542 = vpack.c.b16 %v3442, %v3438
    %v3543 = vpack.c.b16 %v3443, %v3439
    %v3544 = vpack.c.b16 %v3444, %v3440
    %v3545 = vpack.c.b16 %v3445, %v3441
    %v3546 = vpack.c.b16 %v3450, %v3446
    %v3547 = vpack.c.b16 %v3451, %v3447
    %v3548 = vpack.c.b16 %v3452, %v3448
    %v3549 = vpack.c.b16 %v3453, %v3449
    %v3550 = vpack.c.b16 %v3458, %v3454
    %v3551 = vpack.c.b16 %v3459, %v3455
    %v3552 = vpack.c.b16 %v3460, %v3456
    %v3553 = vpack.c.b16 %v3461, %v3457
    %v3554 = vpack.c.b16 %v3466, %v3462
    %v3555 = vpack.c.b16 %v3467, %v3463
    %v3556 = vpack.c.b16 %v3468, %v3464
    %v3557 = vpack.c.b16 %v3469, %v3465
    %v3558 = vpack.c.b16 %v3474, %v3470
    %v3559 = vpack.c.b16 %v3475, %v3471
    %v3560 = vpack.c.b16 %v3476, %v3472
    %v3561 = vpack.c.b16 %v3477, %v3473
    %v3562 = vpack.c.b16 %v3482, %v3478
    %v3563 = vpack.c.b16 %v3483, %v3479
    %v3564 = vpack.c.b16 %v3484, %v3480
    %v3565 = vpack.c.b16 %v3485, %v3481
    %v3566 = vpack.c.b16 %v3490, %v3486
    %v3567 = vpack.c.b16 %v3491, %v3487
    %v3568 = vpack.c.b16 %v3492, %v3488
    %v3569 = vpack.c.b16 %v3493, %v3489
    %v3570 = vpack.c.b16 %v3498, %v3494
    %v3571 = vpack.c.b16 %v3499, %v3495
    %v3572 = vpack.c.b16 %v3500, %v3496
    %v3573 = vpack.c.b16 %v3501, %v3497
    %v3574 = vpack.c.b16 %v3506, %v3502
    %v3575 = vpack.c.b16 %v3507, %v3503
    %v3576 = vpack.c.b16 %v3508, %v3504
    %v3577 = vpack.c.b16 %v3509, %v3505
    %v3578 = vpack.c.b16 %v3514, %v3510
    %v3579 = vpack.c.b16 %v3515, %v3511
    %v3580 = vpack.c.b16 %v3516, %v3512
    %v3581 = vpack.c.b16 %v3517, %v3513
    %3646 = vmatprep.subr.bf16.mxu0 %v3519
    %3647 = vmatpush1.bf16.msra.mxu0 %v3518
    %3648 = vmatprep.subr.bf16.mxu0 %v3523
    %3649 = vmatpush1.bf16.msra.mxu0 %v3522
    %3650 = vmatprep.subr.bf16.mxu0 %v3527
    %3651 = vmatpush1.bf16.msra.mxu0 %v3526
    %3652 = vmatprep.subr.bf16.mxu0 %v3531
    %3653 = vmatpush1.bf16.msra.mxu0 %v3530
    %3654 = vmatprep.subr.bf16.mxu0 %v3535
    %3655 = vmatpush1.bf16.msra.mxu0 %v3534
    %3656 = vmatprep.subr.bf16.mxu0 %v3539
    %3657 = vmatpush1.bf16.msra.mxu0 %v3538
    %3658 = vmatprep.subr.bf16.mxu0 %v3543
    %3659 = vmatpush1.bf16.msra.mxu0 %v3542
    %3660 = vmatprep.subr.bf16.mxu0 %v3547
    %3661 = vmatpush1.bf16.msra.mxu0 %v3546
    %3662 = vmatprep.subr.bf16.mxu0 %v3551
    %3663 = vmatpush1.bf16.msra.mxu0 %v3550
    %3664 = vmatprep.subr.bf16.mxu0 %v3555
    %3665 = vmatpush1.bf16.msra.mxu0 %v3554
    %3666 = vmatprep.subr.bf16.mxu0 %v3559
    %3667 = vmatpush1.bf16.msra.mxu0 %v3558
    %3668 = vmatprep.subr.bf16.mxu0 %v3563
    %3669 = vmatpush1.bf16.msra.mxu0 %v3562
    %3670 = vmatprep.subr.bf16.mxu0 %v3567
    %3671 = vmatpush1.bf16.msra.mxu0 %v3566
    %3672 = vmatprep.subr.bf16.mxu0 %v3571
    %3673 = vmatpush1.bf16.msra.mxu0 %v3570
    %3674 = vmatprep.subr.bf16.mxu0 %v3575
    %3675 = vmatpush1.bf16.msra.mxu0 %v3574
    %3676 = vmatprep.subr.bf16.mxu0 %v3579
    %3677 = vmatpush1.bf16.msra.mxu0 %v3578
    %3678 = vmatprep.mubr.bf16.mxu0 %v3238
    %3679 = vmatmul.mubr.bf16.gmra.mrb[0].mxu0 %v3237
    %v3680 = vpop.f32.mrb[0].mxu0
    %v3681 = vadd.f32 %v3309, %v3680
    %v3682 = vpop.f32.mrb[0].mxu0
    %v3683 = vadd.f32 %v3313, %v3682
    %v3684 = vpop.f32.mrb[0].mxu0
    %v3685 = vpop.f32.mrb[0].mxu0
    %3686 = vdwg.mxu0
    %3687 = vmatprep.subr.bf16.mxu0 %v3521
    %3688 = vmatpush1.bf16.msra.mxu0 %v3520
    %3689 = vmatprep.subr.bf16.mxu0 %v3525
    %3690 = vmatpush1.bf16.msra.mxu0 %v3524
    %3691 = vmatprep.subr.bf16.mxu0 %v3529
    %3692 = vmatpush1.bf16.msra.mxu0 %v3528
    %3693 = vmatprep.subr.bf16.mxu0 %v3533
    %3694 = vmatpush1.bf16.msra.mxu0 %v3532
    %3695 = vmatprep.subr.bf16.mxu0 %v3537
    %3696 = vmatpush1.bf16.msra.mxu0 %v3536
    %3697 = vmatprep.subr.bf16.mxu0 %v3541
    %3698 = vmatpush1.bf16.msra.mxu0 %v3540
    %3699 = vmatprep.subr.bf16.mxu0 %v3545
    %3700 = vmatpush1.bf16.msra.mxu0 %v3544
    %3701 = vmatprep.subr.bf16.mxu0 %v3549
    %3702 = vmatpush1.bf16.msra.mxu0 %v3548
    %3703 = vmatprep.subr.bf16.mxu0 %v3553
    %3704 = vmatpush1.bf16.msra.mxu0 %v3552
    %3705 = vmatprep.subr.bf16.mxu0 %v3557
    %3706 = vmatpush1.bf16.msra.mxu0 %v3556
    %3707 = vmatprep.subr.bf16.mxu0 %v3561
    %3708 = vmatpush1.bf16.msra.mxu0 %v3560
    %3709 = vmatprep.subr.bf16.mxu0 %v3565
    %3710 = vmatpush1.bf16.msra.mxu0 %v3564
    %3711 = vmatprep.subr.bf16.mxu0 %v3569
    %3712 = vmatpush1.bf16.msra.mxu0 %v3568
    %3713 = vmatprep.subr.bf16.mxu0 %v3573
    %3714 = vmatpush1.bf16.msra.mxu0 %v3572
    %3715 = vmatprep.subr.bf16.mxu0 %v3577
    %3716 = vmatpush1.bf16.msra.mxu0 %v3576
    %3717 = vmatprep.subr.bf16.mxu0 %v3581
    %3718 = vmatpush1.bf16.msra.mxu0 %v3580
    %3719 = vmatprep.mubr.bf16.mxu0 %v3238
    %3720 = vmatmul.mubr.bf16.gmra.mrb[0].mxu0 %v3237
    %v3721 = vpop.f32.mrb[0].mxu0
    %v3722 = vadd.f32 %v3317, %v3721
    %v3723 = vpop.f32.mrb[0].mxu0
    %v3724 = vadd.f32 %v3321, %v3723
    %v3725 = vpop.f32.mrb[0].mxu0
    %v3726 = vpop.f32.mrb[0].mxu0
    %3727 = vdwg.mxu0
    %v3728 = vmul.f32 %v3681, 0.5
    %v3729 = vmul.f32 %v3683, 0.5
    %v3730 = vmul.f32 %v3722, 0.5
    %v3731 = vmul.f32 %v3724, 0.5
    %v3732 = vmul.f32 %v3681, %v3681
    %v3733 = vmul.f32 %v3683, %v3683
    %v3734 = vmul.f32 %v3722, %v3722
    %v3735 = vmul.f32 %v3724, %v3724
    %v3736 = vmul.f32 %v3732, %v3681
    %v3737 = vmul.f32 %v3733, %v3683
    %v3738 = vmul.f32 %v3734, %v3722
    %v3739 = vmul.f32 %v3735, %v3724
    %v3740 = vmul.f32 %v3736, 0.044715
    %v3741 = vmul.f32 %v3737, 0.044715
    %v3742 = vmul.f32 %v3738, 0.044715
    %v3743 = vmul.f32 %v3739, 0.044715
    %v3744 = vadd.f32 %v3681, %v3740
    %v3745 = vadd.f32 %v3683, %v3741
    %v3746 = vadd.f32 %v3722, %v3742
    %v3747 = vadd.f32 %v3724, %v3743
    %v3748 = vmul.f32 %v3744, 0.7978846
    %v3749 = vmul.f32 %v3745, 0.7978846
    %v3750 = vmul.f32 %v3746, 0.7978846
    %v3751 = vmul.f32 %v3747, 0.7978846
    %v3752 = vtanh.pop %v3748
    %v3753 = vtanh.pop %v3749
    %v3754 = vtanh.pop %v3750
    %v3755 = vtanh.pop %v3751
    %v3756 = vadd.f32 %v3752, 1.0
    %v3757 = vadd.f32 %v3753, 1.0
    %v3758 = vadd.f32 %v3754, 1.0
    %v3759 = vadd.f32 %v3755, 1.0
    %v3760 = vmul.f32 %v3728, %v3756
    %v3761 = vmul.f32 %v3729, %v3757
    %v3762 = vmul.f32 %v3730, %v3758
    %v3763 = vmul.f32 %v3731, %v3759
    %v3764 = vadd.f32 %v3760, %v3761
    %v3765 = vadd.f32 %v3764, %v3762
    %v3766 = vadd.f32 %v3765, %v3763
    %3767 = vadd.xlane.f32.xlu0 %v3766
    %v3768 = vpop.xlane.xlu0 %3767
    %v3769 = vmul.f32 %v3768, %v464
    %v3770 = vmul.f32 %v3760, %v3760
    %v3771 = vmul.f32 %v3761, %v3761
    %v3772 = vmul.f32 %v3762, %v3762
    %v3773 = vmul.f32 %v3763, %v3763
    %v3774 = vadd.f32 %v3770, %v3771
    %v3775 = vadd.f32 %v3774, %v3772
    %v3776 = vadd.f32 %v3775, %v3773
    %3777 = vadd.xlane.f32.xlu0 %v3776
    %v3778 = vpop.xlane.xlu0 %3777
    %v3779 = vmul.f32 %v3778, %v464
    %v3780 = vmul.f32 %v3769, %v3769
    %v3781 = vsub.f32 %v3779, %v3780
    %v3782 = vsub.f32 %v3760, %v3769
    %v3783 = vsub.f32 %v3761, %v3769
    %v3784 = vsub.f32 %v3762, %v3769
    %v3785 = vsub.f32 %v3763, %v3769
    %v3786 = vadd.f32 %v3781, 1e-05
    %v3787 = vrsqrt.pop %v3786
    %v3788 = vmul.f32 %v3782, %v3787
    %v3789 = vmul.f32 %v3783, %v3787
    %v3790 = vmul.f32 %v3784, %v3787
    %v3791 = vmul.f32 %v3785, %v3787
    %v3792 = vpack.c.bf16 %v3788, %v3788
    %v3793 = vpack.c.bf16 %v3789, %v3789
    %v3794 = vpack.c.bf16 %v3790, %v3790
    %v3795 = vpack.c.bf16 %v3791, %v3791
    %v3796 = vld [vmem:[#allocation9 + $0x10] sm:$0xf]
    %v3797 = vld [vmem:[#allocation9 + $0x28] sm:$0xf]
    %v3798 = vld [vmem:[#allocation9 + $0x40] sm:$0xf]
    %v3799 = vld [vmem:[#allocation9 + $0x58] sm:$0xf]
    %v3800 = vld [vmem:[#allocation9 + $0x70] sm:$0xf]
    %v3801 = vld [vmem:[#allocation9 + $0x88] sm:$0xf]
    %v3802 = vld [vmem:[#allocation9 + $0xa0] sm:$0xf]
    %v3803 = vld [vmem:[#allocation9 + $0xb8] sm:$0xf]
    %v3804 = vld [vmem:[#allocation9 + $0xd0] sm:$0xf]
    %v3805 = vld [vmem:[#allocation9 + $0xe8] sm:$0xf]
    %v3806 = vld [vmem:[#allocation9 + $0x100] sm:$0xf]
    %v3807 = vld [vmem:[#allocation9 + $0x118] sm:$0xf]
    %v3808 = vld [vmem:[#allocation9 + $0x130] sm:$0xf]
    %v3809 = vld [vmem:[#allocation9 + $0x148] sm:$0xf]
    %v3810 = vld [vmem:[#allocation9 + $0x160] sm:$0xf]
    %v3811 = vld [vmem:[#allocation9 + $0x178] sm:$0xf]
    %v3812 = vld [vmem:[#allocation9 + $0x190] sm:$0xf]
    %v3813 = vld [vmem:[#allocation9 + $0x1a8] sm:$0xf]
    %v3814 = vld [vmem:[#allocation9 + $0x1c0] sm:$0xf]
    %v3815 = vld [vmem:[#allocation9 + $0x1d8] sm:$0xf]
    %v3816 = vld [vmem:[#allocation9 + $0x1f0] sm:$0xf]
    %v3817 = vld [vmem:[#allocation9 + $0x208] sm:$0xf]
    %v3818 = vld [vmem:[#allocation9 + $0x220] sm:$0xf]
    %v3819 = vld [vmem:[#allocation9 + $0x238] sm:$0xf]
    %v3820 = vld [vmem:[#allocation9 + $0x250] sm:$0xf]
    %v3821 = vld [vmem:[#allocation9 + $0x268] sm:$0xf]
    %v3822 = vld [vmem:[#allocation9 + $0x280] sm:$0xf]
    %v3823 = vld [vmem:[#allocation9 + $0x298] sm:$0xf]
    %v3824 = vld [vmem:[#allocation9 + $0x2b0] sm:$0xf]
    %v3825 = vld [vmem:[#allocation9 + $0x2c8] sm:$0xf]
    %v3826 = vld [vmem:[#allocation9 + $0x2e0] sm:$0xf]
    %v3827 = vld [vmem:[#allocation9 + $0x2f8] sm:$0xf]
    %v3828 = vld [vmem:[#allocation9 + $0x310] sm:$0xf]
    %v3829 = vld [vmem:[#allocation9 + $0x328] sm:$0xf]
    %v3830 = vld [vmem:[#allocation9 + $0x340] sm:$0xf]
    %v3831 = vld [vmem:[#allocation9 + $0x358] sm:$0xf]
    %v3832 = vld [vmem:[#allocation9 + $0x370] sm:$0xf]
    %v3833 = vld [vmem:[#allocation9 + $0x388] sm:$0xf]
    %v3834 = vld [vmem:[#allocation9 + $0x3a0] sm:$0xf]
    %v3835 = vld [vmem:[#allocation9 + $0x3b8] sm:$0xf]
    %v3836 = vld [vmem:[#allocation9 + $0x3d0] sm:$0xf]
    %v3837 = vld [vmem:[#allocation9 + $0x3e8] sm:$0xf]
    %v3838 = vld [vmem:[#allocation9 + $0x400] sm:$0xf]
    %v3839 = vld [vmem:[#allocation9 + $0x418] sm:$0xf]
    %v3840 = vld [vmem:[#allocation9 + $0x430] sm:$0xf]
    %v3841 = vld [vmem:[#allocation9 + $0x448] sm:$0xf]
    %v3842 = vld [vmem:[#allocation9 + $0x460] sm:$0xf]
    %v3843 = vld [vmem:[#allocation9 + $0x478] sm:$0xf]
    %v3844 = vld [vmem:[#allocation9 + $0x490] sm:$0xf]
    %v3845 = vld [vmem:[#allocation9 + $0x4a8] sm:$0xf]
    %v3846 = vld [vmem:[#allocation9 + $0x4c0] sm:$0xf]
    %v3847 = vld [vmem:[#allocation9 + $0x4d8] sm:$0xf]
    %v3848 = vld [vmem:[#allocation9 + $0x4f0] sm:$0xf]
    %v3849 = vld [vmem:[#allocation9 + $0x508] sm:$0xf]
    %v3850 = vld [vmem:[#allocation9 + $0x520] sm:$0xf]
    %v3851 = vld [vmem:[#allocation9 + $0x538] sm:$0xf]
    %v3852 = vld [vmem:[#allocation9 + $0x550] sm:$0xf]
    %v3853 = vld [vmem:[#allocation9 + $0x568] sm:$0xf]
    %v3854 = vld [vmem:[#allocation9 + $0x580] sm:$0xf]
    %v3855 = vld [vmem:[#allocation9 + $0x598] sm:$0xf]
    %v3856 = vld [vmem:[#allocation9 + $0x5b0] sm:$0xf]
    %v3857 = vld [vmem:[#allocation9 + $0x5c8] sm:$0xf]
    %v3858 = vld [vmem:[#allocation9 + $0x5e0] sm:$0xf]
    %v3859 = vld [vmem:[#allocation9 + $0x5f8] sm:$0xf]
    %v3860 = vld [vmem:[#allocation11 + $0x10] sm:$0x1]
    %v3861 = vlaneseq
    %v3862 = vshrl.u32 %v3861, 7
    %v3863 = vsub.s32 0, %v3862
    %v3864 = vrot.slane %v3860, %v3863
    %v3929 = vunpack.c.l.b16 %v3796
    %v3930 = vunpack.c.l.b16 %v3797
    %v3931 = vunpack.c.l.b16 %v3798
    %v3932 = vunpack.c.l.b16 %v3799
    %v3933 = vunpack.c.l.b16 %v3800
    %v3934 = vunpack.c.l.b16 %v3801
    %v3935 = vunpack.c.l.b16 %v3802
    %v3936 = vunpack.c.l.b16 %v3803
    %v3937 = vunpack.c.l.b16 %v3804
    %v3938 = vunpack.c.l.b16 %v3805
    %v3939 = vunpack.c.l.b16 %v3806
    %v3940 = vunpack.c.l.b16 %v3807
    %v3941 = vunpack.c.l.b16 %v3808
    %v3942 = vunpack.c.l.b16 %v3809
    %v3943 = vunpack.c.l.b16 %v3810
    %v3944 = vunpack.c.l.b16 %v3811
    %v3945 = vunpack.c.l.b16 %v3812
    %v3946 = vunpack.c.l.b16 %v3813
    %v3947 = vunpack.c.l.b16 %v3814
    %v3948 = vunpack.c.l.b16 %v3815
    %v3949 = vunpack.c.l.b16 %v3816
    %v3950 = vunpack.c.l.b16 %v3817
    %v3951 = vunpack.c.l.b16 %v3818
    %v3952 = vunpack.c.l.b16 %v3819
    %v3953 = vunpack.c.l.b16 %v3820
    %v3954 = vunpack.c.l.b16 %v3821
    %v3955 = vunpack.c.l.b16 %v3822
    %v3956 = vunpack.c.l.b16 %v3823
    %v3957 = vunpack.c.l.b16 %v3824
    %v3958 = vunpack.c.l.b16 %v3825
    %v3959 = vunpack.c.l.b16 %v3826
    %v3960 = vunpack.c.l.b16 %v3827
    %v3961 = vunpack.c.l.b16 %v3828
    %v3962 = vunpack.c.l.b16 %v3829
    %v3963 = vunpack.c.l.b16 %v3830
    %v3964 = vunpack.c.l.b16 %v3831
    %v3965 = vunpack.c.l.b16 %v3832
    %v3966 = vunpack.c.l.b16 %v3833
    %v3967 = vunpack.c.l.b16 %v3834
    %v3968 = vunpack.c.l.b16 %v3835
    %v3969 = vunpack.c.l.b16 %v3836
    %v3970 = vunpack.c.l.b16 %v3837
    %v3971 = vunpack.c.l.b16 %v3838
    %v3972 = vunpack.c.l.b16 %v3839
    %v3973 = vunpack.c.l.b16 %v3840
    %v3974 = vunpack.c.l.b16 %v3841
    %v3975 = vunpack.c.l.b16 %v3842
    %v3976 = vunpack.c.l.b16 %v3843
    %v3977 = vunpack.c.l.b16 %v3844
    %v3978 = vunpack.c.l.b16 %v3845
    %v3979 = vunpack.c.l.b16 %v3846
    %v3980 = vunpack.c.l.b16 %v3847
    %v3981 = vunpack.c.l.b16 %v3848
    %v3982 = vunpack.c.l.b16 %v3849
    %v3983 = vunpack.c.l.b16 %v3850
    %v3984 = vunpack.c.l.b16 %v3851
    %v3985 = vunpack.c.l.b16 %v3852
    %v3986 = vunpack.c.l.b16 %v3853
    %v3987 = vunpack.c.l.b16 %v3854
    %v3988 = vunpack.c.l.b16 %v3855
    %v3989 = vunpack.c.l.b16 %v3856
    %v3990 = vunpack.c.l.b16 %v3857
    %v3991 = vunpack.c.l.b16 %v3858
    %v3992 = vunpack.c.l.b16 %v3859
    %v3993 = vpack.c.b16 %v3930, %v3929
    %v3994 = vpack.c.b16 %v3932, %v3931
    %v3995 = vpack.c.b16 %v3934, %v3933
    %v3996 = vpack.c.b16 %v3936, %v3935
    %v3997 = vpack.c.b16 %v3938, %v3937
    %v3998 = vpack.c.b16 %v3940, %v3939
    %v3999 = vpack.c.b16 %v3942, %v3941
    %v4000 = vpack.c.b16 %v3944, %v3943
    %v4001 = vpack.c.b16 %v3946, %v3945
    %v4002 = vpack.c.b16 %v3948, %v3947
    %v4003 = vpack.c.b16 %v3950, %v3949
    %v4004 = vpack.c.b16 %v3952, %v3951
    %v4005 = vpack.c.b16 %v3954, %v3953
    %v4006 = vpack.c.b16 %v3956, %v3955
    %v4007 = vpack.c.b16 %v3958, %v3957
    %v4008 = vpack.c.b16 %v3960, %v3959
    %v4009 = vpack.c.b16 %v3962, %v3961
    %v4010 = vpack.c.b16 %v3964, %v3963
    %v4011 = vpack.c.b16 %v3966, %v3965
    %v4012 = vpack.c.b16 %v3968, %v3967
    %v4013 = vpack.c.b16 %v3970, %v3969
    %v4014 = vpack.c.b16 %v3972, %v3971
    %v4015 = vpack.c.b16 %v3974, %v3973
    %v4016 = vpack.c.b16 %v3976, %v3975
    %v4017 = vpack.c.b16 %v3978, %v3977
    %v4018 = vpack.c.b16 %v3980, %v3979
    %v4019 = vpack.c.b16 %v3982, %v3981
    %v4020 = vpack.c.b16 %v3984, %v3983
    %v4021 = vpack.c.b16 %v3986, %v3985
    %v4022 = vpack.c.b16 %v3988, %v3987
    %v4023 = vpack.c.b16 %v3990, %v3989
    %v4024 = vpack.c.b16 %v3992, %v3991
    %4057 = vmatprep.subr.bf16.mxu0 0
    %4058 = vmatpush1.bf16.msra.mxu0 %v3993
    %4059 = vmatprep.subr.bf16.mxu0 0
    %4060 = vmatpush1.bf16.msra.mxu0 %v3994
    %4061 = vmatprep.subr.bf16.mxu0 0
    %4062 = vmatpush1.bf16.msra.mxu0 %v3995
    %4063 = vmatprep.subr.bf16.mxu0 0
    %4064 = vmatpush1.bf16.msra.mxu0 %v3996
    %4065 = vmatprep.subr.bf16.mxu0 0
    %4066 = vmatpush1.bf16.msra.mxu0 %v3997
    %4067 = vmatprep.subr.bf16.mxu0 0
    %4068 = vmatpush1.bf16.msra.mxu0 %v3998
    %4069 = vmatprep.subr.bf16.mxu0 0
    %4070 = vmatpush1.bf16.msra.mxu0 %v3999
    %4071 = vmatprep.subr.bf16.mxu0 0
    %4072 = vmatpush1.bf16.msra.mxu0 %v4000
    %4073 = vmatprep.subr.bf16.mxu0 0
    %4074 = vmatpush1.bf16.msra.mxu0 %v4001
    %4075 = vmatprep.subr.bf16.mxu0 0
    %4076 = vmatpush1.bf16.msra.mxu0 %v4002
    %4077 = vmatprep.subr.bf16.mxu0 0
    %4078 = vmatpush1.bf16.msra.mxu0 %v4003
    %4079 = vmatprep.subr.bf16.mxu0 0
    %4080 = vmatpush1.bf16.msra.mxu0 %v4004
    %4081 = vmatprep.subr.bf16.mxu0 0
    %4082 = vmatpush1.bf16.msra.mxu0 %v4005
    %4083 = vmatprep.subr.bf16.mxu0 0
    %4084 = vmatpush1.bf16.msra.mxu0 %v4006
    %4085 = vmatprep.subr.bf16.mxu0 0
    %4086 = vmatpush1.bf16.msra.mxu0 %v4007
    %4087 = vmatprep.subr.bf16.mxu0 0
    %4088 = vmatpush1.bf16.msra.mxu0 %v4008
    %4089 = vmatprep.mubr.bf16.mxu0 %v3793
    %4090 = vmatmul.mubr.bf16.gmra.mrb[0].mxu0 %v3792
    %v4091 = vpop.f32.mrb[0].mxu0
    %v4092 = vadd.f32 %v3864, %v4091
    %v4093 = vpop.f32.mrb[0].mxu0
    %v4094 = vpop.f32.mrb[0].mxu0
    %v4095 = vpop.f32.mrb[0].mxu0
    %4096 = vdwg.mxu0
    %4097 = vmatprep.subr.bf16.mxu0 0
    %4098 = vmatpush1.bf16.msra.mxu0 %v4009
    %4099 = vmatprep.subr.bf16.mxu0 0
    %4100 = vmatpush1.bf16.msra.mxu0 %v4010
    %4101 = vmatprep.subr.bf16.mxu0 0
    %4102 = vmatpush1.bf16.msra.mxu0 %v4011
    %4103 = vmatprep.subr.bf16.mxu0 0
    %4104 = vmatpush1.bf16.msra.mxu0 %v4012
    %4105 = vmatprep.subr.bf16.mxu0 0
    %4106 = vmatpush1.bf16.msra.mxu0 %v4013
    %4107 = vmatprep.subr.bf16.mxu0 0
    %4108 = vmatpush1.bf16.msra.mxu0 %v4014
    %4109 = vmatprep.subr.bf16.mxu0 0
    %4110 = vmatpush1.bf16.msra.mxu0 %v4015
    %4111 = vmatprep.subr.bf16.mxu0 0
    %4112 = vmatpush1.bf16.msra.mxu0 %v4016
    %4113 = vmatprep.subr.bf16.mxu0 0
    %4114 = vmatpush1.bf16.msra.mxu0 %v4017
    %4115 = vmatprep.subr.bf16.mxu0 0
    %4116 = vmatpush1.bf16.msra.mxu0 %v4018
    %4117 = vmatprep.subr.bf16.mxu0 0
    %4118 = vmatpush1.bf16.msra.mxu0 %v4019
    %4119 = vmatprep.subr.bf16.mxu0 0
    %4120 = vmatpush1.bf16.msra.mxu0 %v4020
    %4121 = vmatprep.subr.bf16.mxu0 0
    %4122 = vmatpush1.bf16.msra.mxu0 %v4021
    %4123 = vmatprep.subr.bf16.mxu0 0
    %4124 = vmatpush1.bf16.msra.mxu0 %v4022
    %4125 = vmatprep.subr.bf16.mxu0 0
    %4126 = vmatpush1.bf16.msra.mxu0 %v4023
    %4127 = vmatprep.subr.bf16.mxu0 0
    %4128 = vmatpush1.bf16.msra.mxu0 %v4024
    %4129 = vmatprep.mubr.bf16.mxu0 %v3795
    %4130 = vmatmul.mubr.bf16.gmra.mrb[0].mxu0 %v3794
    %v4131 = vpop.f32.mrb[0].mxu0
    %v4132 = vadd.f32 %v4092, %v4131
    %v4133 = vpop.f32.mrb[0].mxu0
    %v4134 = vpop.f32.mrb[0].mxu0
    %v4135 = vpop.f32.mrb[0].mxu0
    %4136 = vdwg.mxu0
    %v4137 = vld [vmem:[#allocation11 + $0x11] sm:$0x1]
    %v4138 = vld [vmem:[#allocation11 + $0x12] sm:$0x1]
    %4139 = vadd.xlane.f32.xlu0 %v4132
    %v4140 = vpop.xlane.xlu0 %4139
    %v4141 = vmul.f32 %v4140, %v837
    %v4142 = vmul.f32 %v4132, %v4132
    %4143 = vadd.xlane.f32.xlu0 %v4142
    %v4144 = vpop.xlane.xlu0 %4143
    %v4145 = vmul.f32 %v4144, %v837
    %v4146 = vmul.f32 %v4141, %v4141
    %v4147 = vsub.f32 %v4145, %v4146
    %v4148 = vsub.f32 %v4132, %v4141
    %v4149 = vadd.f32 %v4147, 1e-05
    %v4150 = vrsqrt.pop %v4149
    %v4151 = vmul.f32 %v4148, %v4150
    %v4152 = vlaneseq
    %v4153 = vshrl.u32 %v4152, 7
    %v4154 = vsub.s32 0, %v4153
    %v4155 = vrot.slane %v4137, %v4154
    %v4156 = vmul.f32 %v4151, %v4155
    %v4157 = vlaneseq
    %v4158 = vshrl.u32 %v4157, 7
    %v4159 = vsub.s32 0, %v4158
    %v4160 = vrot.slane %v4138, %v4159
    %v4161 = vadd.f32 %v4156, %v4160
    %4162 = vst [vmem:[#allocation2] sm:$0xff] %v4161
    %4163 = vst [vmem:[#allocation2 + $0x8] sm:$0xff] %v330
    %v4164 = vld [vmem:[#allocation2] sm:$0xff]
    %v4165 = vld [vmem:[#allocation2 + $0x8] sm:$0xff]
    %v4166 = vpack.c.bf16 %v4164, %v4164
    %v4167 = vpack.c.bf16 %v4165, %v4165
    %v4168 = vld [vmem:[#allocation8 + $0x10] sm:$0xf]
    %v4169 = vld [vmem:[#allocation8 + $0x34] sm:$0xf]
    %v4170 = vld [vmem:[#allocation8 + $0x58] sm:$0xf]
    %v4171 = vld [vmem:[#allocation8 + $0x7c] sm:$0xf]
    %v4172 = vld [vmem:[#allocation8 + $0xa0] sm:$0xf]
    %v4173 = vld [vmem:[#allocation8 + $0xc4] sm:$0xf]
    %v4174 = vld [vmem:[#allocation8 + $0xe8] sm:$0xf]
    %v4175 = vld [vmem:[#allocation8 + $0x10c] sm:$0xf]
    %v4176 = vld [vmem:[#allocation8 + $0x130] sm:$0xf]
    %v4177 = vld [vmem:[#allocation8 + $0x154] sm:$0xf]
    %v4178 = vld [vmem:[#allocation8 + $0x178] sm:$0xf]
    %v4179 = vld [vmem:[#allocation8 + $0x19c] sm:$0xf]
    %v4180 = vld [vmem:[#allocation8 + $0x1c0] sm:$0xf]
    %v4181 = vld [vmem:[#allocation8 + $0x1e4] sm:$0xf]
    %v4182 = vld [vmem:[#allocation8 + $0x208] sm:$0xf]
    %v4183 = vld [vmem:[#allocation8 + $0x22c] sm:$0xf]
    %v4184 = vld [vmem:[#allocation8 + $0x250] sm:$0xf]
    %v4185 = vld [vmem:[#allocation8 + $0x274] sm:$0xf]
    %v4186 = vld [vmem:[#allocation8 + $0x298] sm:$0xf]
    %v4187 = vld [vmem:[#allocation8 + $0x2bc] sm:$0xf]
    %v4188 = vld [vmem:[#allocation8 + $0x2e0] sm:$0xf]
    %v4189 = vld [vmem:[#allocation8 + $0x304] sm:$0xf]
    %v4190 = vld [vmem:[#allocation8 + $0x328] sm:$0xf]
    %v4191 = vld [vmem:[#allocation8 + $0x34c] sm:$0xf]
    %v4192 = vld [vmem:[#allocation8 + $0x370] sm:$0xf]
    %v4193 = vld [vmem:[#allocation8 + $0x394] sm:$0xf]
    %v4194 = vld [vmem:[#allocation8 + $0x3b8] sm:$0xf]
    %v4195 = vld [vmem:[#allocation8 + $0x3dc] sm:$0xf]
    %v4196 = vld [vmem:[#allocation8 + $0x400] sm:$0xf]
    %v4197 = vld [vmem:[#allocation8 + $0x424] sm:$0xf]
    %v4198 = vld [vmem:[#allocation8 + $0x448] sm:$0xf]
    %v4199 = vld [vmem:[#allocation8 + $0x46c] sm:$0xf]
    %v4200 = vld [vmem:[#allocation11 + $0x13] sm:$0x1]
    %v4201 = vlaneseq
    %v4202 = vshrl.u32 %v4201, 7
    %v4203 = vsub.s32 0, %v4202
    %v4204 = vrot.slane %v4200, %v4203
    %v4237 = vunpack.c.l.b16 %v4168
    %v4238 = vunpack.c.l.b16 %v4169
    %v4239 = vunpack.c.l.b16 %v4170
    %v4240 = vunpack.c.l.b16 %v4171
    %v4241 = vunpack.c.l.b16 %v4172
    %v4242 = vunpack.c.l.b16 %v4173
    %v4243 = vunpack.c.l.b16 %v4174
    %v4244 = vunpack.c.l.b16 %v4175
    %v4245 = vunpack.c.l.b16 %v4176
    %v4246 = vunpack.c.l.b16 %v4177
    %v4247 = vunpack.c.l.b16 %v4178
    %v4248 = vunpack.c.l.b16 %v4179
    %v4249 = vunpack.c.l.b16 %v4180
    %v4250 = vunpack.c.l.b16 %v4181
    %v4251 = vunpack.c.l.b16 %v4182
    %v4252 = vunpack.c.l.b16 %v4183
    %v4253 = vunpack.c.l.b16 %v4184
    %v4254 = vunpack.c.l.b16 %v4185
    %v4255 = vunpack.c.l.b16 %v4186
    %v4256 = vunpack.c.l.b16 %v4187
    %v4257 = vunpack.c.l.b16 %v4188
    %v4258 = vunpack.c.l.b16 %v4189
    %v4259 = vunpack.c.l.b16 %v4190
    %v4260 = vunpack.c.l.b16 %v4191
    %v4261 = vunpack.c.l.b16 %v4192
    %v4262 = vunpack.c.l.b16 %v4193
    %v4263 = vunpack.c.l.b16 %v4194
    %v4264 = vunpack.c.l.b16 %v4195
    %v4265 = vunpack.c.l.b16 %v4196
    %v4266 = vunpack.c.l.b16 %v4197
    %v4267 = vunpack.c.l.b16 %v4198
    %v4268 = vunpack.c.l.b16 %v4199
    %v4269 = vpack.c.b16 %v4238, %v4237
    %v4270 = vpack.c.b16 %v4240, %v4239
    %v4271 = vpack.c.b16 %v4242, %v4241
    %v4272 = vpack.c.b16 %v4244, %v4243
    %v4273 = vpack.c.b16 %v4246, %v4245
    %v4274 = vpack.c.b16 %v4248, %v4247
    %v4275 = vpack.c.b16 %v4250, %v4249
    %v4276 = vpack.c.b16 %v4252, %v4251
    %v4277 = vpack.c.b16 %v4254, %v4253
    %v4278 = vpack.c.b16 %v4256, %v4255
    %v4279 = vpack.c.b16 %v4258, %v4257
    %v4280 = vpack.c.b16 %v4260, %v4259
    %v4281 = vpack.c.b16 %v4262, %v4261
    %v4282 = vpack.c.b16 %v4264, %v4263
    %v4283 = vpack.c.b16 %v4266, %v4265
    %v4284 = vpack.c.b16 %v4268, %v4267
    %4301 = vmatprep.subr.bf16.mxu0 0
    %4302 = vmatpush1.bf16.msra.mxu0 %v4269
    %4303 = vmatprep.subr.bf16.mxu0 0
    %4304 = vmatpush1.bf16.msra.mxu0 %v4270
    %4305 = vmatprep.subr.bf16.mxu0 0
    %4306 = vmatpush1.bf16.msra.mxu0 %v4271
    %4307 = vmatprep.subr.bf16.mxu0 0
    %4308 = vmatpush1.bf16.msra.mxu0 %v4272
    %4309 = vmatprep.subr.bf16.mxu0 0
    %4310 = vmatpush1.bf16.msra.mxu0 %v4273
    %4311 = vmatprep.subr.bf16.mxu0 0
    %4312 = vmatpush1.bf16.msra.mxu0 %v4274
    %4313 = vmatprep.subr.bf16.mxu0 0
    %4314 = vmatpush1.bf16.msra.mxu0 %v4275
    %4315 = vmatprep.subr.bf16.mxu0 0
    %4316 = vmatpush1.bf16.msra.mxu0 %v4276
    %4317 = vmatprep.subr.bf16.mxu0 0
    %4318 = vmatpush1.bf16.msra.mxu0 %v4277
    %4319 = vmatprep.subr.bf16.mxu0 0
    %4320 = vmatpush1.bf16.msra.mxu0 %v4278
    %4321 = vmatprep.subr.bf16.mxu0 0
    %4322 = vmatpush1.bf16.msra.mxu0 %v4279
    %4323 = vmatprep.subr.bf16.mxu0 0
    %4324 = vmatpush1.bf16.msra.mxu0 %v4280
    %4325 = vmatprep.subr.bf16.mxu0 0
    %4326 = vmatpush1.bf16.msra.mxu0 %v4281
    %4327 = vmatprep.subr.bf16.mxu0 0
    %4328 = vmatpush1.bf16.msra.mxu0 %v4282
    %4329 = vmatprep.subr.bf16.mxu0 0
    %4330 = vmatpush1.bf16.msra.mxu0 %v4283
    %4331 = vmatprep.subr.bf16.mxu0 0
    %4332 = vmatpush1.bf16.msra.mxu0 %v4284
    %4333 = vmatprep.mubr.bf16.mxu0 %v4167
    %4334 = vmatmul.mubr.bf16.gmra.mrb[0].mxu0 %v4166
    %v4335 = vpop.f32.mrb[0].mxu0
    %v4336 = vadd.f32 %v4204, %v4335
    %v4337 = vpop.f32.mrb[0].mxu0
    %v4338 = vpop.f32.mrb[0].mxu0
    %v4339 = vpop.f32.mrb[0].mxu0
    %4340 = vdwg.mxu0
    %v4341 = vmul.f32 %v4336, 0.5
    %v4342 = vmul.f32 %v4336, %v4336
    %v4343 = vmul.f32 %v4342, %v4336
    %v4344 = vmul.f32 %v4343, 0.044715
    %v4345 = vadd.f32 %v4336, %v4344
    %v4346 = vmul.f32 %v4345, 0.7978846
    %v4347 = vtanh.pop %v4346
    %v4348 = vadd.f32 %v4347, 1.0
    %v4349 = vmul.f32 %v4341, %v4348
    %4350 = vadd.xlane.f32.xlu0 %v4349
    %v4351 = vpop.xlane.xlu0 %4350
    %v4352 = vmul.f32 %v4351, %v837
    %v4353 = vmul.f32 %v4349, %v4349
    %4354 = vadd.xlane.f32.xlu0 %v4353
    %v4355 = vpop.xlane.xlu0 %4354
    %v4356 = vmul.f32 %v4355, %v837
    %v4357 = vmul.f32 %v4352, %v4352
    %v4358 = vsub.f32 %v4356, %v4357
    %v4359 = vsub.f32 %v4349, %v4352
    %v4360 = vadd.f32 %v4358, 1e-05
    %v4361 = vrsqrt.pop %v4360
    %v4362 = vmul.f32 %v4359, %v4361
    %v4363 = vpack.c.bf16 %v4362, %v4362
    %v4364 = vld [vmem:[#allocation6 + $0x30] sm:$0xff]
    %v4365 = vld [vmem:[#allocation6 + $0x68] sm:$0xff]
    %v4366 = vld [vmem:[#allocation6 + $0xa0] sm:$0xff]
    %v4367 = vld [vmem:[#allocation6 + $0xd8] sm:$0xff]
    %v4368 = vld [vmem:[#allocation6 + $0x110] sm:$0xff]
    %v4369 = vld [vmem:[#allocation6 + $0x148] sm:$0xff]
    %v4370 = vld [vmem:[#allocation6 + $0x180] sm:$0xff]
    %v4371 = vld [vmem:[#allocation6 + $0x1b8] sm:$0xff]
    %v4372 = vld [vmem:[#allocation6 + $0x1f0] sm:$0xff]
    %v4373 = vld [vmem:[#allocation6 + $0x228] sm:$0xff]
    %v4374 = vld [vmem:[#allocation6 + $0x260] sm:$0xff]
    %v4375 = vld [vmem:[#allocation6 + $0x298] sm:$0xff]
    %v4376 = vld [vmem:[#allocation6 + $0x2d0] sm:$0xff]
    %v4377 = vld [vmem:[#allocation6 + $0x308] sm:$0xff]
    %v4378 = vld [vmem:[#allocation6 + $0x340] sm:$0xff]
    %v4379 = vld [vmem:[#allocation6 + $0x378] sm:$0xff]
    %v4380 = vld [vmem:[%s5] sm:$0x3]
    %v4382 = vlaneseq
    %v4383 = vshrl.u32 %v4382, 7
    %v4384 = vsub.s32 0, %v4383
    %v4385 = vrot.slane %v4380, %v4384
    %v4386 = vlaneseq
    %v4387 = vshrl.u32 %v4386, 7
    %v4388 = vsub.s32 1, %v4387
    %v4389 = vrot.slane %v4380, %v4388
    %v4408 = vunpack.c.l.b16 %v4364
    %v4409 = vunpack.c.h.b16 %v4364
    %v4410 = vunpack.c.l.b16 %v4365
    %v4411 = vunpack.c.h.b16 %v4365
    %v4412 = vunpack.c.l.b16 %v4366
    %v4413 = vunpack.c.h.b16 %v4366
    %v4414 = vunpack.c.l.b16 %v4367
    %v4415 = vunpack.c.h.b16 %v4367
    %v4416 = vunpack.c.l.b16 %v4368
    %v4417 = vunpack.c.h.b16 %v4368
    %v4418 = vunpack.c.l.b16 %v4369
    %v4419 = vunpack.c.h.b16 %v4369
    %v4420 = vunpack.c.l.b16 %v4370
    %v4421 = vunpack.c.h.b16 %v4370
    %v4422 = vunpack.c.l.b16 %v4371
    %v4423 = vunpack.c.h.b16 %v4371
    %v4424 = vunpack.c.l.b16 %v4372
    %v4425 = vunpack.c.h.b16 %v4372
    %v4426 = vunpack.c.l.b16 %v4373
    %v4427 = vunpack.c.h.b16 %v4373
    %v4428 = vunpack.c.l.b16 %v4374
    %v4429 = vunpack.c.h.b16 %v4374
    %v4430 = vunpack.c.l.b16 %v4375
    %v4431 = vunpack.c.h.b16 %v4375
    %v4432 = vunpack.c.l.b16 %v4376
    %v4433 = vunpack.c.h.b16 %v4376
    %v4434 = vunpack.c.l.b16 %v4377
    %v4435 = vunpack.c.h.b16 %v4377
    %v4436 = vunpack.c.l.b16 %v4378
    %v4437 = vunpack.c.h.b16 %v4378
    %v4438 = vunpack.c.l.b16 %v4379
    %v4439 = vunpack.c.h.b16 %v4379
    %v4440 = vpack.c.b16 %v4410, %v4408
    %v4441 = vpack.c.b16 %v4411, %v4409
    %v4442 = vpack.c.b16 %v4414, %v4412
    %v4443 = vpack.c.b16 %v4415, %v4413
    %v4444 = vpack.c.b16 %v4418, %v4416
    %v4445 = vpack.c.b16 %v4419, %v4417
    %v4446 = vpack.c.b16 %v4422, %v4420
    %v4447 = vpack.c.b16 %v4423, %v4421
    %v4448 = vpack.c.b16 %v4426, %v4424
    %v4449 = vpack.c.b16 %v4427, %v4425
    %v4450 = vpack.c.b16 %v4430, %v4428
    %v4451 = vpack.c.b16 %v4431, %v4429
    %v4452 = vpack.c.b16 %v4434, %v4432
    %v4453 = vpack.c.b16 %v4435, %v4433
    %v4454 = vpack.c.b16 %v4438, %v4436
    %v4455 = vpack.c.b16 %v4439, %v4437
    %4472 = vmatprep.subr.bf16.mxu0 %v4441
    %4473 = vmatpush1.bf16.msra.mxu0 %v4440
    %4474 = vmatprep.subr.bf16.mxu0 %v4443
    %4475 = vmatpush1.bf16.msra.mxu0 %v4442
    %4476 = vmatprep.subr.bf16.mxu0 %v4445
    %4477 = vmatpush1.bf16.msra.mxu0 %v4444
    %4478 = vmatprep.subr.bf16.mxu0 %v4447
    %4479 = vmatpush1.bf16.msra.mxu0 %v4446
    %4480 = vmatprep.subr.bf16.mxu0 %v4449
    %4481 = vmatpush1.bf16.msra.mxu0 %v4448
    %4482 = vmatprep.subr.bf16.mxu0 %v4451
    %4483 = vmatpush1.bf16.msra.mxu0 %v4450
    %4484 = vmatprep.subr.bf16.mxu0 %v4453
    %4485 = vmatpush1.bf16.msra.mxu0 %v4452
    %4486 = vmatprep.subr.bf16.mxu0 %v4455
    %4487 = vmatpush1.bf16.msra.mxu0 %v4454
    %4488 = vmatprep.subr.bf16.mxu0 0
    %4489 = vmatpush1.bf16.msra.mxu0 0
    %4490 = vmatprep.subr.bf16.mxu0 0
    %4491 = vmatpush1.bf16.msra.mxu0 0
    %4492 = vmatprep.subr.bf16.mxu0 0
    %4493 = vmatpush1.bf16.msra.mxu0 0
    %4494 = vmatprep.subr.bf16.mxu0 0
    %4495 = vmatpush1.bf16.msra.mxu0 0
    %4496 = vmatprep.subr.bf16.mxu0 0
    %4497 = vmatpush1.bf16.msra.mxu0 0
    %4498 = vmatprep.subr.bf16.mxu0 0
    %4499 = vmatpush1.bf16.msra.mxu0 0
    %4500 = vmatprep.subr.bf16.mxu0 0
    %4501 = vmatpush1.bf16.msra.mxu0 0
    %4502 = vmatprep.subr.bf16.mxu0 0
    %4503 = vmatpush1.bf16.msra.mxu0 0
    %4504 = vmatprep.mubr.bf16.mxu0 0
    %4505 = vmatmul.mubr.bf16.gmra.mrb[0].mxu0 %v4363
    %v4506 = vpop.f32.mrb[0].mxu0
    %v4507 = vadd.f32 %v4385, %v4506
    %v4508 = vpop.f32.mrb[0].mxu0
    %v4509 = vadd.f32 %v4389, %v4508
    %v4510 = vpop.f32.mrb[0].mxu0
    %v4511 = vpop.f32.mrb[0].mxu0
    %4512 = vdwg.mxu0
    %v4513 = vmul.f32 %v4507, 0.5
    %v4514 = vmul.f32 %v4509, 0.5
    %v4515 = vmul.f32 %v4507, %v4507
    %v4516 = vmul.f32 %v4509, %v4509
    %v4517 = vmul.f32 %v4515, %v4507
    %v4518 = vmul.f32 %v4516, %v4509
    %v4519 = vmul.f32 %v4517, 0.044715
    %v4520 = vmul.f32 %v4518, 0.044715
    %v4521 = vadd.f32 %v4507, %v4519
    %v4522 = vadd.f32 %v4509, %v4520
    %v4523 = vmul.f32 %v4521, 0.7978846
    %v4524 = vmul.f32 %v4522, 0.7978846
    %v4525 = vtanh.pop %v4523
    %v4526 = vtanh.pop %v4524
    %v4527 = vadd.f32 %v4525, 1.0
    %v4528 = vadd.f32 %v4526, 1.0
    %v4529 = vmul.f32 %v4513, %v4527
    %v4530 = vmul.f32 %v4514, %v4528
    %v4531 = vadd.f32 %v4529, %v4530
    %4532 = vadd.xlane.f32.xlu0 %v4531
    %v4533 = vpop.xlane.xlu0 %4532
    %v4534 = vrcp.pop 256.0
    %v4535 = vmul.f32 %v4533, %v4534
    %v4536 = vmul.f32 %v4529, %v4529
    %v4537 = vmul.f32 %v4530, %v4530
    %v4538 = vadd.f32 %v4536, %v4537
    %4539 = vadd.xlane.f32.xlu0 %v4538
    %v4540 = vpop.xlane.xlu0 %4539
    %v4541 = vmul.f32 %v4540, %v4534
    %v4542 = vmul.f32 %v4535, %v4535
    %v4543 = vsub.f32 %v4541, %v4542
    %v4544 = vsub.f32 %v4529, %v4535
    %v4545 = vsub.f32 %v4530, %v4535
    %v4546 = vadd.f32 %v4543, 1e-05
    %v4547 = vrsqrt.pop %v4546
    %v4548 = vmul.f32 %v4544, %v4547
    %v4549 = vmul.f32 %v4545, %v4547
    %v4550 = vpack.c.bf16 %v4548, %v4548
    %v4551 = vpack.c.bf16 %v4549, %v4549
    %v4552 = vld [vmem:[#allocation8 + $0x14] sm:$0xff]
    %v4553 = vld [vmem:[#allocation8 + $0x1c] sm:$0xff]
    %v4554 = vld [vmem:[#allocation8 + $0x38] sm:$0xff]
    %v4555 = vld [vmem:[#allocation8 + $0x40] sm:$0xff]
    %v4556 = vld [vmem:[#allocation8 + $0x5c] sm:$0xff]
    %v4557 = vld [vmem:[#allocation8 + $0x64] sm:$0xff]
    %v4558 = vld [vmem:[#allocation8 + $0x80] sm:$0xff]
    %v4559 = vld [vmem:[#allocation8 + $0x88] sm:$0xff]
    %v4560 = vld [vmem:[#allocation8 + $0xa4] sm:$0xff]
    %v4561 = vld [vmem:[#allocation8 + $0xac] sm:$0xff]
    %v4562 = vld [vmem:[#allocation8 + $0xc8] sm:$0xff]
    %v4563 = vld [vmem:[#allocation8 + $0xd0] sm:$0xff]
    %v4564 = vld [vmem:[#allocation8 + $0xec] sm:$0xff]
    %v4565 = vld [vmem:[#allocation8 + $0xf4] sm:$0xff]
    %v4566 = vld [vmem:[#allocation8 + $0x110] sm:$0xff]
    %v4567 = vld [vmem:[#allocation8 + $0x118] sm:$0xff]
    %v4568 = vld [vmem:[#allocation8 + $0x134] sm:$0xff]
    %v4569 = vld [vmem:[#allocation8 + $0x13c] sm:$0xff]
    %v4570 = vld [vmem:[#allocation8 + $0x158] sm:$0xff]
    %v4571 = vld [vmem:[#allocation8 + $0x160] sm:$0xff]
    %v4572 = vld [vmem:[#allocation8 + $0x17c] sm:$0xff]
    %v4573 = vld [vmem:[#allocation8 + $0x184] sm:$0xff]
    %v4574 = vld [vmem:[#allocation8 + $0x1a0] sm:$0xff]
    %v4575 = vld [vmem:[#allocation8 + $0x1a8] sm:$0xff]
    %v4576 = vld [vmem:[#allocation8 + $0x1c4] sm:$0xff]
    %v4577 = vld [vmem:[#allocation8 + $0x1cc] sm:$0xff]
    %v4578 = vld [vmem:[#allocation8 + $0x1e8] sm:$0xff]
    %v4579 = vld [vmem:[#allocation8 + $0x1f0] sm:$0xff]
    %v4580 = vld [vmem:[#allocation8 + $0x20c] sm:$0xff]
    %v4581 = vld [vmem:[#allocation8 + $0x214] sm:$0xff]
    %v4582 = vld [vmem:[#allocation8 + $0x230] sm:$0xff]
    %v4583 = vld [vmem:[#allocation8 + $0x238] sm:$0xff]
    %v4584 = vld [vmem:[#allocation8 + $0x254] sm:$0xff]
    %v4585 = vld [vmem:[#allocation8 + $0x25c] sm:$0xff]
    %v4586 = vld [vmem:[#allocation8 + $0x278] sm:$0xff]
    %v4587 = vld [vmem:[#allocation8 + $0x280] sm:$0xff]
    %v4588 = vld [vmem:[#allocation8 + $0x29c] sm:$0xff]
    %v4589 = vld [vmem:[#allocation8 + $0x2a4] sm:$0xff]
    %v4590 = vld [vmem:[#allocation8 + $0x2c0] sm:$0xff]
    %v4591 = vld [vmem:[#allocation8 + $0x2c8] sm:$0xff]
    %v4592 = vld [vmem:[#allocation8 + $0x2e4] sm:$0xff]
    %v4593 = vld [vmem:[#allocation8 + $0x2ec] sm:$0xff]
    %v4594 = vld [vmem:[#allocation8 + $0x308] sm:$0xff]
    %v4595 = vld [vmem:[#allocation8 + $0x310] sm:$0xff]
    %v4596 = vld [vmem:[#allocation8 + $0x32c] sm:$0xff]
    %v4597 = vld [vmem:[#allocation8 + $0x334] sm:$0xff]
    %v4598 = vld [vmem:[#allocation8 + $0x350] sm:$0xff]
    %v4599 = vld [vmem:[#allocation8 + $0x358] sm:$0xff]
    %v4600 = vld [vmem:[#allocation8 + $0x374] sm:$0xff]
    %v4601 = vld [vmem:[#allocation8 + $0x37c] sm:$0xff]
    %v4602 = vld [vmem:[#allocation8 + $0x398] sm:$0xff]
    %v4603 = vld [vmem:[#allocation8 + $0x3a0] sm:$0xff]
    %v4604 = vld [vmem:[#allocation8 + $0x3bc] sm:$0xff]
    %v4605 = vld [vmem:[#allocation8 + $0x3c4] sm:$0xff]
    %v4606 = vld [vmem:[#allocation8 + $0x3e0] sm:$0xff]
    %v4607 = vld [vmem:[#allocation8 + $0x3e8] sm:$0xff]
    %v4608 = vld [vmem:[#allocation8 + $0x404] sm:$0xff]
    %v4609 = vld [vmem:[#allocation8 + $0x40c] sm:$0xff]
    %v4610 = vld [vmem:[#allocation8 + $0x428] sm:$0xff]
    %v4611 = vld [vmem:[#allocation8 + $0x430] sm:$0xff]
    %v4612 = vld [vmem:[#allocation8 + $0x44c] sm:$0xff]
    %v4613 = vld [vmem:[#allocation8 + $0x454] sm:$0xff]
    %v4614 = vld [vmem:[#allocation8 + $0x470] sm:$0xff]
    %v4615 = vld [vmem:[#allocation8 + $0x478] sm:$0xff]
    %s4616 = scalar_lea.vmem [#allocation12], 32
    %v4617 = vld [vmem:[%s4616] ss:$8 sm:$0xf]
    %v4619 = vlaneseq
    %v4620 = vshrl.u32 %v4619, 7
    %v4621 = vsub.s32 0, %v4620
    %v4622 = vrot.slane %v4617, %v4621
    %v4623 = vlaneseq
    %v4624 = vshrl.u32 %v4623, 7
    %v4625 = vsub.s32 1, %v4624
    %v4626 = vrot.slane %v4617, %v4625
    %v4627 = vlaneseq
    %v4628 = vshrl.u32 %v4627, 7
    %v4629 = vsub.s32 2, %v4628
    %v4630 = vrot.slane %v4617, %v4629
    %v4631 = vlaneseq
    %v4632 = vshrl.u32 %v4631, 7
    %v4633 = vsub.s32 3, %v4632
    %v4634 = vrot.slane %v4617, %v4633
    %v4703 = vunpack.c.l.b16 %v4552
    %v4704 = vunpack.c.h.b16 %v4552
    %v4705 = vunpack.c.l.b16 %v4553
    %v4706 = vunpack.c.h.b16 %v4553
    %v4707 = vunpack.c.l.b16 %v4554
    %v4708 = vunpack.c.h.b16 %v4554
    %v4709 = vunpack.c.l.b16 %v4555
    %v4710 = vunpack.c.h.b16 %v4555
    %v4711 = vunpack.c.l.b16 %v4556
    %v4712 = vunpack.c.h.b16 %v4556
    %v4713 = vunpack.c.l.b16 %v4557
    %v4714 = vunpack.c.h.b16 %v4557
    %v4715 = vunpack.c.l.b16 %v4558
    %v4716 = vunpack.c.h.b16 %v4558
    %v4717 = vunpack.c.l.b16 %v4559
    %v4718 = vunpack.c.h.b16 %v4559
    %v4719 = vunpack.c.l.b16 %v4560
    %v4720 = vunpack.c.h.b16 %v4560
    %v4721 = vunpack.c.l.b16 %v4561
    %v4722 = vunpack.c.h.b16 %v4561
    %v4723 = vunpack.c.l.b16 %v4562
    %v4724 = vunpack.c.h.b16 %v4562
    %v4725 = vunpack.c.l.b16 %v4563
    %v4726 = vunpack.c.h.b16 %v4563
    %v4727 = vunpack.c.l.b16 %v4564
    %v4728 = vunpack.c.h.b16 %v4564
    %v4729 = vunpack.c.l.b16 %v4565
    %v4730 = vunpack.c.h.b16 %v4565
    %v4731 = vunpack.c.l.b16 %v4566
    %v4732 = vunpack.c.h.b16 %v4566
    %v4733 = vunpack.c.l.b16 %v4567
    %v4734 = vunpack.c.h.b16 %v4567
    %v4735 = vunpack.c.l.b16 %v4568
    %v4736 = vunpack.c.h.b16 %v4568
    %v4737 = vunpack.c.l.b16 %v4569
    %v4738 = vunpack.c.h.b16 %v4569
    %v4739 = vunpack.c.l.b16 %v4570
    %v4740 = vunpack.c.h.b16 %v4570
    %v4741 = vunpack.c.l.b16 %v4571
    %v4742 = vunpack.c.h.b16 %v4571
    %v4743 = vunpack.c.l.b16 %v4572
    %v4744 = vunpack.c.h.b16 %v4572
    %v4745 = vunpack.c.l.b16 %v4573
    %v4746 = vunpack.c.h.b16 %v4573
    %v4747 = vunpack.c.l.b16 %v4574
    %v4748 = vunpack.c.h.b16 %v4574
    %v4749 = vunpack.c.l.b16 %v4575
    %v4750 = vunpack.c.h.b16 %v4575
    %v4751 = vunpack.c.l.b16 %v4576
    %v4752 = vunpack.c.h.b16 %v4576
    %v4753 = vunpack.c.l.b16 %v4577
    %v4754 = vunpack.c.h.b16 %v4577
    %v4755 = vunpack.c.l.b16 %v4578
    %v4756 = vunpack.c.h.b16 %v4578
    %v4757 = vunpack.c.l.b16 %v4579
    %v4758 = vunpack.c.h.b16 %v4579
    %v4759 = vunpack.c.l.b16 %v4580
    %v4760 = vunpack.c.h.b16 %v4580
    %v4761 = vunpack.c.l.b16 %v4581
    %v4762 = vunpack.c.h.b16 %v4581
    %v4763 = vunpack.c.l.b16 %v4582
    %v4764 = vunpack.c.h.b16 %v4582
    %v4765 = vunpack.c.l.b16 %v4583
    %v4766 = vunpack.c.h.b16 %v4583
    %v4767 = vunpack.c.l.b16 %v4584
    %v4768 = vunpack.c.h.b16 %v4584
    %v4769 = vunpack.c.l.b16 %v4585
    %v4770 = vunpack.c.h.b16 %v4585
    %v4771 = vunpack.c.l.b16 %v4586
    %v4772 = vunpack.c.h.b16 %v4586
    %v4773 = vunpack.c.l.b16 %v4587
    %v4774 = vunpack.c.h.b16 %v4587
    %v4775 = vunpack.c.l.b16 %v4588
    %v4776 = vunpack.c.h.b16 %v4588
    %v4777 = vunpack.c.l.b16 %v4589
    %v4778 = vunpack.c.h.b16 %v4589
    %v4779 = vunpack.c.l.b16 %v4590
    %v4780 = vunpack.c.h.b16 %v4590
    %v4781 = vunpack.c.l.b16 %v4591
    %v4782 = vunpack.c.h.b16 %v4591
    %v4783 = vunpack.c.l.b16 %v4592
    %v4784 = vunpack.c.h.b16 %v4592
    %v4785 = vunpack.c.l.b16 %v4593
    %v4786 = vunpack.c.h.b16 %v4593
    %v4787 = vunpack.c.l.b16 %v4594
    %v4788 = vunpack.c.h.b16 %v4594
    %v4789 = vunpack.c.l.b16 %v4595
    %v4790 = vunpack.c.h.b16 %v4595
    %v4791 = vunpack.c.l.b16 %v4596
    %v4792 = vunpack.c.h.b16 %v4596
    %v4793 = vunpack.c.l.b16 %v4597
    %v4794 = vunpack.c.h.b16 %v4597
    %v4795 = vunpack.c.l.b16 %v4598
    %v4796 = vunpack.c.h.b16 %v4598
    %v4797 = vunpack.c.l.b16 %v4599
    %v4798 = vunpack.c.h.b16 %v4599
    %v4799 = vunpack.c.l.b16 %v4600
    %v4800 = vunpack.c.h.b16 %v4600
    %v4801 = vunpack.c.l.b16 %v4601
    %v4802 = vunpack.c.h.b16 %v4601
    %v4803 = vunpack.c.l.b16 %v4602
    %v4804 = vunpack.c.h.b16 %v4602
    %v4805 = vunpack.c.l.b16 %v4603
    %v4806 = vunpack.c.h.b16 %v4603
    %v4807 = vunpack.c.l.b16 %v4604
    %v4808 = vunpack.c.h.b16 %v4604
    %v4809 = vunpack.c.l.b16 %v4605
    %v4810 = vunpack.c.h.b16 %v4605
    %v4811 = vunpack.c.l.b16 %v4606
    %v4812 = vunpack.c.h.b16 %v4606
    %v4813 = vunpack.c.l.b16 %v4607
    %v4814 = vunpack.c.h.b16 %v4607
    %v4815 = vunpack.c.l.b16 %v4608
    %v4816 = vunpack.c.h.b16 %v4608
    %v4817 = vunpack.c.l.b16 %v4609
    %v4818 = vunpack.c.h.b16 %v4609
    %v4819 = vunpack.c.l.b16 %v4610
    %v4820 = vunpack.c.h.b16 %v4610
    %v4821 = vunpack.c.l.b16 %v4611
    %v4822 = vunpack.c.h.b16 %v4611
    %v4823 = vunpack.c.l.b16 %v4612
    %v4824 = vunpack.c.h.b16 %v4612
    %v4825 = vunpack.c.l.b16 %v4613
    %v4826 = vunpack.c.h.b16 %v4613
    %v4827 = vunpack.c.l.b16 %v4614
    %v4828 = vunpack.c.h.b16 %v4614
    %v4829 = vunpack.c.l.b16 %v4615
    %v4830 = vunpack.c.h.b16 %v4615
    %v4831 = vpack.c.b16 %v4707, %v4703
    %v4832 = vpack.c.b16 %v4708, %v4704
    %v4833 = vpack.c.b16 %v4709, %v4705
    %v4834 = vpack.c.b16 %v4710, %v4706
    %v4835 = vpack.c.b16 %v4715, %v4711
    %v4836 = vpack.c.b16 %v4716, %v4712
    %v4837 = vpack.c.b16 %v4717, %v4713
    %v4838 = vpack.c.b16 %v4718, %v4714
    %v4839 = vpack.c.b16 %v4723, %v4719
    %v4840 = vpack.c.b16 %v4724, %v4720
    %v4841 = vpack.c.b16 %v4725, %v4721
    %v4842 = vpack.c.b16 %v4726, %v4722
    %v4843 = vpack.c.b16 %v4731, %v4727
    %v4844 = vpack.c.b16 %v4732, %v4728
    %v4845 = vpack.c.b16 %v4733, %v4729
    %v4846 = vpack.c.b16 %v4734, %v4730
    %v4847 = vpack.c.b16 %v4739, %v4735
    %v4848 = vpack.c.b16 %v4740, %v4736
    %v4849 = vpack.c.b16 %v4741, %v4737
    %v4850 = vpack.c.b16 %v4742, %v4738
    %v4851 = vpack.c.b16 %v4747, %v4743
    %v4852 = vpack.c.b16 %v4748, %v4744
    %v4853 = vpack.c.b16 %v4749, %v4745
    %v4854 = vpack.c.b16 %v4750, %v4746
    %v4855 = vpack.c.b16 %v4755, %v4751
    %v4856 = vpack.c.b16 %v4756, %v4752
    %v4857 = vpack.c.b16 %v4757, %v4753
    %v4858 = vpack.c.b16 %v4758, %v4754
    %v4859 = vpack.c.b16 %v4763, %v4759
    %v4860 = vpack.c.b16 %v4764, %v4760
    %v4861 = vpack.c.b16 %v4765, %v4761
    %v4862 = vpack.c.b16 %v4766, %v4762
    %v4863 = vpack.c.b16 %v4771, %v4767
    %v4864 = vpack.c.b16 %v4772, %v4768
    %v4865 = vpack.c.b16 %v4773, %v4769
    %v4866 = vpack.c.b16 %v4774, %v4770
    %v4867 = vpack.c.b16 %v4779, %v4775
    %v4868 = vpack.c.b16 %v4780, %v4776
    %v4869 = vpack.c.b16 %v4781, %v4777
    %v4870 = vpack.c.b16 %v4782, %v4778
    %v4871 = vpack.c.b16 %v4787, %v4783
    %v4872 = vpack.c.b16 %v4788, %v4784
    %v4873 = vpack.c.b16 %v4789, %v4785
    %v4874 = vpack.c.b16 %v4790, %v4786
    %v4875 = vpack.c.b16 %v4795, %v4791
    %v4876 = vpack.c.b16 %v4796, %v4792
    %v4877 = vpack.c.b16 %v4797, %v4793
    %v4878 = vpack.c.b16 %v4798, %v4794
    %v4879 = vpack.c.b16 %v4803, %v4799
    %v4880 = vpack.c.b16 %v4804, %v4800
    %v4881 = vpack.c.b16 %v4805, %v4801
    %v4882 = vpack.c.b16 %v4806, %v4802
    %v4883 = vpack.c.b16 %v4811, %v4807
    %v4884 = vpack.c.b16 %v4812, %v4808
    %v4885 = vpack.c.b16 %v4813, %v4809
    %v4886 = vpack.c.b16 %v4814, %v4810
    %v4887 = vpack.c.b16 %v4819, %v4815
    %v4888 = vpack.c.b16 %v4820, %v4816
    %v4889 = vpack.c.b16 %v4821, %v4817
    %v4890 = vpack.c.b16 %v4822, %v4818
    %v4891 = vpack.c.b16 %v4827, %v4823
    %v4892 = vpack.c.b16 %v4828, %v4824
    %v4893 = vpack.c.b16 %v4829, %v4825
    %v4894 = vpack.c.b16 %v4830, %v4826
    %4959 = vmatprep.subr.bf16.mxu0 %v4832
    %4960 = vmatpush1.bf16.msra.mxu0 %v4831
    %4961 = vmatprep.subr.bf16.mxu0 %v4836
    %4962 = vmatpush1.bf16.msra.mxu0 %v4835
    %4963 = vmatprep.subr.bf16.mxu0 %v4840
    %4964 = vmatpush1.bf16.msra.mxu0 %v4839
    %4965 = vmatprep.subr.bf16.mxu0 %v4844
    %4966 = vmatpush1.bf16.msra.mxu0 %v4843
    %4967 = vmatprep.subr.bf16.mxu0 %v4848
    %4968 = vmatpush1.bf16.msra.mxu0 %v4847
    %4969 = vmatprep.subr.bf16.mxu0 %v4852
    %4970 = vmatpush1.bf16.msra.mxu0 %v4851
    %4971 = vmatprep.subr.bf16.mxu0 %v4856
    %4972 = vmatpush1.bf16.msra.mxu0 %v4855
    %4973 = vmatprep.subr.bf16.mxu0 %v4860
    %4974 = vmatpush1.bf16.msra.mxu0 %v4859
    %4975 = vmatprep.subr.bf16.mxu0 %v4864
    %4976 = vmatpush1.bf16.msra.mxu0 %v4863
    %4977 = vmatprep.subr.bf16.mxu0 %v4868
    %4978 = vmatpush1.bf16.msra.mxu0 %v4867
    %4979 = vmatprep.subr.bf16.mxu0 %v4872
    %4980 = vmatpush1.bf16.msra.mxu0 %v4871
    %4981 = vmatprep.subr.bf16.mxu0 %v4876
    %4982 = vmatpush1.bf16.msra.mxu0 %v4875
    %4983 = vmatprep.subr.bf16.mxu0 %v4880
    %4984 = vmatpush1.bf16.msra.mxu0 %v4879
    %4985 = vmatprep.subr.bf16.mxu0 %v4884
    %4986 = vmatpush1.bf16.msra.mxu0 %v4883
    %4987 = vmatprep.subr.bf16.mxu0 %v4888
    %4988 = vmatpush1.bf16.msra.mxu0 %v4887
    %4989 = vmatprep.subr.bf16.mxu0 %v4892
    %4990 = vmatpush1.bf16.msra.mxu0 %v4891
    %4991 = vmatprep.mubr.bf16.mxu0 %v4551
    %4992 = vmatmul.mubr.bf16.gmra.mrb[0].mxu0 %v4550
    %v4993 = vpop.f32.mrb[0].mxu0
    %v4994 = vadd.f32 %v4622, %v4993
    %v4995 = vpop.f32.mrb[0].mxu0
    %v4996 = vadd.f32 %v4626, %v4995
    %v4997 = vpop.f32.mrb[0].mxu0
    %v4998 = vpop.f32.mrb[0].mxu0
    %4999 = vdwg.mxu0
    %5000 = vmatprep.subr.bf16.mxu0 %v4834
    %5001 = vmatpush1.bf16.msra.mxu0 %v4833
    %5002 = vmatprep.subr.bf16.mxu0 %v4838
    %5003 = vmatpush1.bf16.msra.mxu0 %v4837
    %5004 = vmatprep.subr.bf16.mxu0 %v4842
    %5005 = vmatpush1.bf16.msra.mxu0 %v4841
    %5006 = vmatprep.subr.bf16.mxu0 %v4846
    %5007 = vmatpush1.bf16.msra.mxu0 %v4845
    %5008 = vmatprep.subr.bf16.mxu0 %v4850
    %5009 = vmatpush1.bf16.msra.mxu0 %v4849
    %5010 = vmatprep.subr.bf16.mxu0 %v4854
    %5011 = vmatpush1.bf16.msra.mxu0 %v4853
    %5012 = vmatprep.subr.bf16.mxu0 %v4858
    %5013 = vmatpush1.bf16.msra.mxu0 %v4857
    %5014 = vmatprep.subr.bf16.mxu0 %v4862
    %5015 = vmatpush1.bf16.msra.mxu0 %v4861
    %5016 = vmatprep.subr.bf16.mxu0 %v4866
    %5017 = vmatpush1.bf16.msra.mxu0 %v4865
    %5018 = vmatprep.subr.bf16.mxu0 %v4870
    %5019 = vmatpush1.bf16.msra.mxu0 %v4869
    %5020 = vmatprep.subr.bf16.mxu0 %v4874
    %5021 = vmatpush1.bf16.msra.mxu0 %v4873
    %5022 = vmatprep.subr.bf16.mxu0 %v4878
    %5023 = vmatpush1.bf16.msra.mxu0 %v4877
    %5024 = vmatprep.subr.bf16.mxu0 %v4882
    %5025 = vmatpush1.bf16.msra.mxu0 %v4881
    %5026 = vmatprep.subr.bf16.mxu0 %v4886
    %5027 = vmatpush1.bf16.msra.mxu0 %v4885
    %5028 = vmatprep.subr.bf16.mxu0 %v4890
    %5029 = vmatpush1.bf16.msra.mxu0 %v4889
    %5030 = vmatprep.subr.bf16.mxu0 %v4894
    %5031 = vmatpush1.bf16.msra.mxu0 %v4893
    %5032 = vmatprep.mubr.bf16.mxu0 %v4551
    %5033 = vmatmul.mubr.bf16.gmra.mrb[0].mxu0 %v4550
    %v5034 = vpop.f32.mrb[0].mxu0
    %v5035 = vadd.f32 %v4630, %v5034
    %v5036 = vpop.f32.mrb[0].mxu0
    %v5037 = vadd.f32 %v4634, %v5036
    %v5038 = vpop.f32.mrb[0].mxu0
    %v5039 = vpop.f32.mrb[0].mxu0
    %5040 = vdwg.mxu0
    %v5041 = vmul.f32 %v4994, 0.5
    %v5042 = vmul.f32 %v4996, 0.5
    %v5043 = vmul.f32 %v5035, 0.5
    %v5044 = vmul.f32 %v5037, 0.5
    %v5045 = vmul.f32 %v4994, %v4994
    %v5046 = vmul.f32 %v4996, %v4996
    %v5047 = vmul.f32 %v5035, %v5035
    %v5048 = vmul.f32 %v5037, %v5037
    %v5049 = vmul.f32 %v5045, %v4994
    %v5050 = vmul.f32 %v5046, %v4996
    %v5051 = vmul.f32 %v5047, %v5035
    %v5052 = vmul.f32 %v5048, %v5037
    %v5053 = vmul.f32 %v5049, 0.044715
    %v5054 = vmul.f32 %v5050, 0.044715
    %v5055 = vmul.f32 %v5051, 0.044715
    %v5056 = vmul.f32 %v5052, 0.044715
    %v5057 = vadd.f32 %v4994, %v5053
    %v5058 = vadd.f32 %v4996, %v5054
    %v5059 = vadd.f32 %v5035, %v5055
    %v5060 = vadd.f32 %v5037, %v5056
    %v5061 = vmul.f32 %v5057, 0.7978846
    %v5062 = vmul.f32 %v5058, 0.7978846
    %v5063 = vmul.f32 %v5059, 0.7978846
    %v5064 = vmul.f32 %v5060, 0.7978846
    %v5065 = vtanh.pop %v5061
    %v5066 = vtanh.pop %v5062
    %v5067 = vtanh.pop %v5063
    %v5068 = vtanh.pop %v5064
    %v5069 = vadd.f32 %v5065, 1.0
    %v5070 = vadd.f32 %v5066, 1.0
    %v5071 = vadd.f32 %v5067, 1.0
    %v5072 = vadd.f32 %v5068, 1.0
    %v5073 = vmul.f32 %v5041, %v5069
    %v5074 = vmul.f32 %v5042, %v5070
    %v5075 = vmul.f32 %v5043, %v5071
    %v5076 = vmul.f32 %v5044, %v5072
    %v5077 = vadd.f32 %v5073, %v5074
    %v5078 = vadd.f32 %v5077, %v5075
    %v5079 = vadd.f32 %v5078, %v5076
    %5080 = vadd.xlane.f32.xlu0 %v5079
    %v5081 = vpop.xlane.xlu0 %5080
    %v5082 = vmul.f32 %v5081, %v464
    %v5083 = vmul.f32 %v5073, %v5073
    %v5084 = vmul.f32 %v5074, %v5074
    %v5085 = vmul.f32 %v5075, %v5075
    %v5086 = vmul.f32 %v5076, %v5076
    %v5087 = vadd.f32 %v5083, %v5084
    %v5088 = vadd.f32 %v5087, %v5085
    %v5089 = vadd.f32 %v5088, %v5086
    %5090 = vadd.xlane.f32.xlu0 %v5089
    %v5091 = vpop.xlane.xlu0 %5090
    %v5092 = vmul.f32 %v5091, %v464
    %v5093 = vmul.f32 %v5082, %v5082
    %v5094 = vsub.f32 %v5092, %v5093
    %v5095 = vsub.f32 %v5073, %v5082
    %v5096 = vsub.f32 %v5074, %v5082
    %v5097 = vsub.f32 %v5075, %v5082
    %v5098 = vsub.f32 %v5076, %v5082
    %v5099 = vadd.f32 %v5094, 1e-05
    %v5100 = vrsqrt.pop %v5099
    %v5101 = vmul.f32 %v5095, %v5100
    %v5102 = vmul.f32 %v5096, %v5100
    %v5103 = vmul.f32 %v5097, %v5100
    %v5104 = vmul.f32 %v5098, %v5100
    %v5105 = vpack.c.bf16 %v5101, %v5101
    %v5106 = vpack.c.bf16 %v5102, %v5102
    %v5107 = vpack.c.bf16 %v5103, %v5103
    %v5108 = vpack.c.bf16 %v5104, %v5104
    %v5109 = vld [vmem:[#allocation9 + $0x14] sm:$0xf]
    %v5110 = vld [vmem:[#allocation9 + $0x2c] sm:$0xf]
    %v5111 = vld [vmem:[#allocation9 + $0x44] sm:$0xf]
    %v5112 = vld [vmem:[#allocation9 + $0x5c] sm:$0xf]
    %v5113 = vld [vmem:[#allocation9 + $0x74] sm:$0xf]
    %v5114 = vld [vmem:[#allocation9 + $0x8c] sm:$0xf]
    %v5115 = vld [vmem:[#allocation9 + $0xa4] sm:$0xf]
    %v5116 = vld [vmem:[#allocation9 + $0xbc] sm:$0xf]
    %v5117 = vld [vmem:[#allocation9 + $0xd4] sm:$0xf]
    %v5118 = vld [vmem:[#allocation9 + $0xec] sm:$0xf]
    %v5119 = vld [vmem:[#allocation9 + $0x104] sm:$0xf]
    %v5120 = vld [vmem:[#allocation9 + $0x11c] sm:$0xf]
    %v5121 = vld [vmem:[#allocation9 + $0x134] sm:$0xf]
    %v5122 = vld [vmem:[#allocation9 + $0x14c] sm:$0xf]
    %v5123 = vld [vmem:[#allocation9 + $0x164] sm:$0xf]
    %v5124 = vld [vmem:[#allocation9 + $0x17c] sm:$0xf]
    %v5125 = vld [vmem:[#allocation9 + $0x194] sm:$0xf]
    %v5126 = vld [vmem:[#allocation9 + $0x1ac] sm:$0xf]
    %v5127 = vld [vmem:[#allocation9 + $0x1c4] sm:$0xf]
    %v5128 = vld [vmem:[#allocation9 + $0x1dc] sm:$0xf]
    %v5129 = vld [vmem:[#allocation9 + $0x1f4] sm:$0xf]
    %v5130 = vld [vmem:[#allocation9 + $0x20c] sm:$0xf]
    %v5131 = vld [vmem:[#allocation9 + $0x224] sm:$0xf]
    %v5132 = vld [vmem:[#allocation9 + $0x23c] sm:$0xf]
    %v5133 = vld [vmem:[#allocation9 + $0x254] sm:$0xf]
    %v5134 = vld [vmem:[#allocation9 + $0x26c] sm:$0xf]
    %v5135 = vld [vmem:[#allocation9 + $0x284] sm:$0xf]
    %v5136 = vld [vmem:[#allocation9 + $0x29c] sm:$0xf]
    %v5137 = vld [vmem:[#allocation9 + $0x2b4] sm:$0xf]
    %v5138 = vld [vmem:[#allocation9 + $0x2cc] sm:$0xf]
    %v5139 = vld [vmem:[#allocation9 + $0x2e4] sm:$0xf]
    %v5140 = vld [vmem:[#allocation9 + $0x2fc] sm:$0xf]
    %v5141 = vld [vmem:[#allocation9 + $0x314] sm:$0xf]
    %v5142 = vld [vmem:[#allocation9 + $0x32c] sm:$0xf]
    %v5143 = vld [vmem:[#allocation9 + $0x344] sm:$0xf]
    %v5144 = vld [vmem:[#allocation9 + $0x35c] sm:$0xf]
    %v5145 = vld [vmem:[#allocation9 + $0x374] sm:$0xf]
    %v5146 = vld [vmem:[#allocation9 + $0x38c] sm:$0xf]
    %v5147 = vld [vmem:[#allocation9 + $0x3a4] sm:$0xf]
    %v5148 = vld [vmem:[#allocation9 + $0x3bc] sm:$0xf]
    %v5149 = vld [vmem:[#allocation9 + $0x3d4] sm:$0xf]
    %v5150 = vld [vmem:[#allocation9 + $0x3ec] sm:$0xf]
    %v5151 = vld [vmem:[#allocation9 + $0x404] sm:$0xf]
    %v5152 = vld [vmem:[#allocation9 + $0x41c] sm:$0xf]
    %v5153 = vld [vmem:[#allocation9 + $0x434] sm:$0xf]
    %v5154 = vld [vmem:[#allocation9 + $0x44c] sm:$0xf]
    %v5155 = vld [vmem:[#allocation9 + $0x464] sm:$0xf]
    %v5156 = vld [vmem:[#allocation9 + $0x47c] sm:$0xf]
    %v5157 = vld [vmem:[#allocation9 + $0x494] sm:$0xf]
    %v5158 = vld [vmem:[#allocation9 + $0x4ac] sm:$0xf]
    %v5159 = vld [vmem:[#allocation9 + $0x4c4] sm:$0xf]
    %v5160 = vld [vmem:[#allocation9 + $0x4dc] sm:$0xf]
    %v5161 = vld [vmem:[#allocation9 + $0x4f4] sm:$0xf]
    %v5162 = vld [vmem:[#allocation9 + $0x50c] sm:$0xf]
    %v5163 = vld [vmem:[#allocation9 + $0x524] sm:$0xf]
    %v5164 = vld [vmem:[#allocation9 + $0x53c] sm:$0xf]
    %v5165 = vld [vmem:[#allocation9 + $0x554] sm:$0xf]
    %v5166 = vld [vmem:[#allocation9 + $0x56c] sm:$0xf]
    %v5167 = vld [vmem:[#allocation9 + $0x584] sm:$0xf]
    %v5168 = vld [vmem:[#allocation9 + $0x59c] sm:$0xf]
    %v5169 = vld [vmem:[#allocation9 + $0x5b4] sm:$0xf]
    %v5170 = vld [vmem:[#allocation9 + $0x5cc] sm:$0xf]
    %v5171 = vld [vmem:[#allocation9 + $0x5e4] sm:$0xf]
    %v5172 = vld [vmem:[#allocation9 + $0x5fc] sm:$0xf]
    %v5173 = vld [vmem:[#allocation11 + $0x14] sm:$0x1]
    %v5174 = vlaneseq
    %v5175 = vshrl.u32 %v5174, 7
    %v5176 = vsub.s32 0, %v5175
    %v5177 = vrot.slane %v5173, %v5176
    %v5242 = vunpack.c.l.b16 %v5109
    %v5243 = vunpack.c.l.b16 %v5110
    %v5244 = vunpack.c.l.b16 %v5111
    %v5245 = vunpack.c.l.b16 %v5112
    %v5246 = vunpack.c.l.b16 %v5113
    %v5247 = vunpack.c.l.b16 %v5114
    %v5248 = vunpack.c.l.b16 %v5115
    %v5249 = vunpack.c.l.b16 %v5116
    %v5250 = vunpack.c.l.b16 %v5117
    %v5251 = vunpack.c.l.b16 %v5118
    %v5252 = vunpack.c.l.b16 %v5119
    %v5253 = vunpack.c.l.b16 %v5120
    %v5254 = vunpack.c.l.b16 %v5121
    %v5255 = vunpack.c.l.b16 %v5122
    %v5256 = vunpack.c.l.b16 %v5123
    %v5257 = vunpack.c.l.b16 %v5124
    %v5258 = vunpack.c.l.b16 %v5125
    %v5259 = vunpack.c.l.b16 %v5126
    %v5260 = vunpack.c.l.b16 %v5127
    %v5261 = vunpack.c.l.b16 %v5128
    %v5262 = vunpack.c.l.b16 %v5129
    %v5263 = vunpack.c.l.b16 %v5130
    %v5264 = vunpack.c.l.b16 %v5131
    %v5265 = vunpack.c.l.b16 %v5132
    %v5266 = vunpack.c.l.b16 %v5133
    %v5267 = vunpack.c.l.b16 %v5134
    %v5268 = vunpack.c.l.b16 %v5135
    %v5269 = vunpack.c.l.b16 %v5136
    %v5270 = vunpack.c.l.b16 %v5137
    %v5271 = vunpack.c.l.b16 %v5138
    %v5272 = vunpack.c.l.b16 %v5139
    %v5273 = vunpack.c.l.b16 %v5140
    %v5274 = vunpack.c.l.b16 %v5141
    %v5275 = vunpack.c.l.b16 %v5142
    %v5276 = vunpack.c.l.b16 %v5143
    %v5277 = vunpack.c.l.b16 %v5144
    %v5278 = vunpack.c.l.b16 %v5145
    %v5279 = vunpack.c.l.b16 %v5146
    %v5280 = vunpack.c.l.b16 %v5147
    %v5281 = vunpack.c.l.b16 %v5148
    %v5282 = vunpack.c.l.b16 %v5149
    %v5283 = vunpack.c.l.b16 %v5150
    %v5284 = vunpack.c.l.b16 %v5151
    %v5285 = vunpack.c.l.b16 %v5152
    %v5286 = vunpack.c.l.b16 %v5153
    %v5287 = vunpack.c.l.b16 %v5154
    %v5288 = vunpack.c.l.b16 %v5155
    %v5289 = vunpack.c.l.b16 %v5156
    %v5290 = vunpack.c.l.b16 %v5157
    %v5291 = vunpack.c.l.b16 %v5158
    %v5292 = vunpack.c.l.b16 %v5159
    %v5293 = vunpack.c.l.b16 %v5160
    %v5294 = vunpack.c.l.b16 %v5161
    %v5295 = vunpack.c.l.b16 %v5162
    %v5296 = vunpack.c.l.b16 %v5163
    %v5297 = vunpack.c.l.b16 %v5164
    %v5298 = vunpack.c.l.b16 %v5165
    %v5299 = vunpack.c.l.b16 %v5166
    %v5300 = vunpack.c.l.b16 %v5167
    %v5301 = vunpack.c.l.b16 %v5168
    %v5302 = vunpack.c.l.b16 %v5169
    %v5303 = vunpack.c.l.b16 %v5170
    %v5304 = vunpack.c.l.b16 %v5171
    %v5305 = vunpack.c.l.b16 %v5172
    %v5306 = vpack.c.b16 %v5243, %v5242
    %v5307 = vpack.c.b16 %v5245, %v5244
    %v5308 = vpack.c.b16 %v5247, %v5246
    %v5309 = vpack.c.b16 %v5249, %v5248
    %v5310 = vpack.c.b16 %v5251, %v5250
    %v5311 = vpack.c.b16 %v5253, %v5252
    %v5312 = vpack.c.b16 %v5255, %v5254
    %v5313 = vpack.c.b16 %v5257, %v5256
    %v5314 = vpack.c.b16 %v5259, %v5258
    %v5315 = vpack.c.b16 %v5261, %v5260
    %v5316 = vpack.c.b16 %v5263, %v5262
    %v5317 = vpack.c.b16 %v5265, %v5264
    %v5318 = vpack.c.b16 %v5267, %v5266
    %v5319 = vpack.c.b16 %v5269, %v5268
    %v5320 = vpack.c.b16 %v5271, %v5270
    %v5321 = vpack.c.b16 %v5273, %v5272
    %v5322 = vpack.c.b16 %v5275, %v5274
    %v5323 = vpack.c.b16 %v5277, %v5276
    %v5324 = vpack.c.b16 %v5279, %v5278
    %v5325 = vpack.c.b16 %v5281, %v5280
    %v5326 = vpack.c.b16 %v5283, %v5282
    %v5327 = vpack.c.b16 %v5285, %v5284
    %v5328 = vpack.c.b16 %v5287, %v5286
    %v5329 = vpack.c.b16 %v5289, %v5288
    %v5330 = vpack.c.b16 %v5291, %v5290
    %v5331 = vpack.c.b16 %v5293, %v5292
    %v5332 = vpack.c.b16 %v5295, %v5294
    %v5333 = vpack.c.b16 %v5297, %v5296
    %v5334 = vpack.c.b16 %v5299, %v5298
    %v5335 = vpack.c.b16 %v5301, %v5300
    %v5336 = vpack.c.b16 %v5303, %v5302
    %v5337 = vpack.c.b16 %v5305, %v5304
    %5370 = vmatprep.subr.bf16.mxu0 0
    %5371 = vmatpush1.bf16.msra.mxu0 %v5306
    %5372 = vmatprep.subr.bf16.mxu0 0
    %5373 = vmatpush1.bf16.msra.mxu0 %v5307
    %5374 = vmatprep.subr.bf16.mxu0 0
    %5375 = vmatpush1.bf16.msra.mxu0 %v5308
    %5376 = vmatprep.subr.bf16.mxu0 0
    %5377 = vmatpush1.bf16.msra.mxu0 %v5309
    %5378 = vmatprep.subr.bf16.mxu0 0
    %5379 = vmatpush1.bf16.msra.mxu0 %v5310
    %5380 = vmatprep.subr.bf16.mxu0 0
    %5381 = vmatpush1.bf16.msra.mxu0 %v5311
    %5382 = vmatprep.subr.bf16.mxu0 0
    %5383 = vmatpush1.bf16.msra.mxu0 %v5312
    %5384 = vmatprep.subr.bf16.mxu0 0
    %5385 = vmatpush1.bf16.msra.mxu0 %v5313
    %5386 = vmatprep.subr.bf16.mxu0 0
    %5387 = vmatpush1.bf16.msra.mxu0 %v5314
    %5388 = vmatprep.subr.bf16.mxu0 0
    %5389 = vmatpush1.bf16.msra.mxu0 %v5315
    %5390 = vmatprep.subr.bf16.mxu0 0
    %5391 = vmatpush1.bf16.msra.mxu0 %v5316
    %5392 = vmatprep.subr.bf16.mxu0 0
    %5393 = vmatpush1.bf16.msra.mxu0 %v5317
    %5394 = vmatprep.subr.bf16.mxu0 0
    %5395 = vmatpush1.bf16.msra.mxu0 %v5318
    %5396 = vmatprep.subr.bf16.mxu0 0
    %5397 = vmatpush1.bf16.msra.mxu0 %v5319
    %5398 = vmatprep.subr.bf16.mxu0 0
    %5399 = vmatpush1.bf16.msra.mxu0 %v5320
    %5400 = vmatprep.subr.bf16.mxu0 0
    %5401 = vmatpush1.bf16.msra.mxu0 %v5321
    %5402 = vmatprep.mubr.bf16.mxu0 %v5106
    %5403 = vmatmul.mubr.bf16.gmra.mrb[0].mxu0 %v5105
    %v5404 = vpop.f32.mrb[0].mxu0
    %v5405 = vadd.f32 %v5177, %v5404
    %v5406 = vpop.f32.mrb[0].mxu0
    %v5407 = vpop.f32.mrb[0].mxu0
    %v5408 = vpop.f32.mrb[0].mxu0
    %5409 = vdwg.mxu0
    %5410 = vmatprep.subr.bf16.mxu0 0
    %5411 = vmatpush1.bf16.msra.mxu0 %v5322
    %5412 = vmatprep.subr.bf16.mxu0 0
    %5413 = vmatpush1.bf16.msra.mxu0 %v5323
    %5414 = vmatprep.subr.bf16.mxu0 0
    %5415 = vmatpush1.bf16.msra.mxu0 %v5324
    %5416 = vmatprep.subr.bf16.mxu0 0
    %5417 = vmatpush1.bf16.msra.mxu0 %v5325
    %5418 = vmatprep.subr.bf16.mxu0 0
    %5419 = vmatpush1.bf16.msra.mxu0 %v5326
    %5420 = vmatprep.subr.bf16.mxu0 0
    %5421 = vmatpush1.bf16.msra.mxu0 %v5327
    %5422 = vmatprep.subr.bf16.mxu0 0
    %5423 = vmatpush1.bf16.msra.mxu0 %v5328
    %5424 = vmatprep.subr.bf16.mxu0 0
    %5425 = vmatpush1.bf16.msra.mxu0 %v5329
    %5426 = vmatprep.subr.bf16.mxu0 0
    %5427 = vmatpush1.bf16.msra.mxu0 %v5330
    %5428 = vmatprep.subr.bf16.mxu0 0
    %5429 = vmatpush1.bf16.msra.mxu0 %v5331
    %5430 = vmatprep.subr.bf16.mxu0 0
    %5431 = vmatpush1.bf16.msra.mxu0 %v5332
    %5432 = vmatprep.subr.bf16.mxu0 0
    %5433 = vmatpush1.bf16.msra.mxu0 %v5333
    %5434 = vmatprep.subr.bf16.mxu0 0
    %5435 = vmatpush1.bf16.msra.mxu0 %v5334
    %5436 = vmatprep.subr.bf16.mxu0 0
    %5437 = vmatpush1.bf16.msra.mxu0 %v5335
    %5438 = vmatprep.subr.bf16.mxu0 0
    %5439 = vmatpush1.bf16.msra.mxu0 %v5336
    %5440 = vmatprep.subr.bf16.mxu0 0
    %5441 = vmatpush1.bf16.msra.mxu0 %v5337
    %5442 = vmatprep.mubr.bf16.mxu0 %v5108
    %5443 = vmatmul.mubr.bf16.gmra.mrb[0].mxu0 %v5107
    %v5444 = vpop.f32.mrb[0].mxu0
    %v5445 = vadd.f32 %v5405, %v5444
    %v5446 = vpop.f32.mrb[0].mxu0
    %v5447 = vpop.f32.mrb[0].mxu0
    %v5448 = vpop.f32.mrb[0].mxu0
    %5449 = vdwg.mxu0
    %5450 = vst [vmem:[#allocation14] sm:$0xff] %v5445
    // Predicated region
    $region54: #{tpu_custom_call.1} parent=1 // pred_check
      _
    $region55: #{tpu_custom_call.1} parent=1 // pred_check_branch
      %5452 = sbr.rel (0) target = $region57
    $region56: #{tpu_custom_call.1} parent=1 // pred_region
      %s5454 = ssub.s32 128, 128
      %5455 = vsyncadd [#allocation5], %s5454
      %s5457 = sshll.u32 [#allocation14], 4
      %s5458 = int_to_ptr.vmem [resolvable:$true] %s5457
      %5460 = dma.vmem_to_hbm [thread:$0]  %s5458, 128, %s7, [#allocation5]
    $region57: #{tpu_custom_call.1} parent=1 // pred_fallthru
      _
    // Predicated region
    $region58: #{tpu_custom_call.1} parent=1 // pred_check
      _
    $region59: #{tpu_custom_call.1} parent=1 // pred_check_branch
      %5462 = sbr.rel (0) target = $region61
    $region60: #{tpu_custom_call.1} parent=1 // pred_region
      %5463 = dma.done [#allocation5], 128
    $region61: #{tpu_custom_call.1} parent=1 // pred_fallthru
      _
    %5464 = vsyncpa [#allocation4], 1
    %5465 = vsyncpa [#allocation7], 1
    %5466 = vsyncpa [#allocation10], 1
    %5467 = vsyncpa [#allocation13], 1
    %5468 = vsyncpa [#allocation5], 1

</llo_original>
